<compile_context>
chip_gen: v7x
topology: tpu7x:2x2x1
jax: 0.10.0
libtpu: 0.0.40
codegen_flags: <defaults>
</compile_context>

<pallas_src>
import jax
import jax.numpy as jnp
from jax.experimental import pallas as pl
from jax.experimental.pallas import tpu as pltpu

# ---- tiny-BERT config (synthetic, deterministic init) ----
B, S = 2, 8            # batch, sequence length
H, NH = 32, 4          # true hidden size, number of attention heads
HD = H // NH           # head dim
I = 64                 # true FFN intermediate size
L = 2                  # number of encoder layers
VOCAB, MAX_POS, TYPE_VOCAB = 100, 64, 2
LN_EPS = 1e-12

HP = 128               # lane-padded hidden size (lane-dense last dim)
IP = 128               # lane-padded FFN intermediate size


# ------------------------- shared math helpers -------------------------
def _gelu(x):
    # tanh-approximate GELU (lowers cleanly on TPU).
    # TODO(synk): HF BERT default is erf-GELU; difference is <1e-3 numerically.
    return 0.5 * x * (1.0 + jnp.tanh(0.7978845608028654 * (x + 0.044715 * x * x * x)))


# ------------------------------ fused kernel --------------------------------
def fused_bert_kernel(emb_ref, bias_ref, misc_ref, wqkv_ref, wo_ref, wi_ref,
                      wf_ref, vecs_ref, cls_ref, pool_ref):
    # misc rows: 0 emb_ln_gamma, 1 emb_ln_beta, 2 pooler_bias, 3 valid-lane mask,
    #            4..7 per-head lane masks (all length HP=128, zero-padded).
    misc = misc_ref[...]                          # (8, HP) f32
    lane_mask = misc[3:4]                         # (1, HP): 1.0 on true H lanes
    head_masks = misc[4:4 + NH].reshape(NH, 1, 1, HP)

    def layer_norm(x, g, b):
        # LayerNorm over the true H lanes only (padded lanes of x are zero).
        mean = jnp.sum(x, axis=-1, keepdims=True) * (1.0 / H)
        d = (x - mean) * lane_mask                # zero the padded lanes again
        var = jnp.sum(d * d, axis=-1, keepdims=True) * (1.0 / H)
        return d * jax.lax.rsqrt(var + LN_EPS) * g + b

    def mm(a, w):
        # bf16 operands into the MXU, f32 accumulate; elementwise stays f32.
        return jnp.dot(a.astype(jnp.bfloat16), w, preferred_element_type=jnp.float32)

    # embeddings LayerNorm on the flattened (B*S, HP) token slab
    x = emb_ref[...].reshape(B * S, HP)
    x = layer_norm(x, misc[0:1], misc[1:2])

    bias_hb = bias_ref[...]                       # (NH*B, S, S), pre-broadcast once
    scale = HD ** -0.5

    for l in range(L):                            # static unroll, L = 2
        vec = vecs_ref[l]                         # (10, HP): bq bk bv bo g1 b1 bi bf g2 b2

        # packed QKV: one (B*S,HP) x (HP,HP) matmul; Q lanes 0:32, K 32:64, V 64:96.
        qkv = mm(x, wqkv_ref[l])                  # (B*S, HP) f32
        q = (qkv * lane_mask + vec[0:1]).reshape(B, S, HP)
        k = (pltpu.roll(qkv, shift=HP - H, axis=1) * lane_mask + vec[1:2]).reshape(B, S, HP)
        v = (pltpu.roll(qkv, shift=HP - 2 * H, axis=1) * lane_mask + vec[2:3]).reshape(B, S, HP)

        # batched multi-head attention: heads stacked on a leading axis (g = NH*B),
        # separated by disjoint per-head lane masks -> two big MXU einsums.
        qh = (q[None] * head_masks).reshape(NH * B, S, HP).astype(jnp.bfloat16)
        kh = jnp.broadcast_to(k[None], (NH, B, S, HP)).reshape(NH * B, S, HP).astype(jnp.bfloat16)
        vh = (v[None] * head_masks).reshape(NH * B, S, HP).astype(jnp.bfloat16)

        s = jnp.einsum('gqd,gkd->gqk', qh, kh,
                       preferred_element_type=jnp.float32) * scale + bias_hb
        s = s - jnp.max(s, axis=-1, keepdims=True)
        p = jnp.exp(s)
        p = p * pl.reciprocal(jnp.sum(p, axis=-1, keepdims=True), approx=True)
        # eval mode: attention dropout (p=0.3) is identity
        ctx = jnp.einsum('gqk,gkd->gqd', p.astype(jnp.bfloat16), vh,
                         preferred_element_type=jnp.float32)
        ctx = ctx.reshape(NH, B * S, HP).sum(axis=0)   # disjoint head lanes -> exact

        attn = mm(ctx, wo_ref[l]) + vec[3:4]
        x = layer_norm(x + attn, vec[4:5], vec[5:6])          # post-attention LN

        ff = _gelu(mm(x, wi_ref[l]) + vec[6:7])
        ff = mm(ff, wf_ref[l]) + vec[7:8]
        x = layer_norm(x + ff, vec[8:9], vec[9:10])           # post-FFN LN

    # CLS vectors: pure sublane slice of the contiguous (B,S,HP) slab
    cls = x.reshape(B, S, HP)[:, 0, :]            # (B, HP)
    cls_ref[...] = cls
    # BERT pooler: dense + tanh (pooler weight stored at wo_ref[L])
    pool_ref[...] = jnp.tanh(mm(cls, wo_ref[L]) + misc[2:3])


# ----------------------------- forward wrapper -------------------------------
def neural_network_forward(packed, input_ids, attention_mask, token_type_ids,
                           output_way="cls"):
    # embeddings: gathers are glue (done in JAX); tables are lane-padded to HP.
    positions = jnp.arange(S)
    emb = (packed["word_emb"][input_ids]
           + packed["pos_emb"][positions][None, :, :]
           + packed["type_emb"][token_type_ids])                       # (B, S, HP)

    # additive attention-mask bias, pre-broadcast ONCE to (NH*B, S_q, S_k)
    bias = (1.0 - attention_mask.astype(jnp.float32)) * -1e9           # (B, S_k)
    bias_hb = jnp.broadcast_to(bias[None, :, None, :], (NH, B, S, S)).reshape(NH * B, S, S)

    args = (emb, bias_hb, packed["misc"], packed["wqkv"], packed["wo_pool"],
            packed["wi"], packed["wf"], packed["vecs"])

    vmem = pl.BlockSpec(memory_space=pltpu.MemorySpace.VMEM)
    flops = int(L * (2 * B * S * HP * HP          # packed QKV
                     + 4 * NH * B * S * S * HP    # scores + ctx
                     + 2 * B * S * HP * HP        # attn out proj
                     + 2 * B * S * HP * IP        # FFN in
                     + 2 * B * S * IP * HP)       # FFN out
                + 2 * B * HP * HP)                # pooler
    transcendentals = int(L * (NH * B * S * S + B * S * IP) + B * HP)
    bytes_accessed = int(sum(a.size * a.dtype.itemsize for a in args) + 2 * B * HP * 4)

    cls_p, pool_p = pl.pallas_call(
        fused_bert_kernel,
        out_shape=(jax.ShapeDtypeStruct((B, HP), jnp.float32),
                   jax.ShapeDtypeStruct((B, HP), jnp.float32)),
        in_specs=[vmem] * len(args),
        out_specs=(vmem, vmem),
        cost_estimate=pl.CostEstimate(flops=flops,
                                      transcendentals=transcendentals,
                                      bytes_accessed=bytes_accessed),
    )(*args)

    if output_way == "cls":
        return cls_p[:, :H]            # last_hidden_state[:, 0]
    elif output_way == "pooler":
        return pool_p[:, :H]           # pooler_output
    else:
        raise ValueError(output_way)


# --------------------------- parameter init / pack ---------------------------
def init_params(key):
    ks = iter(jax.random.split(key, 64))
    n = lambda shape: (0.02 * jax.random.normal(next(ks), shape)).astype(jnp.float32)
    raw = {
        "word_emb": n((VOCAB, H)), "pos_emb": n((MAX_POS, H)), "type_emb": n((TYPE_VOCAB, H)),
        "emb_g": jnp.ones((H,), jnp.float32), "emb_b": jnp.zeros((H,), jnp.float32),
        "pooler_w": n((H, H)), "pooler_b": jnp.zeros((H,), jnp.float32),
        "layers": [],
    }
    for _ in range(L):
        raw["layers"].append({
            "wq": n((H, H)), "bq": jnp.zeros((H,), jnp.float32),
            "wk": n((H, H)), "bk": jnp.zeros((H,), jnp.float32),
            "wv": n((H, H)), "bv": jnp.zeros((H,), jnp.float32),
            "wo": n((H, H)), "bo": jnp.zeros((H,), jnp.float32),
            "g1": jnp.ones((H,), jnp.float32), "b1": jnp.zeros((H,), jnp.float32),
            "wi": n((H, I)), "bi": jnp.zeros((I,), jnp.float32),
            "wf": n((I, H)), "bf": jnp.zeros((H,), jnp.float32),
            "g2": jnp.ones((H,), jnp.float32), "b2": jnp.zeros((H,), jnp.float32),
        })
    return raw


def pack_params(raw):
    """Zero-pad to lane-dense shapes; weights stored bf16, vectors/masks f32."""
    def pad2(w, rows, cols):
        return jnp.zeros((rows, cols), jnp.float32).at[:w.shape[0], :w.shape[1]].set(w)

    def padv(v, cols):
        return jnp.zeros((cols,), jnp.float32).at[:v.shape[0]].set(v)

    lane = jnp.arange(HP)
    lane_mask = (lane < H).astype(jnp.float32)
    head_masks = [((lane >= h * HD) & (lane < (h + 1) * HD)).astype(jnp.float32)
                  for h in range(NH)]
    misc = jnp.stack([padv(raw["emb_g"], HP), padv(raw["emb_b"], HP),
                      padv(raw["pooler_b"], HP), lane_mask] + head_masks, axis=0)  # (8, HP)

    wqkv_l, wo_l, wi_l, wf_l, vec_l = [], [], [], [], []
    for lw in raw["layers"]:
        # Q -> output lanes 0:32, K -> 32:64, V -> 64:96 of ONE (HP, HP) weight.
        wqkv = (jnp.zeros((HP, HP), jnp.float32)
                .at[:H, 0:H].set(lw["wq"])
                .at[:H, H:2 * H].set(lw["wk"])
                .at[:H, 2 * H:3 * H].set(lw["wv"]))
        wqkv_l.append(wqkv)
        wo_l.append(pad2(lw["wo"], HP, HP))
        wi_l.append(pad2(lw["wi"], HP, IP))
        wf_l.append(pad2(lw["wf"], IP, HP))
        vec_l.append(jnp.stack([padv(lw["bq"], HP), padv(lw["bk"], HP), padv(lw["bv"], HP),
                                padv(lw["bo"], HP), padv(lw["g1"], HP), padv(lw["b1"], HP),
                                padv(lw["bi"], HP), padv(lw["bf"], HP), padv(lw["g2"], HP),
                                padv(lw["b2"], HP)], axis=0))              # (10, HP)

    return {
        "word_emb": pad2(raw["word_emb"], VOCAB, HP),
        "pos_emb": pad2(raw["pos_emb"], MAX_POS, HP),
        "type_emb": pad2(raw["type_emb"], TYPE_VOCAB, HP),
        "misc": misc,                                                  # (8, HP) f32
        "wqkv": jnp.stack(wqkv_l, axis=0).astype(jnp.bfloat16),        # (L, HP, HP)
        "wo_pool": jnp.stack(wo_l + [pad2(raw["pooler_w"], HP, HP)],
                             axis=0).astype(jnp.bfloat16),             # (L+1, HP, HP)
        "wi": jnp.stack(wi_l, axis=0).astype(jnp.bfloat16),            # (L, HP, IP)
        "wf": jnp.stack(wf_l, axis=0).astype(jnp.bfloat16),            # (L, IP, HP)
        "vecs": jnp.stack(vec_l, axis=0),                              # (L, 10, HP) f32
    }


# ------------------------- pure-JAX reference (unpadded) ---------------------
def reference_forward(raw, input_ids, attention_mask, token_type_ids, output_way):
    def ln(x, g, b):
        mu = jnp.mean(x, axis=-1, keepdims=True)
        var = jnp.mean((x - mu) ** 2, axis=-1, keepdims=True)
        return (x - mu) * jax.lax.rsqrt(var + LN_EPS) * g + b

    emb = (raw["word_emb"][input_ids] + raw["pos_emb"][jnp.arange(S)][None, :, :]
           + raw["type_emb"][token_type_ids])
    h = ln(emb, raw["emb_g"], raw["emb_b"])
    bias = (1.0 - attention_mask.astype(jnp.float32)) * -1e9          # (B, S)
    for lw in raw["layers"]:
        q = h @ lw["wq"] + lw["bq"]
        k = h @ lw["wk"] + lw["bk"]
        v = h @ lw["wv"] + lw["bv"]
        qh = q.reshape(B, S, NH, HD).transpose(0, 2, 1, 3)
        kh = k.reshape(B, S, NH, HD).transpose(0, 2, 1, 3)
        vh = v.reshape(B, S, NH, HD).transpose(0, 2, 1, 3)
        s = jnp.einsum('bhqd,bhkd->bhqk', qh, kh) * (HD ** -0.5) + bias[:, None, None, :]
        p = jax.nn.softmax(s, axis=-1)
        ctx = jnp.einsum('bhqk,bhkd->bhqd', p, vh).transpose(0, 2, 1, 3).reshape(B, S, H)
        h = ln(h + ctx @ lw["wo"] + lw["bo"], lw["g1"], lw["b1"])
        ff = _gelu(h @ lw["wi"] + lw["bi"]) @ lw["wf"] + lw["bf"]
        h = ln(h + ff, lw["g2"], lw["b2"])
    cls = h[:, 0]
    if output_way == "cls":
        return cls
    return jnp.tanh(cls @ raw["pooler_w"] + raw["pooler_b"])


# -------------------------------- main ---------------------------------------
if __name__ == "__main__":
    key = jax.random.PRNGKey(0)
    k_ids, k_params = jax.random.split(key)

    input_ids = jax.random.randint(k_ids, (B, S), 2, VOCAB, dtype=jnp.int32).at[:, 0].set(1)
    attention_mask = jnp.ones((B, S), jnp.int32).at[1, 6:].set(0)
    token_type_ids = jnp.zeros((B, S), jnp.int32)

    raw = init_params(k_params)
    packed = pack_params(raw)

    fwd = jax.jit(neural_network_forward, static_argnames=("output_way",))
    out_cls = fwd(packed, input_ids, attention_mask, token_type_ids, output_way="cls")
    out_pool = fwd(packed, input_ids, attention_mask, token_type_ids, output_way="pooler")
    jax.block_until_ready((out_cls, out_pool))

    ref_cls = reference_forward(raw, input_ids, attention_mask, token_type_ids, "cls")
    ref_pool = reference_forward(raw, input_ids, attention_mask, token_type_ids, "pooler")

    assert out_cls.shape == (B, H) and out_pool.shape == (B, H)
    assert jnp.all(jnp.isfinite(out_cls)) and jnp.all(jnp.isfinite(out_pool))
    assert jnp.allclose(out_cls, ref_cls, atol=1e-2, rtol=1e-2), \
        float(jnp.max(jnp.abs(out_cls - ref_cls)))
    assert jnp.allclose(out_pool, ref_pool, atol=1e-2, rtol=1e-2), \
        float(jnp.max(jnp.abs(out_pool - ref_pool)))
    print("KERNEL_OK")
</pallas_src>

<mosaic_0001>
module attributes {stable_mosaic.version = 11 : i64} {
  func.func @fused_bert_kernel(%arg0: memref<2x8x128xf32, #tpu.memory_space<vmem>>, %arg1: memref<8x8x8xf32, #tpu.memory_space<vmem>>, %arg2: memref<8x128xf32, #tpu.memory_space<vmem>>, %arg3: memref<2x128x128xbf16, #tpu.memory_space<vmem>>, %arg4: memref<3x128x128xbf16, #tpu.memory_space<vmem>>, %arg5: memref<2x128x128xbf16, #tpu.memory_space<vmem>>, %arg6: memref<2x128x128xbf16, #tpu.memory_space<vmem>>, %arg7: memref<2x10x128xf32, #tpu.memory_space<vmem>>, %arg8: memref<2x128xf32, #tpu.memory_space<vmem>>, %arg9: memref<2x128xf32, #tpu.memory_space<vmem>>) attributes {dimension_semantics = [], scalar_prefetch = 0 : i64, scratch_operands = 0 : i64, tpu.core_type = #tpu.core_type<tc>} {
    %c0 = arith.constant 0 : index
    %c0_0 = arith.constant 0 : index
    %0 = vector.load %arg2[%c0, %c0_0] : memref<8x128xf32, #tpu.memory_space<vmem>>, vector<8x128xf32>
    %1 = vector.extract_strided_slice %0 {offsets = [3, 0], sizes = [1, 128], strides = [1, 1]} : vector<8x128xf32> to vector<1x128xf32>
    %2 = vector.extract_strided_slice %0 {offsets = [4, 0], sizes = [4, 128], strides = [1, 1]} : vector<8x128xf32> to vector<4x128xf32>
    %3 = vector.shape_cast %2 : vector<4x128xf32> to vector<4x1x1x128xf32>
    %c0_1 = arith.constant 0 : index
    %c0_2 = arith.constant 0 : index
    %c0_3 = arith.constant 0 : index
    %4 = vector.load %arg0[%c0_1, %c0_2, %c0_3] : memref<2x8x128xf32, #tpu.memory_space<vmem>>, vector<2x8x128xf32>
    %5 = vector.shape_cast %4 : vector<2x8x128xf32> to vector<16x128xf32>
    %6 = vector.extract_strided_slice %0 {offsets = [0, 0], sizes = [1, 128], strides = [1, 1]} : vector<8x128xf32> to vector<1x128xf32>
    %7 = vector.extract_strided_slice %0 {offsets = [1, 0], sizes = [1, 128], strides = [1, 1]} : vector<8x128xf32> to vector<1x128xf32>
    %cst = arith.constant dense<0.000000e+00> : vector<16xf32>
    %8 = vector.multi_reduction <add>, %5, %cst [1] : vector<16x128xf32> to vector<16xf32>
    %9 = vector.shape_cast %8 : vector<16xf32> to vector<16x1xf32>
    %cst_4 = arith.constant 3.125000e-02 : f32
    %10 = vector.broadcast %cst_4 : f32 to vector<16x1xf32>
    %11 = arith.mulf %9, %10 : vector<16x1xf32>
    %12 = vector.broadcast %11 : vector<16x1xf32> to vector<16x128xf32>
    %13 = arith.subf %5, %12 : vector<16x128xf32>
    %14 = vector.broadcast %1 : vector<1x128xf32> to vector<16x128xf32>
    %15 = arith.mulf %13, %14 : vector<16x128xf32>
    %16 = arith.mulf %15, %15 : vector<16x128xf32>
    %cst_5 = arith.constant dense<0.000000e+00> : vector<16xf32>
    %17 = vector.multi_reduction <add>, %16, %cst_5 [1] : vector<16x128xf32> to vector<16xf32>
    %18 = vector.shape_cast %17 : vector<16xf32> to vector<16x1xf32>
    %cst_6 = arith.constant 3.125000e-02 : f32
    %19 = vector.broadcast %cst_6 : f32 to vector<16x1xf32>
    %20 = arith.mulf %18, %19 : vector<16x1xf32>
    %cst_7 = arith.constant 9.99999996E-13 : f32
    %21 = vector.broadcast %cst_7 : f32 to vector<16x1xf32>
    %22 = arith.addf %20, %21 : vector<16x1xf32>
    %23 = math.rsqrt %22 : vector<16x1xf32>
    %24 = vector.broadcast %23 : vector<16x1xf32> to vector<16x128xf32>
    %25 = arith.mulf %15, %24 : vector<16x128xf32>
    %26 = vector.broadcast %6 : vector<1x128xf32> to vector<16x128xf32>
    %27 = arith.mulf %25, %26 : vector<16x128xf32>
    %28 = vector.broadcast %7 : vector<1x128xf32> to vector<16x128xf32>
    %29 = arith.addf %27, %28 : vector<16x128xf32>
    %c0_8 = arith.constant 0 : index
    %c0_9 = arith.constant 0 : index
    %c0_10 = arith.constant 0 : index
    %30 = vector.load %arg1[%c0_8, %c0_9, %c0_10] : memref<8x8x8xf32, #tpu.memory_space<vmem>>, vector<8x8x8xf32>
    %c0_11 = arith.constant 0 : index
    %c0_12 = arith.constant 0 : index
    %c0_13 = arith.constant 0 : index
    %31 = vector.load %arg7[%c0_11, %c0_12, %c0_13] : memref<2x10x128xf32, #tpu.memory_space<vmem>>, vector<1x10x128xf32>
    %32 = vector.shape_cast %31 : vector<1x10x128xf32> to vector<10x128xf32>
    %c0_14 = arith.constant 0 : index
    %c0_15 = arith.constant 0 : index
    %c0_16 = arith.constant 0 : index
    %33 = vector.load %arg3[%c0_14, %c0_15, %c0_16] : memref<2x128x128xbf16, #tpu.memory_space<vmem>>, vector<1x128x128xbf16>
    %34 = vector.shape_cast %33 : vector<1x128x128xbf16> to vector<128x128xbf16>
    %35 = arith.truncf %29 : vector<16x128xf32> to vector<16x128xbf16>
    %cst_17 = arith.constant dense<0.000000e+00> : vector<16x128xf32>
    %36 = tpu.matmul %35, %34, %cst_17 {dimension_numbers = #tpu.dot_dimension_numbers<[1], [0], [0], [1], [0, 0, 1, 1], [], []>} : vector<16x128xbf16>, vector<128x128xbf16>, vector<16x128xf32> -> vector<16x128xf32>
    %37 = vector.broadcast %1 : vector<1x128xf32> to vector<16x128xf32>
    %38 = arith.mulf %36, %37 : vector<16x128xf32>
    %39 = vector.extract_strided_slice %32 {offsets = [0, 0], sizes = [1, 128], strides = [1, 1]} : vector<10x128xf32> to vector<1x128xf32>
    %40 = vector.broadcast %39 : vector<1x128xf32> to vector<16x128xf32>
    %41 = arith.addf %38, %40 : vector<16x128xf32>
    %42 = vector.shape_cast %41 : vector<16x128xf32> to vector<2x8x128xf32>
    %c96_i32 = arith.constant 96 : i32
    %43 = tpu.dynamic_rotate %36 by %c96_i32 dim 1 : vector<16x128xf32>, i32 -> vector<16x128xf32>
    %44 = vector.broadcast %1 : vector<1x128xf32> to vector<16x128xf32>
    %45 = arith.mulf %43, %44 : vector<16x128xf32>
    %46 = vector.extract_strided_slice %32 {offsets = [1, 0], sizes = [1, 128], strides = [1, 1]} : vector<10x128xf32> to vector<1x128xf32>
    %47 = vector.broadcast %46 : vector<1x128xf32> to vector<16x128xf32>
    %48 = arith.addf %45, %47 : vector<16x128xf32>
    %49 = vector.shape_cast %48 : vector<16x128xf32> to vector<2x8x128xf32>
    %c64_i32 = arith.constant 64 : i32
    %50 = tpu.dynamic_rotate %36 by %c64_i32 dim 1 : vector<16x128xf32>, i32 -> vector<16x128xf32>
    %51 = vector.broadcast %1 : vector<1x128xf32> to vector<16x128xf32>
    %52 = arith.mulf %50, %51 : vector<16x128xf32>
    %53 = vector.extract_strided_slice %32 {offsets = [2, 0], sizes = [1, 128], strides = [1, 1]} : vector<10x128xf32> to vector<1x128xf32>
    %54 = vector.broadcast %53 : vector<1x128xf32> to vector<16x128xf32>
    %55 = arith.addf %52, %54 : vector<16x128xf32>
    %56 = vector.shape_cast %55 : vector<16x128xf32> to vector<2x8x128xf32>
    %57 = vector.shape_cast %42 : vector<2x8x128xf32> to vector<1x2x8x128xf32>
    %58 = vector.broadcast %57 : vector<1x2x8x128xf32> to vector<4x2x8x128xf32>
    %59 = vector.broadcast %3 : vector<4x1x1x128xf32> to vector<4x2x8x128xf32>
    %60 = arith.mulf %58, %59 : vector<4x2x8x128xf32>
    %61 = vector.shape_cast %60 : vector<4x2x8x128xf32> to vector<8x8x128xf32>
    %62 = arith.truncf %61 : vector<8x8x128xf32> to vector<8x8x128xbf16>
    %63 = vector.shape_cast %49 : vector<2x8x128xf32> to vector<1x2x8x128xf32>
    %64 = vector.shape_cast %63 : vector<1x2x8x128xf32> to vector<1x2x8x128xf32>
    %65 = vector.broadcast %64 : vector<1x2x8x128xf32> to vector<4x2x8x128xf32>
    %66 = vector.shape_cast %65 : vector<4x2x8x128xf32> to vector<8x8x128xf32>
    %67 = arith.truncf %66 : vector<8x8x128xf32> to vector<8x8x128xbf16>
    %68 = vector.shape_cast %56 : vector<2x8x128xf32> to vector<1x2x8x128xf32>
    %69 = vector.broadcast %68 : vector<1x2x8x128xf32> to vector<4x2x8x128xf32>
    %70 = vector.broadcast %3 : vector<4x1x1x128xf32> to vector<4x2x8x128xf32>
    %71 = arith.mulf %69, %70 : vector<4x2x8x128xf32>
    %72 = vector.shape_cast %71 : vector<4x2x8x128xf32> to vector<8x8x128xf32>
    %73 = arith.truncf %72 : vector<8x8x128xf32> to vector<8x8x128xbf16>
    "tpu.trace_start"() <{level = 10 : i32, message = "gqd,gkd->gqk"}> : () -> ()
    %cst_18 = arith.constant dense<0.000000e+00> : vector<8x8x8xf32>
    %74 = tpu.matmul %62, %67, %cst_18 {dimension_numbers = #tpu.dot_dimension_numbers<[2], [2], [1], [1], [0, 0, 0, 1, 1, 1], [0], [0]>} : vector<8x8x128xbf16>, vector<8x8x128xbf16>, vector<8x8x8xf32> -> vector<8x8x8xf32>
    "tpu.trace_stop"() : () -> ()
    %cst_19 = arith.constant 0.353553385 : f32
    %75 = vector.broadcast %cst_19 : f32 to vector<8x8x8xf32>
    %76 = arith.mulf %74, %75 : vector<8x8x8xf32>
    %77 = arith.addf %76, %30 : vector<8x8x8xf32>
    %cst_20 = arith.constant dense<0xFF800000> : vector<8x8xf32>
    %78 = vector.multi_reduction <maximumf>, %77, %cst_20 [2] : vector<8x8x8xf32> to vector<8x8xf32>
    %79 = vector.shape_cast %78 : vector<8x8xf32> to vector<8x8x1xf32>
    %80 = vector.broadcast %79 : vector<8x8x1xf32> to vector<8x8x8xf32>
    %81 = arith.subf %77, %80 : vector<8x8x8xf32>
    %82 = math.exp %81 : vector<8x8x8xf32>
    %cst_21 = arith.constant dense<0.000000e+00> : vector<8x8xf32>
    %83 = vector.multi_reduction <add>, %82, %cst_21 [2] : vector<8x8x8xf32> to vector<8x8xf32>
    %84 = vector.shape_cast %83 : vector<8x8xf32> to vector<8x8x1xf32>
    %85 = tpu.reciprocal %84 {approx = true} : vector<8x8x1xf32> -> vector<8x8x1xf32>
    %86 = vector.broadcast %85 : vector<8x8x1xf32> to vector<8x8x8xf32>
    %87 = arith.mulf %82, %86 : vector<8x8x8xf32>
    %88 = arith.truncf %87 : vector<8x8x8xf32> to vector<8x8x8xbf16>
    "tpu.trace_start"() <{level = 10 : i32, message = "gqk,gkd->gqd"}> : () -> ()
    %cst_22 = arith.constant dense<0.000000e+00> : vector<8x8x128xf32>
    %89 = tpu.matmul %88, %73, %cst_22 {dimension_numbers = #tpu.dot_dimension_numbers<[2], [1], [1], [2], [0, 0, 0, 1, 1, 2], [0], [0]>} : vector<8x8x8xbf16>, vector<8x8x128xbf16>, vector<8x8x128xf32> -> vector<8x8x128xf32>
    "tpu.trace_stop"() : () -> ()
    %90 = vector.shape_cast %89 : vector<8x8x128xf32> to vector<4x16x128xf32>
    %cst_23 = arith.constant dense<0.000000e+00> : vector<16x128xf32>
    %91 = vector.multi_reduction <add>, %90, %cst_23 [0] : vector<4x16x128xf32> to vector<16x128xf32>
    %c0_24 = arith.constant 0 : index
    %c0_25 = arith.constant 0 : index
    %c0_26 = arith.constant 0 : index
    %92 = vector.load %arg4[%c0_24, %c0_25, %c0_26] : memref<3x128x128xbf16, #tpu.memory_space<vmem>>, vector<1x128x128xbf16>
    %93 = vector.shape_cast %92 : vector<1x128x128xbf16> to vector<128x128xbf16>
    %94 = arith.truncf %91 : vector<16x128xf32> to vector<16x128xbf16>
    %cst_27 = arith.constant dense<0.000000e+00> : vector<16x128xf32>
    %95 = tpu.matmul %94, %93, %cst_27 {dimension_numbers = #tpu.dot_dimension_numbers<[1], [0], [0], [1], [0, 0, 1, 1], [], []>} : vector<16x128xbf16>, vector<128x128xbf16>, vector<16x128xf32> -> vector<16x128xf32>
    %96 = vector.extract_strided_slice %32 {offsets = [3, 0], sizes = [1, 128], strides = [1, 1]} : vector<10x128xf32> to vector<1x128xf32>
    %97 = vector.broadcast %96 : vector<1x128xf32> to vector<16x128xf32>
    %98 = arith.addf %95, %97 : vector<16x128xf32>
    %99 = arith.addf %29, %98 : vector<16x128xf32>
    %100 = vector.extract_strided_slice %32 {offsets = [4, 0], sizes = [1, 128], strides = [1, 1]} : vector<10x128xf32> to vector<1x128xf32>
    %101 = vector.extract_strided_slice %32 {offsets = [5, 0], sizes = [1, 128], strides = [1, 1]} : vector<10x128xf32> to vector<1x128xf32>
    %cst_28 = arith.constant dense<0.000000e+00> : vector<16xf32>
    %102 = vector.multi_reduction <add>, %99, %cst_28 [1] : vector<16x128xf32> to vector<16xf32>
    %103 = vector.shape_cast %102 : vector<16xf32> to vector<16x1xf32>
    %cst_29 = arith.constant 3.125000e-02 : f32
    %104 = vector.broadcast %cst_29 : f32 to vector<16x1xf32>
    %105 = arith.mulf %103, %104 : vector<16x1xf32>
    %106 = vector.broadcast %105 : vector<16x1xf32> to vector<16x128xf32>
    %107 = arith.subf %99, %106 : vector<16x128xf32>
    %108 = vector.broadcast %1 : vector<1x128xf32> to vector<16x128xf32>
    %109 = arith.mulf %107, %108 : vector<16x128xf32>
    %110 = arith.mulf %109, %109 : vector<16x128xf32>
    %cst_30 = arith.constant dense<0.000000e+00> : vector<16xf32>
    %111 = vector.multi_reduction <add>, %110, %cst_30 [1] : vector<16x128xf32> to vector<16xf32>
    %112 = vector.shape_cast %111 : vector<16xf32> to vector<16x1xf32>
    %cst_31 = arith.constant 3.125000e-02 : f32
    %113 = vector.broadcast %cst_31 : f32 to vector<16x1xf32>
    %114 = arith.mulf %112, %113 : vector<16x1xf32>
    %cst_32 = arith.constant 9.99999996E-13 : f32
    %115 = vector.broadcast %cst_32 : f32 to vector<16x1xf32>
    %116 = arith.addf %114, %115 : vector<16x1xf32>
    %117 = math.rsqrt %116 : vector<16x1xf32>
    %118 = vector.broadcast %117 : vector<16x1xf32> to vector<16x128xf32>
    %119 = arith.mulf %109, %118 : vector<16x128xf32>
    %120 = vector.broadcast %100 : vector<1x128xf32> to vector<16x128xf32>
    %121 = arith.mulf %119, %120 : vector<16x128xf32>
    %122 = vector.broadcast %101 : vector<1x128xf32> to vector<16x128xf32>
    %123 = arith.addf %121, %122 : vector<16x128xf32>
    %c0_33 = arith.constant 0 : index
    %c0_34 = arith.constant 0 : index
    %c0_35 = arith.constant 0 : index
    %124 = vector.load %arg5[%c0_33, %c0_34, %c0_35] : memref<2x128x128xbf16, #tpu.memory_space<vmem>>, vector<1x128x128xbf16>
    %125 = vector.shape_cast %124 : vector<1x128x128xbf16> to vector<128x128xbf16>
    %126 = arith.truncf %123 : vector<16x128xf32> to vector<16x128xbf16>
    %cst_36 = arith.constant dense<0.000000e+00> : vector<16x128xf32>
    %127 = tpu.matmul %126, %125, %cst_36 {dimension_numbers = #tpu.dot_dimension_numbers<[1], [0], [0], [1], [0, 0, 1, 1], [], []>} : vector<16x128xbf16>, vector<128x128xbf16>, vector<16x128xf32> -> vector<16x128xf32>
    %128 = vector.extract_strided_slice %32 {offsets = [6, 0], sizes = [1, 128], strides = [1, 1]} : vector<10x128xf32> to vector<1x128xf32>
    %129 = vector.broadcast %128 : vector<1x128xf32> to vector<16x128xf32>
    %130 = arith.addf %127, %129 : vector<16x128xf32>
    %cst_37 = arith.constant 5.000000e-01 : f32
    %131 = vector.broadcast %cst_37 : f32 to vector<16x128xf32>
    %132 = arith.mulf %131, %130 : vector<16x128xf32>
    %cst_38 = arith.constant 4.471500e-02 : f32
    %133 = vector.broadcast %cst_38 : f32 to vector<16x128xf32>
    %134 = arith.mulf %133, %130 : vector<16x128xf32>
    %135 = arith.mulf %134, %130 : vector<16x128xf32>
    %136 = arith.mulf %135, %130 : vector<16x128xf32>
    %137 = arith.addf %130, %136 : vector<16x128xf32>
    %cst_39 = arith.constant 0.797884583 : f32
    %138 = vector.broadcast %cst_39 : f32 to vector<16x128xf32>
    %139 = arith.mulf %138, %137 : vector<16x128xf32>
    %140 = math.tanh %139 : vector<16x128xf32>
    %cst_40 = arith.constant 1.000000e+00 : f32
    %141 = vector.broadcast %cst_40 : f32 to vector<16x128xf32>
    %142 = arith.addf %141, %140 : vector<16x128xf32>
    %143 = arith.mulf %132, %142 : vector<16x128xf32>
    %c0_41 = arith.constant 0 : index
    %c0_42 = arith.constant 0 : index
    %c0_43 = arith.constant 0 : index
    %144 = vector.load %arg6[%c0_41, %c0_42, %c0_43] : memref<2x128x128xbf16, #tpu.memory_space<vmem>>, vector<1x128x128xbf16>
    %145 = vector.shape_cast %144 : vector<1x128x128xbf16> to vector<128x128xbf16>
    %146 = arith.truncf %143 : vector<16x128xf32> to vector<16x128xbf16>
    %cst_44 = arith.constant dense<0.000000e+00> : vector<16x128xf32>
    %147 = tpu.matmul %146, %145, %cst_44 {dimension_numbers = #tpu.dot_dimension_numbers<[1], [0], [0], [1], [0, 0, 1, 1], [], []>} : vector<16x128xbf16>, vector<128x128xbf16>, vector<16x128xf32> -> vector<16x128xf32>
    %148 = vector.extract_strided_slice %32 {offsets = [7, 0], sizes = [1, 128], strides = [1, 1]} : vector<10x128xf32> to vector<1x128xf32>
    %149 = vector.broadcast %148 : vector<1x128xf32> to vector<16x128xf32>
    %150 = arith.addf %147, %149 : vector<16x128xf32>
    %151 = arith.addf %123, %150 : vector<16x128xf32>
    %152 = vector.extract_strided_slice %32 {offsets = [8, 0], sizes = [1, 128], strides = [1, 1]} : vector<10x128xf32> to vector<1x128xf32>
    %153 = vector.extract_strided_slice %32 {offsets = [9, 0], sizes = [1, 128], strides = [1, 1]} : vector<10x128xf32> to vector<1x128xf32>
    %cst_45 = arith.constant dense<0.000000e+00> : vector<16xf32>
    %154 = vector.multi_reduction <add>, %151, %cst_45 [1] : vector<16x128xf32> to vector<16xf32>
    %155 = vector.shape_cast %154 : vector<16xf32> to vector<16x1xf32>
    %cst_46 = arith.constant 3.125000e-02 : f32
    %156 = vector.broadcast %cst_46 : f32 to vector<16x1xf32>
    %157 = arith.mulf %155, %156 : vector<16x1xf32>
    %158 = vector.broadcast %157 : vector<16x1xf32> to vector<16x128xf32>
    %159 = arith.subf %151, %158 : vector<16x128xf32>
    %160 = vector.broadcast %1 : vector<1x128xf32> to vector<16x128xf32>
    %161 = arith.mulf %159, %160 : vector<16x128xf32>
    %162 = arith.mulf %161, %161 : vector<16x128xf32>
    %cst_47 = arith.constant dense<0.000000e+00> : vector<16xf32>
    %163 = vector.multi_reduction <add>, %162, %cst_47 [1] : vector<16x128xf32> to vector<16xf32>
    %164 = vector.shape_cast %163 : vector<16xf32> to vector<16x1xf32>
    %cst_48 = arith.constant 3.125000e-02 : f32
    %165 = vector.broadcast %cst_48 : f32 to vector<16x1xf32>
    %166 = arith.mulf %164, %165 : vector<16x1xf32>
    %cst_49 = arith.constant 9.99999996E-13 : f32
    %167 = vector.broadcast %cst_49 : f32 to vector<16x1xf32>
    %168 = arith.addf %166, %167 : vector<16x1xf32>
    %169 = math.rsqrt %168 : vector<16x1xf32>
    %170 = vector.broadcast %169 : vector<16x1xf32> to vector<16x128xf32>
    %171 = arith.mulf %161, %170 : vector<16x128xf32>
    %172 = vector.broadcast %152 : vector<1x128xf32> to vector<16x128xf32>
    %173 = arith.mulf %171, %172 : vector<16x128xf32>
    %174 = vector.broadcast %153 : vector<1x128xf32> to vector<16x128xf32>
    %175 = arith.addf %173, %174 : vector<16x128xf32>
    %c1 = arith.constant 1 : index
    %c0_50 = arith.constant 0 : index
    %c0_51 = arith.constant 0 : index
    %176 = vector.load %arg7[%c1, %c0_50, %c0_51] : memref<2x10x128xf32, #tpu.memory_space<vmem>>, vector<1x10x128xf32>
    %177 = vector.shape_cast %176 : vector<1x10x128xf32> to vector<10x128xf32>
    %c1_52 = arith.constant 1 : index
    %c0_53 = arith.constant 0 : index
    %c0_54 = arith.constant 0 : index
    %178 = vector.load %arg3[%c1_52, %c0_53, %c0_54] : memref<2x128x128xbf16, #tpu.memory_space<vmem>>, vector<1x128x128xbf16>
    %179 = vector.shape_cast %178 : vector<1x128x128xbf16> to vector<128x128xbf16>
    %180 = arith.truncf %175 : vector<16x128xf32> to vector<16x128xbf16>
    %cst_55 = arith.constant dense<0.000000e+00> : vector<16x128xf32>
    %181 = tpu.matmul %180, %179, %cst_55 {dimension_numbers = #tpu.dot_dimension_numbers<[1], [0], [0], [1], [0, 0, 1, 1], [], []>} : vector<16x128xbf16>, vector<128x128xbf16>, vector<16x128xf32> -> vector<16x128xf32>
    %182 = vector.broadcast %1 : vector<1x128xf32> to vector<16x128xf32>
    %183 = arith.mulf %181, %182 : vector<16x128xf32>
    %184 = vector.extract_strided_slice %177 {offsets = [0, 0], sizes = [1, 128], strides = [1, 1]} : vector<10x128xf32> to vector<1x128xf32>
    %185 = vector.broadcast %184 : vector<1x128xf32> to vector<16x128xf32>
    %186 = arith.addf %183, %185 : vector<16x128xf32>
    %187 = vector.shape_cast %186 : vector<16x128xf32> to vector<2x8x128xf32>
    %c96_i32_56 = arith.constant 96 : i32
    %188 = tpu.dynamic_rotate %181 by %c96_i32_56 dim 1 : vector<16x128xf32>, i32 -> vector<16x128xf32>
    %189 = vector.broadcast %1 : vector<1x128xf32> to vector<16x128xf32>
    %190 = arith.mulf %188, %189 : vector<16x128xf32>
    %191 = vector.extract_strided_slice %177 {offsets = [1, 0], sizes = [1, 128], strides = [1, 1]} : vector<10x128xf32> to vector<1x128xf32>
    %192 = vector.broadcast %191 : vector<1x128xf32> to vector<16x128xf32>
    %193 = arith.addf %190, %192 : vector<16x128xf32>
    %194 = vector.shape_cast %193 : vector<16x128xf32> to vector<2x8x128xf32>
    %c64_i32_57 = arith.constant 64 : i32
    %195 = tpu.dynamic_rotate %181 by %c64_i32_57 dim 1 : vector<16x128xf32>, i32 -> vector<16x128xf32>
    %196 = vector.broadcast %1 : vector<1x128xf32> to vector<16x128xf32>
    %197 = arith.mulf %195, %196 : vector<16x128xf32>
    %198 = vector.extract_strided_slice %177 {offsets = [2, 0], sizes = [1, 128], strides = [1, 1]} : vector<10x128xf32> to vector<1x128xf32>
    %199 = vector.broadcast %198 : vector<1x128xf32> to vector<16x128xf32>
    %200 = arith.addf %197, %199 : vector<16x128xf32>
    %201 = vector.shape_cast %200 : vector<16x128xf32> to vector<2x8x128xf32>
    %202 = vector.shape_cast %187 : vector<2x8x128xf32> to vector<1x2x8x128xf32>
    %203 = vector.broadcast %202 : vector<1x2x8x128xf32> to vector<4x2x8x128xf32>
    %204 = vector.broadcast %3 : vector<4x1x1x128xf32> to vector<4x2x8x128xf32>
    %205 = arith.mulf %203, %204 : vector<4x2x8x128xf32>
    %206 = vector.shape_cast %205 : vector<4x2x8x128xf32> to vector<8x8x128xf32>
    %207 = arith.truncf %206 : vector<8x8x128xf32> to vector<8x8x128xbf16>
    %208 = vector.shape_cast %194 : vector<2x8x128xf32> to vector<1x2x8x128xf32>
    %209 = vector.shape_cast %208 : vector<1x2x8x128xf32> to vector<1x2x8x128xf32>
    %210 = vector.broadcast %209 : vector<1x2x8x128xf32> to vector<4x2x8x128xf32>
    %211 = vector.shape_cast %210 : vector<4x2x8x128xf32> to vector<8x8x128xf32>
    %212 = arith.truncf %211 : vector<8x8x128xf32> to vector<8x8x128xbf16>
    %213 = vector.shape_cast %201 : vector<2x8x128xf32> to vector<1x2x8x128xf32>
    %214 = vector.broadcast %213 : vector<1x2x8x128xf32> to vector<4x2x8x128xf32>
    %215 = vector.broadcast %3 : vector<4x1x1x128xf32> to vector<4x2x8x128xf32>
    %216 = arith.mulf %214, %215 : vector<4x2x8x128xf32>
    %217 = vector.shape_cast %216 : vector<4x2x8x128xf32> to vector<8x8x128xf32>
    %218 = arith.truncf %217 : vector<8x8x128xf32> to vector<8x8x128xbf16>
    "tpu.trace_start"() <{level = 10 : i32, message = "gqd,gkd->gqk"}> : () -> ()
    %cst_58 = arith.constant dense<0.000000e+00> : vector<8x8x8xf32>
    %219 = tpu.matmul %207, %212, %cst_58 {dimension_numbers = #tpu.dot_dimension_numbers<[2], [2], [1], [1], [0, 0, 0, 1, 1, 1], [0], [0]>} : vector<8x8x128xbf16>, vector<8x8x128xbf16>, vector<8x8x8xf32> -> vector<8x8x8xf32>
    "tpu.trace_stop"() : () -> ()
    %cst_59 = arith.constant 0.353553385 : f32
    %220 = vector.broadcast %cst_59 : f32 to vector<8x8x8xf32>
    %221 = arith.mulf %219, %220 : vector<8x8x8xf32>
    %222 = arith.addf %221, %30 : vector<8x8x8xf32>
    %cst_60 = arith.constant dense<0xFF800000> : vector<8x8xf32>
    %223 = vector.multi_reduction <maximumf>, %222, %cst_60 [2] : vector<8x8x8xf32> to vector<8x8xf32>
    %224 = vector.shape_cast %223 : vector<8x8xf32> to vector<8x8x1xf32>
    %225 = vector.broadcast %224 : vector<8x8x1xf32> to vector<8x8x8xf32>
    %226 = arith.subf %222, %225 : vector<8x8x8xf32>
    %227 = math.exp %226 : vector<8x8x8xf32>
    %cst_61 = arith.constant dense<0.000000e+00> : vector<8x8xf32>
    %228 = vector.multi_reduction <add>, %227, %cst_61 [2] : vector<8x8x8xf32> to vector<8x8xf32>
    %229 = vector.shape_cast %228 : vector<8x8xf32> to vector<8x8x1xf32>
    %230 = tpu.reciprocal %229 {approx = true} : vector<8x8x1xf32> -> vector<8x8x1xf32>
    %231 = vector.broadcast %230 : vector<8x8x1xf32> to vector<8x8x8xf32>
    %232 = arith.mulf %227, %231 : vector<8x8x8xf32>
    %233 = arith.truncf %232 : vector<8x8x8xf32> to vector<8x8x8xbf16>
    "tpu.trace_start"() <{level = 10 : i32, message = "gqk,gkd->gqd"}> : () -> ()
    %cst_62 = arith.constant dense<0.000000e+00> : vector<8x8x128xf32>
    %234 = tpu.matmul %233, %218, %cst_62 {dimension_numbers = #tpu.dot_dimension_numbers<[2], [1], [1], [2], [0, 0, 0, 1, 1, 2], [0], [0]>} : vector<8x8x8xbf16>, vector<8x8x128xbf16>, vector<8x8x128xf32> -> vector<8x8x128xf32>
    "tpu.trace_stop"() : () -> ()
    %235 = vector.shape_cast %234 : vector<8x8x128xf32> to vector<4x16x128xf32>
    %cst_63 = arith.constant dense<0.000000e+00> : vector<16x128xf32>
    %236 = vector.multi_reduction <add>, %235, %cst_63 [0] : vector<4x16x128xf32> to vector<16x128xf32>
    %c1_64 = arith.constant 1 : index
    %c0_65 = arith.constant 0 : index
    %c0_66 = arith.constant 0 : index
    %237 = vector.load %arg4[%c1_64, %c0_65, %c0_66] : memref<3x128x128xbf16, #tpu.memory_space<vmem>>, vector<1x128x128xbf16>
    %238 = vector.shape_cast %237 : vector<1x128x128xbf16> to vector<128x128xbf16>
    %239 = arith.truncf %236 : vector<16x128xf32> to vector<16x128xbf16>
    %cst_67 = arith.constant dense<0.000000e+00> : vector<16x128xf32>
    %240 = tpu.matmul %239, %238, %cst_67 {dimension_numbers = #tpu.dot_dimension_numbers<[1], [0], [0], [1], [0, 0, 1, 1], [], []>} : vector<16x128xbf16>, vector<128x128xbf16>, vector<16x128xf32> -> vector<16x128xf32>
    %241 = vector.extract_strided_slice %177 {offsets = [3, 0], sizes = [1, 128], strides = [1, 1]} : vector<10x128xf32> to vector<1x128xf32>
    %242 = vector.broadcast %241 : vector<1x128xf32> to vector<16x128xf32>
    %243 = arith.addf %240, %242 : vector<16x128xf32>
    %244 = arith.addf %175, %243 : vector<16x128xf32>
    %245 = vector.extract_strided_slice %177 {offsets = [4, 0], sizes = [1, 128], strides = [1, 1]} : vector<10x128xf32> to vector<1x128xf32>
    %246 = vector.extract_strided_slice %177 {offsets = [5, 0], sizes = [1, 128], strides = [1, 1]} : vector<10x128xf32> to vector<1x128xf32>
    %cst_68 = arith.constant dense<0.000000e+00> : vector<16xf32>
    %247 = vector.multi_reduction <add>, %244, %cst_68 [1] : vector<16x128xf32> to vector<16xf32>
    %248 = vector.shape_cast %247 : vector<16xf32> to vector<16x1xf32>
    %cst_69 = arith.constant 3.125000e-02 : f32
    %249 = vector.broadcast %cst_69 : f32 to vector<16x1xf32>
    %250 = arith.mulf %248, %249 : vector<16x1xf32>
    %251 = vector.broadcast %250 : vector<16x1xf32> to vector<16x128xf32>
    %252 = arith.subf %244, %251 : vector<16x128xf32>
    %253 = vector.broadcast %1 : vector<1x128xf32> to vector<16x128xf32>
    %254 = arith.mulf %252, %253 : vector<16x128xf32>
    %255 = arith.mulf %254, %254 : vector<16x128xf32>
    %cst_70 = arith.constant dense<0.000000e+00> : vector<16xf32>
    %256 = vector.multi_reduction <add>, %255, %cst_70 [1] : vector<16x128xf32> to vector<16xf32>
    %257 = vector.shape_cast %256 : vector<16xf32> to vector<16x1xf32>
    %cst_71 = arith.constant 3.125000e-02 : f32
    %258 = vector.broadcast %cst_71 : f32 to vector<16x1xf32>
    %259 = arith.mulf %257, %258 : vector<16x1xf32>
    %cst_72 = arith.constant 9.99999996E-13 : f32
    %260 = vector.broadcast %cst_72 : f32 to vector<16x1xf32>
    %261 = arith.addf %259, %260 : vector<16x1xf32>
    %262 = math.rsqrt %261 : vector<16x1xf32>
    %263 = vector.broadcast %262 : vector<16x1xf32> to vector<16x128xf32>
    %264 = arith.mulf %254, %263 : vector<16x128xf32>
    %265 = vector.broadcast %245 : vector<1x128xf32> to vector<16x128xf32>
    %266 = arith.mulf %264, %265 : vector<16x128xf32>
    %267 = vector.broadcast %246 : vector<1x128xf32> to vector<16x128xf32>
    %268 = arith.addf %266, %267 : vector<16x128xf32>
    %c1_73 = arith.constant 1 : index
    %c0_74 = arith.constant 0 : index
    %c0_75 = arith.constant 0 : index
    %269 = vector.load %arg5[%c1_73, %c0_74, %c0_75] : memref<2x128x128xbf16, #tpu.memory_space<vmem>>, vector<1x128x128xbf16>
    %270 = vector.shape_cast %269 : vector<1x128x128xbf16> to vector<128x128xbf16>
    %271 = arith.truncf %268 : vector<16x128xf32> to vector<16x128xbf16>
    %cst_76 = arith.constant dense<0.000000e+00> : vector<16x128xf32>
    %272 = tpu.matmul %271, %270, %cst_76 {dimension_numbers = #tpu.dot_dimension_numbers<[1], [0], [0], [1], [0, 0, 1, 1], [], []>} : vector<16x128xbf16>, vector<128x128xbf16>, vector<16x128xf32> -> vector<16x128xf32>
    %273 = vector.extract_strided_slice %177 {offsets = [6, 0], sizes = [1, 128], strides = [1, 1]} : vector<10x128xf32> to vector<1x128xf32>
    %274 = vector.broadcast %273 : vector<1x128xf32> to vector<16x128xf32>
    %275 = arith.addf %272, %274 : vector<16x128xf32>
    %cst_77 = arith.constant 5.000000e-01 : f32
    %276 = vector.broadcast %cst_77 : f32 to vector<16x128xf32>
    %277 = arith.mulf %276, %275 : vector<16x128xf32>
    %cst_78 = arith.constant 4.471500e-02 : f32
    %278 = vector.broadcast %cst_78 : f32 to vector<16x128xf32>
    %279 = arith.mulf %278, %275 : vector<16x128xf32>
    %280 = arith.mulf %279, %275 : vector<16x128xf32>
    %281 = arith.mulf %280, %275 : vector<16x128xf32>
    %282 = arith.addf %275, %281 : vector<16x128xf32>
    %cst_79 = arith.constant 0.797884583 : f32
    %283 = vector.broadcast %cst_79 : f32 to vector<16x128xf32>
    %284 = arith.mulf %283, %282 : vector<16x128xf32>
    %285 = math.tanh %284 : vector<16x128xf32>
    %cst_80 = arith.constant 1.000000e+00 : f32
    %286 = vector.broadcast %cst_80 : f32 to vector<16x128xf32>
    %287 = arith.addf %286, %285 : vector<16x128xf32>
    %288 = arith.mulf %277, %287 : vector<16x128xf32>
    %c1_81 = arith.constant 1 : index
    %c0_82 = arith.constant 0 : index
    %c0_83 = arith.constant 0 : index
    %289 = vector.load %arg6[%c1_81, %c0_82, %c0_83] : memref<2x128x128xbf16, #tpu.memory_space<vmem>>, vector<1x128x128xbf16>
    %290 = vector.shape_cast %289 : vector<1x128x128xbf16> to vector<128x128xbf16>
    %291 = arith.truncf %288 : vector<16x128xf32> to vector<16x128xbf16>
    %cst_84 = arith.constant dense<0.000000e+00> : vector<16x128xf32>
    %292 = tpu.matmul %291, %290, %cst_84 {dimension_numbers = #tpu.dot_dimension_numbers<[1], [0], [0], [1], [0, 0, 1, 1], [], []>} : vector<16x128xbf16>, vector<128x128xbf16>, vector<16x128xf32> -> vector<16x128xf32>
    %293 = vector.extract_strided_slice %177 {offsets = [7, 0], sizes = [1, 128], strides = [1, 1]} : vector<10x128xf32> to vector<1x128xf32>
    %294 = vector.broadcast %293 : vector<1x128xf32> to vector<16x128xf32>
    %295 = arith.addf %292, %294 : vector<16x128xf32>
    %296 = arith.addf %268, %295 : vector<16x128xf32>
    %297 = vector.extract_strided_slice %177 {offsets = [8, 0], sizes = [1, 128], strides = [1, 1]} : vector<10x128xf32> to vector<1x128xf32>
    %298 = vector.extract_strided_slice %177 {offsets = [9, 0], sizes = [1, 128], strides = [1, 1]} : vector<10x128xf32> to vector<1x128xf32>
    %cst_85 = arith.constant dense<0.000000e+00> : vector<16xf32>
    %299 = vector.multi_reduction <add>, %296, %cst_85 [1] : vector<16x128xf32> to vector<16xf32>
    %300 = vector.shape_cast %299 : vector<16xf32> to vector<16x1xf32>
    %cst_86 = arith.constant 3.125000e-02 : f32
    %301 = vector.broadcast %cst_86 : f32 to vector<16x1xf32>
    %302 = arith.mulf %300, %301 : vector<16x1xf32>
    %303 = vector.broadcast %302 : vector<16x1xf32> to vector<16x128xf32>
    %304 = arith.subf %296, %303 : vector<16x128xf32>
    %305 = vector.broadcast %1 : vector<1x128xf32> to vector<16x128xf32>
    %306 = arith.mulf %304, %305 : vector<16x128xf32>
    %307 = arith.mulf %306, %306 : vector<16x128xf32>
    %cst_87 = arith.constant dense<0.000000e+00> : vector<16xf32>
    %308 = vector.multi_reduction <add>, %307, %cst_87 [1] : vector<16x128xf32> to vector<16xf32>
    %309 = vector.shape_cast %308 : vector<16xf32> to vector<16x1xf32>
    %cst_88 = arith.constant 3.125000e-02 : f32
    %310 = vector.broadcast %cst_88 : f32 to vector<16x1xf32>
    %311 = arith.mulf %309, %310 : vector<16x1xf32>
    %cst_89 = arith.constant 9.99999996E-13 : f32
    %312 = vector.broadcast %cst_89 : f32 to vector<16x1xf32>
    %313 = arith.addf %311, %312 : vector<16x1xf32>
    %314 = math.rsqrt %313 : vector<16x1xf32>
    %315 = vector.broadcast %314 : vector<16x1xf32> to vector<16x128xf32>
    %316 = arith.mulf %306, %315 : vector<16x128xf32>
    %317 = vector.broadcast %297 : vector<1x128xf32> to vector<16x128xf32>
    %318 = arith.mulf %316, %317 : vector<16x128xf32>
    %319 = vector.broadcast %298 : vector<1x128xf32> to vector<16x128xf32>
    %320 = arith.addf %318, %319 : vector<16x128xf32>
    %321 = vector.shape_cast %320 : vector<16x128xf32> to vector<2x8x128xf32>
    %322 = vector.extract_strided_slice %321 {offsets = [0, 0, 0], sizes = [2, 1, 128], strides = [1, 1, 1]} : vector<2x8x128xf32> to vector<2x1x128xf32>
    %323 = vector.shape_cast %322 : vector<2x1x128xf32> to vector<2x128xf32>
    %c0_90 = arith.constant 0 : index
    %c0_91 = arith.constant 0 : index
    %324 = vector.load %arg8[%c0_90, %c0_91] : memref<2x128xf32, #tpu.memory_space<vmem>>, vector<2x128xf32>
    tpu.vector_store %arg8[%c0_90, %c0_91], %323 {strides = array<i32>} : memref<2x128xf32, #tpu.memory_space<vmem>>, vector<2x128xf32>,
    %c2 = arith.constant 2 : index
    %c0_92 = arith.constant 0 : index
    %c0_93 = arith.constant 0 : index
    %325 = vector.load %arg4[%c2, %c0_92, %c0_93] : memref<3x128x128xbf16, #tpu.memory_space<vmem>>, vector<1x128x128xbf16>
    %326 = vector.shape_cast %325 : vector<1x128x128xbf16> to vector<128x128xbf16>
    %327 = arith.truncf %323 : vector<2x128xf32> to vector<2x128xbf16>
    %cst_94 = arith.constant dense<0.000000e+00> : vector<2x128xf32>
    %328 = tpu.matmul %327, %326, %cst_94 {dimension_numbers = #tpu.dot_dimension_numbers<[1], [0], [0], [1], [0, 0, 1, 1], [], []>} : vector<2x128xbf16>, vector<128x128xbf16>, vector<2x128xf32> -> vector<2x128xf32>
    %329 = vector.extract_strided_slice %0 {offsets = [2, 0], sizes = [1, 128], strides = [1, 1]} : vector<8x128xf32> to vector<1x128xf32>
    %330 = vector.broadcast %329 : vector<1x128xf32> to vector<2x128xf32>
    %331 = arith.addf %328, %330 : vector<2x128xf32>
    %332 = math.tanh %331 : vector<2x128xf32>
    %c0_95 = arith.constant 0 : index
    %c0_96 = arith.constant 0 : index
    %333 = vector.load %arg9[%c0_95, %c0_96] : memref<2x128xf32, #tpu.memory_space<vmem>>, vector<2x128xf32>
    tpu.vector_store %arg9[%c0_95, %c0_96], %332 {strides = array<i32>} : memref<2x128xf32, #tpu.memory_space<vmem>>, vector<2x128xf32>,
    return
  }
}

</mosaic_0001>

<llo_original>
// kernel: neural_network_forward.1
$region0: #{neural_network_forward.1}
  #allocation0 [shape = 'u32[]', space=smem, size = 0x4, offset = 0x4, fixed_abs, tag = 'smem constant byte address 0x4 - core index']
  #allocation1 [shape = 'u32[144,128]{1,0:T(1,128)}', space=vmem, size = 0x12000, scoped, tag = 'internal scratch']
  %s0 = inlined_call_operand.vmem [shape: f32[2,8,128], index: 0, kind: input, shape index: {}]
  %s1 = inlined_call_operand.vmem [shape: f32[8,8,8], index: 1, kind: input, shape index: {}]
  %s2 = inlined_call_operand.vmem [shape: f32[8,128], index: 2, kind: input, shape index: {}]
  %s3 = inlined_call_operand.vmem [shape: bf16[2,128,128], index: 3, kind: input, shape index: {}]
  %s4 = inlined_call_operand.vmem [shape: bf16[3,128,128], index: 4, kind: input, shape index: {}]
  %s5 = inlined_call_operand.vmem [shape: bf16[2,128,128], index: 5, kind: input, shape index: {}]
  %s6 = inlined_call_operand.hbm [shape: bf16[2,128,128], index: 6, kind: input, shape index: {}]
  %s7 = inlined_call_operand.vmem [shape: f32[2,10,128], index: 7, kind: input, shape index: {}]
  %s8 = inlined_call_operand.hbm [shape: f32[2,128], index: 8, kind: output, shape index: {0}]
  %s9 = inlined_call_operand.hbm [shape: f32[2,128], index: 9, kind: output, shape index: {1}]
  %10 = xla_tuple %s8, %s9
  %s11 = sld [smem:[#allocation0]]
  $region54: #{neural_network_forward.1} parent=0
    _
  %s13 = ssub.s32 1, %s11
  %s14 = scalar_select 0, %s13, %s11
  $region1: #{neural_network_forward.1} parent=0
    #allocation2 [shape = 'u8[65536]{0}', space=vmem, size = 0x10000, scoped, tag = 'input window, operand 6, single buffered']
    #allocation3 [shape = 's32[1]{0}', space=sflag, size = 0x4, scoped, tag = 'scoped memory for neural_network_forward.1']
    #allocation4 [shape = 's32[1]{0}', space=sflag, size = 0x4, scoped, tag = 'scoped memory for neural_network_forward.1']
    #allocation5 [shape = 'u8[1024]{0}', space=vmem, size = 0x400, scoped, tag = 'output window, operand 0, single buffered']
    #allocation6 [shape = 'u8[1024]{0}', space=vmem, size = 0x400, scoped, tag = 'output window, operand 1, single buffered']
    #allocation7 [shape = 's32[1]{0}', space=sflag, size = 0x4, scoped, tag = 'scoped memory for neural_network_forward.1']
    %15 = vsyncpa [#allocation3], 0
    %16 = vsyncpa [#allocation4], 0
    %17 = vsyncpa [#allocation7], 0
    // Predicated region
    $region2: #{neural_network_forward.1} parent=1 // pred_check
      _
    $region3: #{neural_network_forward.1} parent=1 // pred_check_branch
      %19 = sbr.rel (0) target = $region5
    $region4: #{neural_network_forward.1} parent=1 // pred_region
      _
    $region5: #{neural_network_forward.1} parent=1 // pred_fallthru
      _
    // Predicated region
    $region6: #{neural_network_forward.1} parent=1 // pred_check
      _
    $region7: #{neural_network_forward.1} parent=1 // pred_check_branch
      %21 = sbr.rel (0) target = $region9
    $region8: #{neural_network_forward.1} parent=1 // pred_region
      _
    $region9: #{neural_network_forward.1} parent=1 // pred_fallthru
      _
    // Predicated region
    $region10: #{neural_network_forward.1} parent=1 // pred_check
      _
    $region11: #{neural_network_forward.1} parent=1 // pred_check_branch
      %23 = sbr.rel (0) target = $region13
    $region12: #{neural_network_forward.1} parent=1 // pred_region
      _
    $region13: #{neural_network_forward.1} parent=1 // pred_fallthru
      _
    // Predicated region
    $region14: #{neural_network_forward.1} parent=1 // pred_check
      _
    $region15: #{neural_network_forward.1} parent=1 // pred_check_branch
      %25 = sbr.rel (0) target = $region17
    $region16: #{neural_network_forward.1} parent=1 // pred_region
      _
    $region17: #{neural_network_forward.1} parent=1 // pred_fallthru
      _
    // Predicated region
    $region18: #{neural_network_forward.1} parent=1 // pred_check
      _
    $region19: #{neural_network_forward.1} parent=1 // pred_check_branch
      %27 = sbr.rel (0) target = $region21
    $region20: #{neural_network_forward.1} parent=1 // pred_region
      _
    $region21: #{neural_network_forward.1} parent=1 // pred_fallthru
      _
    // Predicated region
    $region22: #{neural_network_forward.1} parent=1 // pred_check
      _
    $region23: #{neural_network_forward.1} parent=1 // pred_check_branch
      %29 = sbr.rel (0) target = $region25
    $region24: #{neural_network_forward.1} parent=1 // pred_region
      _
    $region25: #{neural_network_forward.1} parent=1 // pred_fallthru
      _
    // Predicated region
    $region26: #{neural_network_forward.1} parent=1 // pred_check
      _
    $region27: #{neural_network_forward.1} parent=1 // pred_check_branch
      %31 = sbr.rel (0) target = $region29
    $region28: #{neural_network_forward.1} parent=1 // pred_region
      %s33 = ssub.s32 2048, 2048
      %34 = vsyncadd [#allocation3], %s33
      %s35 = sshll.u32 [#allocation2], 4
      %s36 = int_to_ptr.vmem [resolvable:$true] %s35
      %41 = dma.hbm_to_vmem [thread:$0]  %s6, 2048, %s36, [#allocation3], 64, 64, 4
    $region29: #{neural_network_forward.1} parent=1 // pred_fallthru
      _
    // Predicated region
    $region30: #{neural_network_forward.1} parent=1 // pred_check
      _
    $region31: #{neural_network_forward.1} parent=1 // pred_check_branch
      %43 = sbr.rel (0) target = $region33
    $region32: #{neural_network_forward.1} parent=1 // pred_region
      _
    $region33: #{neural_network_forward.1} parent=1 // pred_fallthru
      _
    // Predicated region
    $region34: #{neural_network_forward.1} parent=1 // pred_check
      _
    $region35: #{neural_network_forward.1} parent=1 // pred_check_branch
      %45 = sbr.rel (0) target = $region37
    $region36: #{neural_network_forward.1} parent=1 // pred_region
      %46 = dma.done [#allocation3], 2048
    $region37: #{neural_network_forward.1} parent=1 // pred_fallthru
      _
    %v48 = vld [vmem:[%s2] sm:$0xff]
    %v50 = vcombine.high %v48, %v48
    %v52 = vunpack.c.l.s4 1966171168
    %v53 = vunpack.c.0.s8 %v52
    %v54 = vlaneseq
    %v55 = vshrl.u32 %v54, 7
    %v56 = vsub.s32 %v53, %v55
    %v57 = vrot.slane %v50, %v56
    %v58 = vcombine.high %v57, %v57
    %v60 = vunpack.c.l.s4 1966171168
    %v61 = vunpack.c.0.s8 %v60
    %v62 = vlaneseq
    %v63 = vshrl.u32 %v62, 7
    %v64 = vsub.s32 %v61, %v63
    %v65 = vrot.slane %v57, %v64
    %v67 = vunpack.c.l.s4 1966171168
    %v68 = vunpack.c.0.s8 %v67
    %v69 = vlaneseq
    %v70 = vshrl.u32 %v69, 7
    %v71 = vsub.s32 %v68, %v70
    %v72 = vrot.slane %v58, %v71
    %v73 = vcombine.high %v65, %v65
    %v74 = vcombine.high %v72, %v72
    %v75 = vld [vmem:[%s0] sm:$0xff]
    %v76 = vld [vmem:[%s0 + $0x8] sm:$0xff]
    %77 = vadd.xlane.f32.xlu0 %v75
    %v78 = vpop.xlane.xlu0 %77
    %79 = vadd.xlane.f32.xlu0 %v76
    %v80 = vpop.xlane.xlu0 %79
    %v81 = vmul.f32 %v78, 0.03125
    %v82 = vmul.f32 %v80, 0.03125
    %v83 = vsub.f32 %v75, %v81
    %v84 = vsub.f32 %v76, %v82
    %v85 = vlaneseq
    %v86 = vshrl.u32 %v85, 7
    %v87 = vsub.s32 3, %v86
    %v88 = vrot.slane %v48, %v87
    %v89 = vmul.f32 %v83, %v88
    %v90 = vmul.f32 %v84, %v88
    %v91 = vmul.f32 %v89, %v89
    %v92 = vmul.f32 %v90, %v90
    %93 = vadd.xlane.f32.xlu0 %v91
    %v94 = vpop.xlane.xlu0 %93
    %95 = vadd.xlane.f32.xlu0 %v92
    %v96 = vpop.xlane.xlu0 %95
    %v97 = vmul.f32 %v94, 0.03125
    %v98 = vmul.f32 %v96, 0.03125
    %v99 = vadd.f32 %v97, 1e-12
    %v100 = vadd.f32 %v98, 1e-12
    %v101 = vrsqrt.pop %v99
    %v102 = vrsqrt.pop %v100
    %v103 = vmul.f32 %v89, %v101
    %v104 = vmul.f32 %v90, %v102
    %v105 = vlaneseq
    %v106 = vshrl.u32 %v105, 7
    %v107 = vsub.s32 0, %v106
    %v108 = vrot.slane %v48, %v107
    %v109 = vmul.f32 %v103, %v108
    %v110 = vmul.f32 %v104, %v108
    %v111 = vlaneseq
    %v112 = vshrl.u32 %v111, 7
    %v113 = vsub.s32 1, %v112
    %v114 = vrot.slane %v48, %v113
    %v115 = vadd.f32 %v109, %v114
    %v116 = vadd.f32 %v110, %v114
    %v117 = vld [vmem:[%s1] sm:$0xff]
    %v118 = vld [vmem:[%s1 + $0x8] sm:$0xff]
    %v119 = vld [vmem:[%s1 + $0x10] sm:$0xff]
    %v120 = vld [vmem:[%s1 + $0x18] sm:$0xff]
    %v121 = vld [vmem:[%s1 + $0x20] sm:$0xff]
    %v122 = vld [vmem:[%s1 + $0x28] sm:$0xff]
    %v123 = vld [vmem:[%s1 + $0x30] sm:$0xff]
    %v124 = vld [vmem:[%s1 + $0x38] sm:$0xff]
    %v125 = vld [vmem:[%s7] sm:$0xff]
    %v126 = vld [vmem:[%s7 + $0x8] sm:$0x3]
    %v127 = vld [vmem:[%s3] sm:$0xf]
    %v128 = vld [vmem:[%s3 + $0x4] sm:$0xf]
    %v129 = vld [vmem:[%s3 + $0x8] sm:$0xf]
    %v130 = vld [vmem:[%s3 + $0xc] sm:$0xf]
    %v131 = vld [vmem:[%s3 + $0x10] sm:$0xf]
    %v132 = vld [vmem:[%s3 + $0x14] sm:$0xf]
    %v133 = vld [vmem:[%s3 + $0x18] sm:$0xf]
    %v134 = vld [vmem:[%s3 + $0x1c] sm:$0xf]
    %v135 = vld [vmem:[%s3 + $0x20] sm:$0xf]
    %v136 = vld [vmem:[%s3 + $0x24] sm:$0xf]
    %v137 = vld [vmem:[%s3 + $0x28] sm:$0xf]
    %v138 = vld [vmem:[%s3 + $0x2c] sm:$0xf]
    %v139 = vld [vmem:[%s3 + $0x30] sm:$0xf]
    %v140 = vld [vmem:[%s3 + $0x34] sm:$0xf]
    %v141 = vld [vmem:[%s3 + $0x38] sm:$0xf]
    %v142 = vld [vmem:[%s3 + $0x3c] sm:$0xf]
    %v143 = vpack.c.bf16 %v116, %v115
    %v160 = vunpack.c.l.b16 %v127
    %v161 = vunpack.c.l.b16 %v128
    %v162 = vunpack.c.l.b16 %v129
    %v163 = vunpack.c.l.b16 %v130
    %v164 = vunpack.c.l.b16 %v131
    %v165 = vunpack.c.l.b16 %v132
    %v166 = vunpack.c.l.b16 %v133
    %v167 = vunpack.c.l.b16 %v134
    %v168 = vunpack.c.l.b16 %v135
    %v169 = vunpack.c.l.b16 %v136
    %v170 = vunpack.c.l.b16 %v137
    %v171 = vunpack.c.l.b16 %v138
    %v172 = vunpack.c.l.b16 %v139
    %v173 = vunpack.c.l.b16 %v140
    %v174 = vunpack.c.l.b16 %v141
    %v175 = vunpack.c.l.b16 %v142
    %v176 = vpack.c.b16 %v161, %v160
    %v177 = vpack.c.b16 %v163, %v162
    %v178 = vpack.c.b16 %v165, %v164
    %v179 = vpack.c.b16 %v167, %v166
    %v180 = vpack.c.b16 %v169, %v168
    %v181 = vpack.c.b16 %v171, %v170
    %v182 = vpack.c.b16 %v173, %v172
    %v183 = vpack.c.b16 %v175, %v174
    %192 = vmatprep.subr.bf16.mxu0 0
    %193 = vmatpush1.bf16.msra.mxu0 %v176
    %194 = vmatprep.subr.bf16.mxu0 0
    %195 = vmatpush1.bf16.msra.mxu0 %v177
    %196 = vmatprep.subr.bf16.mxu0 0
    %197 = vmatpush1.bf16.msra.mxu0 %v178
    %198 = vmatprep.subr.bf16.mxu0 0
    %199 = vmatpush1.bf16.msra.mxu0 %v179
    %200 = vmatprep.subr.bf16.mxu0 0
    %201 = vmatpush1.bf16.msra.mxu0 %v180
    %202 = vmatprep.subr.bf16.mxu0 0
    %203 = vmatpush1.bf16.msra.mxu0 %v181
    %204 = vmatprep.subr.bf16.mxu0 0
    %205 = vmatpush1.bf16.msra.mxu0 %v182
    %206 = vmatprep.subr.bf16.mxu0 0
    %207 = vmatpush1.bf16.msra.mxu0 %v183
    %208 = vmatprep.subr.bf16.mxu0 0
    %209 = vmatpush1.bf16.msra.mxu0 0
    %210 = vmatprep.subr.bf16.mxu0 0
    %211 = vmatpush1.bf16.msra.mxu0 0
    %212 = vmatprep.subr.bf16.mxu0 0
    %213 = vmatpush1.bf16.msra.mxu0 0
    %214 = vmatprep.subr.bf16.mxu0 0
    %215 = vmatpush1.bf16.msra.mxu0 0
    %216 = vmatprep.subr.bf16.mxu0 0
    %217 = vmatpush1.bf16.msra.mxu0 0
    %218 = vmatprep.subr.bf16.mxu0 0
    %219 = vmatpush1.bf16.msra.mxu0 0
    %220 = vmatprep.subr.bf16.mxu0 0
    %221 = vmatpush1.bf16.msra.mxu0 0
    %222 = vmatprep.subr.bf16.mxu0 0
    %223 = vmatpush1.bf16.msra.mxu0 0
    %224 = vmatprep.mubr.bf16.mxu0 0
    %225 = vmatmul.mubr.bf16.gmra.mrb[0].mxu0 %v143
    %v226 = vpop.f32.mrb[0].mxu0
    %v227 = vadd.f32 0.0, %v226
    %v228 = vpop.f32.mrb[0].mxu0
    %v229 = vpop.f32.mrb[0].mxu0
    %v230 = vadd.f32 0.0, %v229
    %v231 = vpop.f32.mrb[0].mxu0
    %232 = vdwg.mxu0
    %v233 = vmul.f32 %v227, %v88
    %v234 = vmul.f32 %v230, %v88
    %v235 = vlaneseq
    %v236 = vshrl.u32 %v235, 7
    %v237 = vsub.s32 0, %v236
    %v238 = vrot.slane %v125, %v237
    %v239 = vadd.f32 %v233, %v238
    %v240 = vadd.f32 %v234, %v238
    %241 = vrot.lane.b32.xlu0 %v227, 96
    %v242 = vpop.permute.xlu0 %241
    %243 = vrot.lane.b32.xlu0 %v230, 96
    %v244 = vpop.permute.xlu0 %243
    %v245 = vmul.f32 %v242, %v88
    %v246 = vmul.f32 %v244, %v88
    %v247 = vlaneseq
    %v248 = vshrl.u32 %v247, 7
    %v249 = vsub.s32 1, %v248
    %v250 = vrot.slane %v125, %v249
    %v251 = vadd.f32 %v245, %v250
    %v252 = vadd.f32 %v246, %v250
    %253 = vrot.lane.b32.xlu0 %v227, 64
    %v254 = vpop.permute.xlu0 %253
    %255 = vrot.lane.b32.xlu0 %v230, 64
    %v256 = vpop.permute.xlu0 %255
    %v257 = vmul.f32 %v254, %v88
    %v258 = vmul.f32 %v256, %v88
    %v259 = vlaneseq
    %v260 = vshrl.u32 %v259, 7
    %v261 = vsub.s32 2, %v260
    %v262 = vrot.slane %v125, %v261
    %v263 = vadd.f32 %v257, %v262
    %v264 = vadd.f32 %v258, %v262
    %v265 = vlaneseq
    %v266 = vshrl.u32 %v265, 7
    %v267 = vsub.s32 0, %v266
    %v268 = vrot.slane %v65, %v267
    %v269 = vlaneseq
    %v270 = vshrl.u32 %v269, 7
    %v271 = vsub.s32 0, %v270
    %v272 = vrot.slane %v72, %v271
    %v273 = vlaneseq
    %v274 = vshrl.u32 %v273, 7
    %v275 = vsub.s32 0, %v274
    %v276 = vrot.slane %v73, %v275
    %v277 = vlaneseq
    %v278 = vshrl.u32 %v277, 7
    %v279 = vsub.s32 0, %v278
    %v280 = vrot.slane %v74, %v279
    %v285 = vmul.f32 %v239, %v268
    %v286 = vmul.f32 %v240, %v268
    %v287 = vmul.f32 %v239, %v272
    %v288 = vmul.f32 %v240, %v272
    %v289 = vmul.f32 %v239, %v276
    %v290 = vmul.f32 %v240, %v276
    %v291 = vmul.f32 %v239, %v280
    %v292 = vmul.f32 %v240, %v280
    %v293 = vpack.c.bf16 %v285, %v285
    %v294 = vpack.c.bf16 %v286, %v286
    %v295 = vpack.c.bf16 %v287, %v287
    %v296 = vpack.c.bf16 %v288, %v288
    %v297 = vpack.c.bf16 %v289, %v289
    %v298 = vpack.c.bf16 %v290, %v290
    %v299 = vpack.c.bf16 %v291, %v291
    %v300 = vpack.c.bf16 %v292, %v292
    %v301 = vpack.c.bf16 %v251, %v251
    %v302 = vpack.c.bf16 %v252, %v252
    %v303 = vmul.f32 %v263, %v268
    %v304 = vmul.f32 %v264, %v268
    %v305 = vmul.f32 %v263, %v272
    %v306 = vmul.f32 %v264, %v272
    %v307 = vmul.f32 %v263, %v276
    %v308 = vmul.f32 %v264, %v276
    %v309 = vmul.f32 %v263, %v280
    %v310 = vmul.f32 %v264, %v280
    %v311 = vpack.c.bf16 %v303, %v303
    %v312 = vpack.c.bf16 %v304, %v304
    %v313 = vpack.c.bf16 %v305, %v305
    %v314 = vpack.c.bf16 %v306, %v306
    %v315 = vpack.c.bf16 %v307, %v307
    %v316 = vpack.c.bf16 %v308, %v308
    %v317 = vpack.c.bf16 %v309, %v309
    %v318 = vpack.c.bf16 %v310, %v310
    %319 = vmatprep.subr.bf16.mxu0 0
    %320 = vmatpush1.bf16.xpose.msra.mxu0 %v301
    %321 = vmatprep.subr.bf16.mxu0 0
    %322 = vmatpush1.bf16.xpose.msra.mxu0 0
    %323 = vmatprep.subr.bf16.mxu0 0
    %324 = vmatpush1.bf16.xpose.msra.mxu0 0
    %325 = vmatprep.subr.bf16.mxu0 0
    %326 = vmatpush1.bf16.xpose.msra.mxu0 0
    %327 = vmatprep.subr.bf16.mxu0 0
    %328 = vmatpush1.bf16.xpose.msra.mxu0 0
    %329 = vmatprep.subr.bf16.mxu0 0
    %330 = vmatpush1.bf16.xpose.msra.mxu0 0
    %331 = vmatprep.subr.bf16.mxu0 0
    %332 = vmatpush1.bf16.xpose.msra.mxu0 0
    %333 = vmatprep.subr.bf16.mxu0 0
    %334 = vmatpush1.bf16.xpose.msra.mxu0 0
    %335 = vmatprep.subr.bf16.mxu0 0
    %336 = vmatpush1.bf16.xpose.msra.mxu0 0
    %337 = vmatprep.subr.bf16.mxu0 0
    %338 = vmatpush1.bf16.xpose.msra.mxu0 0
    %339 = vmatprep.subr.bf16.mxu0 0
    %340 = vmatpush1.bf16.xpose.msra.mxu0 0
    %341 = vmatprep.subr.bf16.mxu0 0
    %342 = vmatpush1.bf16.xpose.msra.mxu0 0
    %343 = vmatprep.subr.bf16.mxu0 0
    %344 = vmatpush1.bf16.xpose.msra.mxu0 0
    %345 = vmatprep.subr.bf16.mxu0 0
    %346 = vmatpush1.bf16.xpose.msra.mxu0 0
    %347 = vmatprep.subr.bf16.mxu0 0
    %348 = vmatpush1.bf16.xpose.msra.mxu0 0
    %349 = vmatprep.subr.bf16.mxu0 0
    %350 = vmatpush1.bf16.xpose.msra.mxu0 0
    %351 = vmatprep.mubr.bf16.mxu0 0
    %352 = vmatmul.mubr.bf16.gmra.mrb[0].mxu0 %v293
    %v353 = vpop.f32.mrb[0].mxu0
    %v354 = vadd.f32 0.0, %v353
    %v355 = vpop.f32.mrb[0].mxu0
    %v356 = vpop.f32.mrb[0].mxu0
    %v357 = vpop.f32.mrb[0].mxu0
    %358 = vdwg.mxu0
    %359 = vmatprep.subr.bf16.mxu0 0
    %360 = vmatpush1.bf16.xpose.msra.mxu0 %v302
    %361 = vmatprep.subr.bf16.mxu0 0
    %362 = vmatpush1.bf16.xpose.msra.mxu0 0
    %363 = vmatprep.subr.bf16.mxu0 0
    %364 = vmatpush1.bf16.xpose.msra.mxu0 0
    %365 = vmatprep.subr.bf16.mxu0 0
    %366 = vmatpush1.bf16.xpose.msra.mxu0 0
    %367 = vmatprep.subr.bf16.mxu0 0
    %368 = vmatpush1.bf16.xpose.msra.mxu0 0
    %369 = vmatprep.subr.bf16.mxu0 0
    %370 = vmatpush1.bf16.xpose.msra.mxu0 0
    %371 = vmatprep.subr.bf16.mxu0 0
    %372 = vmatpush1.bf16.xpose.msra.mxu0 0
    %373 = vmatprep.subr.bf16.mxu0 0
    %374 = vmatpush1.bf16.xpose.msra.mxu0 0
    %375 = vmatprep.subr.bf16.mxu0 0
    %376 = vmatpush1.bf16.xpose.msra.mxu0 0
    %377 = vmatprep.subr.bf16.mxu0 0
    %378 = vmatpush1.bf16.xpose.msra.mxu0 0
    %379 = vmatprep.subr.bf16.mxu0 0
    %380 = vmatpush1.bf16.xpose.msra.mxu0 0
    %381 = vmatprep.subr.bf16.mxu0 0
    %382 = vmatpush1.bf16.xpose.msra.mxu0 0
    %383 = vmatprep.subr.bf16.mxu0 0
    %384 = vmatpush1.bf16.xpose.msra.mxu0 0
    %385 = vmatprep.subr.bf16.mxu0 0
    %386 = vmatpush1.bf16.xpose.msra.mxu0 0
    %387 = vmatprep.subr.bf16.mxu0 0
    %388 = vmatpush1.bf16.xpose.msra.mxu0 0
    %389 = vmatprep.subr.bf16.mxu0 0
    %390 = vmatpush1.bf16.xpose.msra.mxu0 0
    %391 = vmatprep.mubr.bf16.mxu0 0
    %392 = vmatmul.mubr.bf16.gmra.mrb[0].mxu0 %v294
    %v393 = vpop.f32.mrb[0].mxu0
    %v394 = vadd.f32 0.0, %v393
    %v395 = vpop.f32.mrb[0].mxu0
    %v396 = vpop.f32.mrb[0].mxu0
    %v397 = vpop.f32.mrb[0].mxu0
    %398 = vdwg.mxu0
    %399 = vmatprep.subr.bf16.mxu0 0
    %400 = vmatpush1.bf16.xpose.msra.mxu0 %v301
    %401 = vmatprep.subr.bf16.mxu0 0
    %402 = vmatpush1.bf16.xpose.msra.mxu0 0
    %403 = vmatprep.subr.bf16.mxu0 0
    %404 = vmatpush1.bf16.xpose.msra.mxu0 0
    %405 = vmatprep.subr.bf16.mxu0 0
    %406 = vmatpush1.bf16.xpose.msra.mxu0 0
    %407 = vmatprep.subr.bf16.mxu0 0
    %408 = vmatpush1.bf16.xpose.msra.mxu0 0
    %409 = vmatprep.subr.bf16.mxu0 0
    %410 = vmatpush1.bf16.xpose.msra.mxu0 0
    %411 = vmatprep.subr.bf16.mxu0 0
    %412 = vmatpush1.bf16.xpose.msra.mxu0 0
    %413 = vmatprep.subr.bf16.mxu0 0
    %414 = vmatpush1.bf16.xpose.msra.mxu0 0
    %415 = vmatprep.subr.bf16.mxu0 0
    %416 = vmatpush1.bf16.xpose.msra.mxu0 0
    %417 = vmatprep.subr.bf16.mxu0 0
    %418 = vmatpush1.bf16.xpose.msra.mxu0 0
    %419 = vmatprep.subr.bf16.mxu0 0
    %420 = vmatpush1.bf16.xpose.msra.mxu0 0
    %421 = vmatprep.subr.bf16.mxu0 0
    %422 = vmatpush1.bf16.xpose.msra.mxu0 0
    %423 = vmatprep.subr.bf16.mxu0 0
    %424 = vmatpush1.bf16.xpose.msra.mxu0 0
    %425 = vmatprep.subr.bf16.mxu0 0
    %426 = vmatpush1.bf16.xpose.msra.mxu0 0
    %427 = vmatprep.subr.bf16.mxu0 0
    %428 = vmatpush1.bf16.xpose.msra.mxu0 0
    %429 = vmatprep.subr.bf16.mxu0 0
    %430 = vmatpush1.bf16.xpose.msra.mxu0 0
    %431 = vmatprep.mubr.bf16.mxu0 0
    %432 = vmatmul.mubr.bf16.gmra.mrb[0].mxu0 %v295
    %v433 = vpop.f32.mrb[0].mxu0
    %v434 = vadd.f32 0.0, %v433
    %v435 = vpop.f32.mrb[0].mxu0
    %v436 = vpop.f32.mrb[0].mxu0
    %v437 = vpop.f32.mrb[0].mxu0
    %438 = vdwg.mxu0
    %439 = vmatprep.subr.bf16.mxu0 0
    %440 = vmatpush1.bf16.xpose.msra.mxu0 %v302
    %441 = vmatprep.subr.bf16.mxu0 0
    %442 = vmatpush1.bf16.xpose.msra.mxu0 0
    %443 = vmatprep.subr.bf16.mxu0 0
    %444 = vmatpush1.bf16.xpose.msra.mxu0 0
    %445 = vmatprep.subr.bf16.mxu0 0
    %446 = vmatpush1.bf16.xpose.msra.mxu0 0
    %447 = vmatprep.subr.bf16.mxu0 0
    %448 = vmatpush1.bf16.xpose.msra.mxu0 0
    %449 = vmatprep.subr.bf16.mxu0 0
    %450 = vmatpush1.bf16.xpose.msra.mxu0 0
    %451 = vmatprep.subr.bf16.mxu0 0
    %452 = vmatpush1.bf16.xpose.msra.mxu0 0
    %453 = vmatprep.subr.bf16.mxu0 0
    %454 = vmatpush1.bf16.xpose.msra.mxu0 0
    %455 = vmatprep.subr.bf16.mxu0 0
    %456 = vmatpush1.bf16.xpose.msra.mxu0 0
    %457 = vmatprep.subr.bf16.mxu0 0
    %458 = vmatpush1.bf16.xpose.msra.mxu0 0
    %459 = vmatprep.subr.bf16.mxu0 0
    %460 = vmatpush1.bf16.xpose.msra.mxu0 0
    %461 = vmatprep.subr.bf16.mxu0 0
    %462 = vmatpush1.bf16.xpose.msra.mxu0 0
    %463 = vmatprep.subr.bf16.mxu0 0
    %464 = vmatpush1.bf16.xpose.msra.mxu0 0
    %465 = vmatprep.subr.bf16.mxu0 0
    %466 = vmatpush1.bf16.xpose.msra.mxu0 0
    %467 = vmatprep.subr.bf16.mxu0 0
    %468 = vmatpush1.bf16.xpose.msra.mxu0 0
    %469 = vmatprep.subr.bf16.mxu0 0
    %470 = vmatpush1.bf16.xpose.msra.mxu0 0
    %471 = vmatprep.mubr.bf16.mxu0 0
    %472 = vmatmul.mubr.bf16.gmra.mrb[0].mxu0 %v296
    %v473 = vpop.f32.mrb[0].mxu0
    %v474 = vadd.f32 0.0, %v473
    %v475 = vpop.f32.mrb[0].mxu0
    %v476 = vpop.f32.mrb[0].mxu0
    %v477 = vpop.f32.mrb[0].mxu0
    %478 = vdwg.mxu0
    %479 = vmatprep.subr.bf16.mxu0 0
    %480 = vmatpush1.bf16.xpose.msra.mxu0 %v301
    %481 = vmatprep.subr.bf16.mxu0 0
    %482 = vmatpush1.bf16.xpose.msra.mxu0 0
    %483 = vmatprep.subr.bf16.mxu0 0
    %484 = vmatpush1.bf16.xpose.msra.mxu0 0
    %485 = vmatprep.subr.bf16.mxu0 0
    %486 = vmatpush1.bf16.xpose.msra.mxu0 0
    %487 = vmatprep.subr.bf16.mxu0 0
    %488 = vmatpush1.bf16.xpose.msra.mxu0 0
    %489 = vmatprep.subr.bf16.mxu0 0
    %490 = vmatpush1.bf16.xpose.msra.mxu0 0
    %491 = vmatprep.subr.bf16.mxu0 0
    %492 = vmatpush1.bf16.xpose.msra.mxu0 0
    %493 = vmatprep.subr.bf16.mxu0 0
    %494 = vmatpush1.bf16.xpose.msra.mxu0 0
    %495 = vmatprep.subr.bf16.mxu0 0
    %496 = vmatpush1.bf16.xpose.msra.mxu0 0
    %497 = vmatprep.subr.bf16.mxu0 0
    %498 = vmatpush1.bf16.xpose.msra.mxu0 0
    %499 = vmatprep.subr.bf16.mxu0 0
    %500 = vmatpush1.bf16.xpose.msra.mxu0 0
    %501 = vmatprep.subr.bf16.mxu0 0
    %502 = vmatpush1.bf16.xpose.msra.mxu0 0
    %503 = vmatprep.subr.bf16.mxu0 0
    %504 = vmatpush1.bf16.xpose.msra.mxu0 0
    %505 = vmatprep.subr.bf16.mxu0 0
    %506 = vmatpush1.bf16.xpose.msra.mxu0 0
    %507 = vmatprep.subr.bf16.mxu0 0
    %508 = vmatpush1.bf16.xpose.msra.mxu0 0
    %509 = vmatprep.subr.bf16.mxu0 0
    %510 = vmatpush1.bf16.xpose.msra.mxu0 0
    %511 = vmatprep.mubr.bf16.mxu0 0
    %512 = vmatmul.mubr.bf16.gmra.mrb[0].mxu0 %v297
    %v513 = vpop.f32.mrb[0].mxu0
    %v514 = vadd.f32 0.0, %v513
    %v515 = vpop.f32.mrb[0].mxu0
    %v516 = vpop.f32.mrb[0].mxu0
    %v517 = vpop.f32.mrb[0].mxu0
    %518 = vdwg.mxu0
    %519 = vmatprep.subr.bf16.mxu0 0
    %520 = vmatpush1.bf16.xpose.msra.mxu0 %v302
    %521 = vmatprep.subr.bf16.mxu0 0
    %522 = vmatpush1.bf16.xpose.msra.mxu0 0
    %523 = vmatprep.subr.bf16.mxu0 0
    %524 = vmatpush1.bf16.xpose.msra.mxu0 0
    %525 = vmatprep.subr.bf16.mxu0 0
    %526 = vmatpush1.bf16.xpose.msra.mxu0 0
    %527 = vmatprep.subr.bf16.mxu0 0
    %528 = vmatpush1.bf16.xpose.msra.mxu0 0
    %529 = vmatprep.subr.bf16.mxu0 0
    %530 = vmatpush1.bf16.xpose.msra.mxu0 0
    %531 = vmatprep.subr.bf16.mxu0 0
    %532 = vmatpush1.bf16.xpose.msra.mxu0 0
    %533 = vmatprep.subr.bf16.mxu0 0
    %534 = vmatpush1.bf16.xpose.msra.mxu0 0
    %535 = vmatprep.subr.bf16.mxu0 0
    %536 = vmatpush1.bf16.xpose.msra.mxu0 0
    %537 = vmatprep.subr.bf16.mxu0 0
    %538 = vmatpush1.bf16.xpose.msra.mxu0 0
    %539 = vmatprep.subr.bf16.mxu0 0
    %540 = vmatpush1.bf16.xpose.msra.mxu0 0
    %541 = vmatprep.subr.bf16.mxu0 0
    %542 = vmatpush1.bf16.xpose.msra.mxu0 0
    %543 = vmatprep.subr.bf16.mxu0 0
    %544 = vmatpush1.bf16.xpose.msra.mxu0 0
    %545 = vmatprep.subr.bf16.mxu0 0
    %546 = vmatpush1.bf16.xpose.msra.mxu0 0
    %547 = vmatprep.subr.bf16.mxu0 0
    %548 = vmatpush1.bf16.xpose.msra.mxu0 0
    %549 = vmatprep.subr.bf16.mxu0 0
    %550 = vmatpush1.bf16.xpose.msra.mxu0 0
    %551 = vmatprep.mubr.bf16.mxu0 0
    %552 = vmatmul.mubr.bf16.gmra.mrb[0].mxu0 %v298
    %v553 = vpop.f32.mrb[0].mxu0
    %v554 = vadd.f32 0.0, %v553
    %v555 = vpop.f32.mrb[0].mxu0
    %v556 = vpop.f32.mrb[0].mxu0
    %v557 = vpop.f32.mrb[0].mxu0
    %558 = vdwg.mxu0
    %559 = vmatprep.subr.bf16.mxu0 0
    %560 = vmatpush1.bf16.xpose.msra.mxu0 %v301
    %561 = vmatprep.subr.bf16.mxu0 0
    %562 = vmatpush1.bf16.xpose.msra.mxu0 0
    %563 = vmatprep.subr.bf16.mxu0 0
    %564 = vmatpush1.bf16.xpose.msra.mxu0 0
    %565 = vmatprep.subr.bf16.mxu0 0
    %566 = vmatpush1.bf16.xpose.msra.mxu0 0
    %567 = vmatprep.subr.bf16.mxu0 0
    %568 = vmatpush1.bf16.xpose.msra.mxu0 0
    %569 = vmatprep.subr.bf16.mxu0 0
    %570 = vmatpush1.bf16.xpose.msra.mxu0 0
    %571 = vmatprep.subr.bf16.mxu0 0
    %572 = vmatpush1.bf16.xpose.msra.mxu0 0
    %573 = vmatprep.subr.bf16.mxu0 0
    %574 = vmatpush1.bf16.xpose.msra.mxu0 0
    %575 = vmatprep.subr.bf16.mxu0 0
    %576 = vmatpush1.bf16.xpose.msra.mxu0 0
    %577 = vmatprep.subr.bf16.mxu0 0
    %578 = vmatpush1.bf16.xpose.msra.mxu0 0
    %579 = vmatprep.subr.bf16.mxu0 0
    %580 = vmatpush1.bf16.xpose.msra.mxu0 0
    %581 = vmatprep.subr.bf16.mxu0 0
    %582 = vmatpush1.bf16.xpose.msra.mxu0 0
    %583 = vmatprep.subr.bf16.mxu0 0
    %584 = vmatpush1.bf16.xpose.msra.mxu0 0
    %585 = vmatprep.subr.bf16.mxu0 0
    %586 = vmatpush1.bf16.xpose.msra.mxu0 0
    %587 = vmatprep.subr.bf16.mxu0 0
    %588 = vmatpush1.bf16.xpose.msra.mxu0 0
    %589 = vmatprep.subr.bf16.mxu0 0
    %590 = vmatpush1.bf16.xpose.msra.mxu0 0
    %591 = vmatprep.mubr.bf16.mxu0 0
    %592 = vmatmul.mubr.bf16.gmra.mrb[0].mxu0 %v299
    %v593 = vpop.f32.mrb[0].mxu0
    %v594 = vadd.f32 0.0, %v593
    %v595 = vpop.f32.mrb[0].mxu0
    %v596 = vpop.f32.mrb[0].mxu0
    %v597 = vpop.f32.mrb[0].mxu0
    %598 = vdwg.mxu0
    %599 = vmatprep.subr.bf16.mxu0 0
    %600 = vmatpush1.bf16.xpose.msra.mxu0 %v302
    %601 = vmatprep.subr.bf16.mxu0 0
    %602 = vmatpush1.bf16.xpose.msra.mxu0 0
    %603 = vmatprep.subr.bf16.mxu0 0
    %604 = vmatpush1.bf16.xpose.msra.mxu0 0
    %605 = vmatprep.subr.bf16.mxu0 0
    %606 = vmatpush1.bf16.xpose.msra.mxu0 0
    %607 = vmatprep.subr.bf16.mxu0 0
    %608 = vmatpush1.bf16.xpose.msra.mxu0 0
    %609 = vmatprep.subr.bf16.mxu0 0
    %610 = vmatpush1.bf16.xpose.msra.mxu0 0
    %611 = vmatprep.subr.bf16.mxu0 0
    %612 = vmatpush1.bf16.xpose.msra.mxu0 0
    %613 = vmatprep.subr.bf16.mxu0 0
    %614 = vmatpush1.bf16.xpose.msra.mxu0 0
    %615 = vmatprep.subr.bf16.mxu0 0
    %616 = vmatpush1.bf16.xpose.msra.mxu0 0
    %617 = vmatprep.subr.bf16.mxu0 0
    %618 = vmatpush1.bf16.xpose.msra.mxu0 0
    %619 = vmatprep.subr.bf16.mxu0 0
    %620 = vmatpush1.bf16.xpose.msra.mxu0 0
    %621 = vmatprep.subr.bf16.mxu0 0
    %622 = vmatpush1.bf16.xpose.msra.mxu0 0
    %623 = vmatprep.subr.bf16.mxu0 0
    %624 = vmatpush1.bf16.xpose.msra.mxu0 0
    %625 = vmatprep.subr.bf16.mxu0 0
    %626 = vmatpush1.bf16.xpose.msra.mxu0 0
    %627 = vmatprep.subr.bf16.mxu0 0
    %628 = vmatpush1.bf16.xpose.msra.mxu0 0
    %629 = vmatprep.subr.bf16.mxu0 0
    %630 = vmatpush1.bf16.xpose.msra.mxu0 0
    %631 = vmatprep.mubr.bf16.mxu0 0
    %632 = vmatmul.mubr.bf16.gmra.mrb[0].mxu0 %v300
    %v633 = vpop.f32.mrb[0].mxu0
    %v634 = vadd.f32 0.0, %v633
    %v635 = vpop.f32.mrb[0].mxu0
    %v636 = vpop.f32.mrb[0].mxu0
    %v637 = vpop.f32.mrb[0].mxu0
    %638 = vdwg.mxu0
    %v639 = vmul.f32 %v354, 0.35355338
    %v640 = vmul.f32 %v394, 0.35355338
    %v641 = vmul.f32 %v434, 0.35355338
    %v642 = vmul.f32 %v474, 0.35355338
    %v643 = vmul.f32 %v514, 0.35355338
    %v644 = vmul.f32 %v554, 0.35355338
    %v645 = vmul.f32 %v594, 0.35355338
    %v646 = vmul.f32 %v634, 0.35355338
    %v647 = vadd.f32 %v639, %v117
    %v648 = vadd.f32 %v640, %v118
    %v649 = vadd.f32 %v641, %v119
    %v650 = vadd.f32 %v642, %v120
    %v651 = vadd.f32 %v643, %v121
    %v652 = vadd.f32 %v644, %v122
    %v653 = vadd.f32 %v645, %v123
    %v654 = vadd.f32 %v646, %v124
    %vm655 = vcmask 64512
    %v656 = vsel %vm655, %v647, -inf
    %657 = vmax.xlane.f32.xlu0 %v656
    %v658 = vpop.xlane.xlu0 %657
    %v659 = vsel %vm655, %v648, -inf
    %660 = vmax.xlane.f32.xlu0 %v659
    %v661 = vpop.xlane.xlu0 %660
    %v662 = vsel %vm655, %v649, -inf
    %663 = vmax.xlane.f32.xlu0 %v662
    %v664 = vpop.xlane.xlu0 %663
    %v665 = vsel %vm655, %v650, -inf
    %666 = vmax.xlane.f32.xlu0 %v665
    %v667 = vpop.xlane.xlu0 %666
    %v668 = vsel %vm655, %v651, -inf
    %669 = vmax.xlane.f32.xlu0 %v668
    %v670 = vpop.xlane.xlu0 %669
    %v671 = vsel %vm655, %v652, -inf
    %672 = vmax.xlane.f32.xlu0 %v671
    %v673 = vpop.xlane.xlu0 %672
    %v674 = vsel %vm655, %v653, -inf
    %675 = vmax.xlane.f32.xlu0 %v674
    %v676 = vpop.xlane.xlu0 %675
    %v677 = vsel %vm655, %v654, -inf
    %678 = vmax.xlane.f32.xlu0 %v677
    %v679 = vpop.xlane.xlu0 %678
    %v680 = vsub.f32 %v647, %v658
    %v681 = vsub.f32 %v648, %v661
    %v682 = vsub.f32 %v649, %v664
    %v683 = vsub.f32 %v650, %v667
    %v684 = vsub.f32 %v651, %v670
    %v685 = vsub.f32 %v652, %v673
    %v686 = vsub.f32 %v653, %v676
    %v687 = vsub.f32 %v654, %v679
    %v688 = vmul.f32 %v680, 1.442695
    %v689 = vpow.pop %v688
    %v690 = vmul.f32 %v681, 1.442695
    %v691 = vpow.pop %v690
    %v692 = vmul.f32 %v682, 1.442695
    %v693 = vpow.pop %v692
    %v694 = vmul.f32 %v683, 1.442695
    %v695 = vpow.pop %v694
    %v696 = vmul.f32 %v684, 1.442695
    %v697 = vpow.pop %v696
    %v698 = vmul.f32 %v685, 1.442695
    %v699 = vpow.pop %v698
    %v700 = vmul.f32 %v686, 1.442695
    %v701 = vpow.pop %v700
    %v702 = vmul.f32 %v687, 1.442695
    %v703 = vpow.pop %v702
    %v704 = vsel %vm655, %v689, 0.0
    %705 = vadd.xlane.f32.xlu0 %v704
    %v706 = vpop.xlane.xlu0 %705
    %v707 = vsel %vm655, %v691, 0.0
    %708 = vadd.xlane.f32.xlu0 %v707
    %v709 = vpop.xlane.xlu0 %708
    %v710 = vsel %vm655, %v693, 0.0
    %711 = vadd.xlane.f32.xlu0 %v710
    %v712 = vpop.xlane.xlu0 %711
    %v713 = vsel %vm655, %v695, 0.0
    %714 = vadd.xlane.f32.xlu0 %v713
    %v715 = vpop.xlane.xlu0 %714
    %v716 = vsel %vm655, %v697, 0.0
    %717 = vadd.xlane.f32.xlu0 %v716
    %v718 = vpop.xlane.xlu0 %717
    %v719 = vsel %vm655, %v699, 0.0
    %720 = vadd.xlane.f32.xlu0 %v719
    %v721 = vpop.xlane.xlu0 %720
    %v722 = vsel %vm655, %v701, 0.0
    %723 = vadd.xlane.f32.xlu0 %v722
    %v724 = vpop.xlane.xlu0 %723
    %v725 = vsel %vm655, %v703, 0.0
    %726 = vadd.xlane.f32.xlu0 %v725
    %v727 = vpop.xlane.xlu0 %726
    %v728 = vrcp.pop %v706
    %v729 = vrcp.pop %v709
    %v730 = vrcp.pop %v712
    %v731 = vrcp.pop %v715
    %v732 = vrcp.pop %v718
    %v733 = vrcp.pop %v721
    %v734 = vrcp.pop %v724
    %v735 = vrcp.pop %v727
    %v736 = vmul.f32 %v689, %v728
    %v737 = vmul.f32 %v691, %v729
    %v738 = vmul.f32 %v693, %v730
    %v739 = vmul.f32 %v695, %v731
    %v740 = vmul.f32 %v697, %v732
    %v741 = vmul.f32 %v699, %v733
    %v742 = vmul.f32 %v701, %v734
    %v743 = vmul.f32 %v703, %v735
    %v744 = vpack.c.bf16 %v736, %v736
    %v745 = vpack.c.bf16 %v737, %v737
    %v746 = vpack.c.bf16 %v738, %v738
    %v747 = vpack.c.bf16 %v739, %v739
    %v748 = vpack.c.bf16 %v740, %v740
    %v749 = vpack.c.bf16 %v741, %v741
    %v750 = vpack.c.bf16 %v742, %v742
    %v751 = vpack.c.bf16 %v743, %v743
    %v753 = vsel %vm655, %v744, 0
    %vm755 = vcmask 1043456
    %v757 = vsel %vm755, %v311, 0
    %759 = vmatprep.subr.bf16.mxu0 0
    %760 = vmatpush1.bf16.msra.mxu0 %v757
    %761 = vmatprep.subr.bf16.mxu0 0
    %762 = vmatpush1.bf16.msra.mxu0 0
    %763 = vmatprep.subr.bf16.mxu0 0
    %764 = vmatpush1.bf16.msra.mxu0 0
    %765 = vmatprep.subr.bf16.mxu0 0
    %766 = vmatpush1.bf16.msra.mxu0 0
    %767 = vmatprep.subr.bf16.mxu0 0
    %768 = vmatpush1.bf16.msra.mxu0 0
    %769 = vmatprep.subr.bf16.mxu0 0
    %770 = vmatpush1.bf16.msra.mxu0 0
    %771 = vmatprep.subr.bf16.mxu0 0
    %772 = vmatpush1.bf16.msra.mxu0 0
    %773 = vmatprep.subr.bf16.mxu0 0
    %774 = vmatpush1.bf16.msra.mxu0 0
    %775 = vmatprep.subr.bf16.mxu0 0
    %776 = vmatpush1.bf16.msra.mxu0 0
    %777 = vmatprep.subr.bf16.mxu0 0
    %778 = vmatpush1.bf16.msra.mxu0 0
    %779 = vmatprep.subr.bf16.mxu0 0
    %780 = vmatpush1.bf16.msra.mxu0 0
    %781 = vmatprep.subr.bf16.mxu0 0
    %782 = vmatpush1.bf16.msra.mxu0 0
    %783 = vmatprep.subr.bf16.mxu0 0
    %784 = vmatpush1.bf16.msra.mxu0 0
    %785 = vmatprep.subr.bf16.mxu0 0
    %786 = vmatpush1.bf16.msra.mxu0 0
    %787 = vmatprep.subr.bf16.mxu0 0
    %788 = vmatpush1.bf16.msra.mxu0 0
    %789 = vmatprep.subr.bf16.mxu0 0
    %790 = vmatpush1.bf16.msra.mxu0 0
    %791 = vmatprep.mubr.bf16.mxu0 0
    %792 = vmatmul.mubr.bf16.gmra.mrb[0].mxu0 %v753
    %v793 = vpop.f32.mrb[0].mxu0
    %v794 = vadd.f32 0.0, %v793
    %v795 = vpop.f32.mrb[0].mxu0
    %v796 = vpop.f32.mrb[0].mxu0
    %v797 = vpop.f32.mrb[0].mxu0
    %798 = vdwg.mxu0
    %v800 = vsel %vm655, %v745, 0
    %v803 = vsel %vm755, %v312, 0
    %805 = vmatprep.subr.bf16.mxu0 0
    %806 = vmatpush1.bf16.msra.mxu0 %v803
    %807 = vmatprep.subr.bf16.mxu0 0
    %808 = vmatpush1.bf16.msra.mxu0 0
    %809 = vmatprep.subr.bf16.mxu0 0
    %810 = vmatpush1.bf16.msra.mxu0 0
    %811 = vmatprep.subr.bf16.mxu0 0
    %812 = vmatpush1.bf16.msra.mxu0 0
    %813 = vmatprep.subr.bf16.mxu0 0
    %814 = vmatpush1.bf16.msra.mxu0 0
    %815 = vmatprep.subr.bf16.mxu0 0
    %816 = vmatpush1.bf16.msra.mxu0 0
    %817 = vmatprep.subr.bf16.mxu0 0
    %818 = vmatpush1.bf16.msra.mxu0 0
    %819 = vmatprep.subr.bf16.mxu0 0
    %820 = vmatpush1.bf16.msra.mxu0 0
    %821 = vmatprep.subr.bf16.mxu0 0
    %822 = vmatpush1.bf16.msra.mxu0 0
    %823 = vmatprep.subr.bf16.mxu0 0
    %824 = vmatpush1.bf16.msra.mxu0 0
    %825 = vmatprep.subr.bf16.mxu0 0
    %826 = vmatpush1.bf16.msra.mxu0 0
    %827 = vmatprep.subr.bf16.mxu0 0
    %828 = vmatpush1.bf16.msra.mxu0 0
    %829 = vmatprep.subr.bf16.mxu0 0
    %830 = vmatpush1.bf16.msra.mxu0 0
    %831 = vmatprep.subr.bf16.mxu0 0
    %832 = vmatpush1.bf16.msra.mxu0 0
    %833 = vmatprep.subr.bf16.mxu0 0
    %834 = vmatpush1.bf16.msra.mxu0 0
    %835 = vmatprep.subr.bf16.mxu0 0
    %836 = vmatpush1.bf16.msra.mxu0 0
    %837 = vmatprep.mubr.bf16.mxu0 0
    %838 = vmatmul.mubr.bf16.gmra.mrb[0].mxu0 %v800
    %v839 = vpop.f32.mrb[0].mxu0
    %v840 = vadd.f32 0.0, %v839
    %v841 = vpop.f32.mrb[0].mxu0
    %v842 = vpop.f32.mrb[0].mxu0
    %v843 = vpop.f32.mrb[0].mxu0
    %844 = vdwg.mxu0
    %v846 = vsel %vm655, %v746, 0
    %v849 = vsel %vm755, %v313, 0
    %851 = vmatprep.subr.bf16.mxu0 0
    %852 = vmatpush1.bf16.msra.mxu0 %v849
    %853 = vmatprep.subr.bf16.mxu0 0
    %854 = vmatpush1.bf16.msra.mxu0 0
    %855 = vmatprep.subr.bf16.mxu0 0
    %856 = vmatpush1.bf16.msra.mxu0 0
    %857 = vmatprep.subr.bf16.mxu0 0
    %858 = vmatpush1.bf16.msra.mxu0 0
    %859 = vmatprep.subr.bf16.mxu0 0
    %860 = vmatpush1.bf16.msra.mxu0 0
    %861 = vmatprep.subr.bf16.mxu0 0
    %862 = vmatpush1.bf16.msra.mxu0 0
    %863 = vmatprep.subr.bf16.mxu0 0
    %864 = vmatpush1.bf16.msra.mxu0 0
    %865 = vmatprep.subr.bf16.mxu0 0
    %866 = vmatpush1.bf16.msra.mxu0 0
    %867 = vmatprep.subr.bf16.mxu0 0
    %868 = vmatpush1.bf16.msra.mxu0 0
    %869 = vmatprep.subr.bf16.mxu0 0
    %870 = vmatpush1.bf16.msra.mxu0 0
    %871 = vmatprep.subr.bf16.mxu0 0
    %872 = vmatpush1.bf16.msra.mxu0 0
    %873 = vmatprep.subr.bf16.mxu0 0
    %874 = vmatpush1.bf16.msra.mxu0 0
    %875 = vmatprep.subr.bf16.mxu0 0
    %876 = vmatpush1.bf16.msra.mxu0 0
    %877 = vmatprep.subr.bf16.mxu0 0
    %878 = vmatpush1.bf16.msra.mxu0 0
    %879 = vmatprep.subr.bf16.mxu0 0
    %880 = vmatpush1.bf16.msra.mxu0 0
    %881 = vmatprep.subr.bf16.mxu0 0
    %882 = vmatpush1.bf16.msra.mxu0 0
    %883 = vmatprep.mubr.bf16.mxu0 0
    %884 = vmatmul.mubr.bf16.gmra.mrb[0].mxu0 %v846
    %v885 = vpop.f32.mrb[0].mxu0
    %v886 = vadd.f32 0.0, %v885
    %v887 = vpop.f32.mrb[0].mxu0
    %v888 = vpop.f32.mrb[0].mxu0
    %v889 = vpop.f32.mrb[0].mxu0
    %890 = vdwg.mxu0
    %v892 = vsel %vm655, %v747, 0
    %v895 = vsel %vm755, %v314, 0
    %897 = vmatprep.subr.bf16.mxu0 0
    %898 = vmatpush1.bf16.msra.mxu0 %v895
    %899 = vmatprep.subr.bf16.mxu0 0
    %900 = vmatpush1.bf16.msra.mxu0 0
    %901 = vmatprep.subr.bf16.mxu0 0
    %902 = vmatpush1.bf16.msra.mxu0 0
    %903 = vmatprep.subr.bf16.mxu0 0
    %904 = vmatpush1.bf16.msra.mxu0 0
    %905 = vmatprep.subr.bf16.mxu0 0
    %906 = vmatpush1.bf16.msra.mxu0 0
    %907 = vmatprep.subr.bf16.mxu0 0
    %908 = vmatpush1.bf16.msra.mxu0 0
    %909 = vmatprep.subr.bf16.mxu0 0
    %910 = vmatpush1.bf16.msra.mxu0 0
    %911 = vmatprep.subr.bf16.mxu0 0
    %912 = vmatpush1.bf16.msra.mxu0 0
    %913 = vmatprep.subr.bf16.mxu0 0
    %914 = vmatpush1.bf16.msra.mxu0 0
    %915 = vmatprep.subr.bf16.mxu0 0
    %916 = vmatpush1.bf16.msra.mxu0 0
    %917 = vmatprep.subr.bf16.mxu0 0
    %918 = vmatpush1.bf16.msra.mxu0 0
    %919 = vmatprep.subr.bf16.mxu0 0
    %920 = vmatpush1.bf16.msra.mxu0 0
    %921 = vmatprep.subr.bf16.mxu0 0
    %922 = vmatpush1.bf16.msra.mxu0 0
    %923 = vmatprep.subr.bf16.mxu0 0
    %924 = vmatpush1.bf16.msra.mxu0 0
    %925 = vmatprep.subr.bf16.mxu0 0
    %926 = vmatpush1.bf16.msra.mxu0 0
    %927 = vmatprep.subr.bf16.mxu0 0
    %928 = vmatpush1.bf16.msra.mxu0 0
    %929 = vmatprep.mubr.bf16.mxu0 0
    %930 = vmatmul.mubr.bf16.gmra.mrb[0].mxu0 %v892
    %v931 = vpop.f32.mrb[0].mxu0
    %v932 = vadd.f32 0.0, %v931
    %v933 = vpop.f32.mrb[0].mxu0
    %v934 = vpop.f32.mrb[0].mxu0
    %v935 = vpop.f32.mrb[0].mxu0
    %936 = vdwg.mxu0
    %v938 = vsel %vm655, %v748, 0
    %v941 = vsel %vm755, %v315, 0
    %943 = vmatprep.subr.bf16.mxu0 0
    %944 = vmatpush1.bf16.msra.mxu0 %v941
    %945 = vmatprep.subr.bf16.mxu0 0
    %946 = vmatpush1.bf16.msra.mxu0 0
    %947 = vmatprep.subr.bf16.mxu0 0
    %948 = vmatpush1.bf16.msra.mxu0 0
    %949 = vmatprep.subr.bf16.mxu0 0
    %950 = vmatpush1.bf16.msra.mxu0 0
    %951 = vmatprep.subr.bf16.mxu0 0
    %952 = vmatpush1.bf16.msra.mxu0 0
    %953 = vmatprep.subr.bf16.mxu0 0
    %954 = vmatpush1.bf16.msra.mxu0 0
    %955 = vmatprep.subr.bf16.mxu0 0
    %956 = vmatpush1.bf16.msra.mxu0 0
    %957 = vmatprep.subr.bf16.mxu0 0
    %958 = vmatpush1.bf16.msra.mxu0 0
    %959 = vmatprep.subr.bf16.mxu0 0
    %960 = vmatpush1.bf16.msra.mxu0 0
    %961 = vmatprep.subr.bf16.mxu0 0
    %962 = vmatpush1.bf16.msra.mxu0 0
    %963 = vmatprep.subr.bf16.mxu0 0
    %964 = vmatpush1.bf16.msra.mxu0 0
    %965 = vmatprep.subr.bf16.mxu0 0
    %966 = vmatpush1.bf16.msra.mxu0 0
    %967 = vmatprep.subr.bf16.mxu0 0
    %968 = vmatpush1.bf16.msra.mxu0 0
    %969 = vmatprep.subr.bf16.mxu0 0
    %970 = vmatpush1.bf16.msra.mxu0 0
    %971 = vmatprep.subr.bf16.mxu0 0
    %972 = vmatpush1.bf16.msra.mxu0 0
    %973 = vmatprep.subr.bf16.mxu0 0
    %974 = vmatpush1.bf16.msra.mxu0 0
    %975 = vmatprep.mubr.bf16.mxu0 0
    %976 = vmatmul.mubr.bf16.gmra.mrb[0].mxu0 %v938
    %v977 = vpop.f32.mrb[0].mxu0
    %v978 = vadd.f32 0.0, %v977
    %v979 = vpop.f32.mrb[0].mxu0
    %v980 = vpop.f32.mrb[0].mxu0
    %v981 = vpop.f32.mrb[0].mxu0
    %982 = vdwg.mxu0
    %v984 = vsel %vm655, %v749, 0
    %v987 = vsel %vm755, %v316, 0
    %989 = vmatprep.subr.bf16.mxu0 0
    %990 = vmatpush1.bf16.msra.mxu0 %v987
    %991 = vmatprep.subr.bf16.mxu0 0
    %992 = vmatpush1.bf16.msra.mxu0 0
    %993 = vmatprep.subr.bf16.mxu0 0
    %994 = vmatpush1.bf16.msra.mxu0 0
    %995 = vmatprep.subr.bf16.mxu0 0
    %996 = vmatpush1.bf16.msra.mxu0 0
    %997 = vmatprep.subr.bf16.mxu0 0
    %998 = vmatpush1.bf16.msra.mxu0 0
    %999 = vmatprep.subr.bf16.mxu0 0
    %1000 = vmatpush1.bf16.msra.mxu0 0
    %1001 = vmatprep.subr.bf16.mxu0 0
    %1002 = vmatpush1.bf16.msra.mxu0 0
    %1003 = vmatprep.subr.bf16.mxu0 0
    %1004 = vmatpush1.bf16.msra.mxu0 0
    %1005 = vmatprep.subr.bf16.mxu0 0
    %1006 = vmatpush1.bf16.msra.mxu0 0
    %1007 = vmatprep.subr.bf16.mxu0 0
    %1008 = vmatpush1.bf16.msra.mxu0 0
    %1009 = vmatprep.subr.bf16.mxu0 0
    %1010 = vmatpush1.bf16.msra.mxu0 0
    %1011 = vmatprep.subr.bf16.mxu0 0
    %1012 = vmatpush1.bf16.msra.mxu0 0
    %1013 = vmatprep.subr.bf16.mxu0 0
    %1014 = vmatpush1.bf16.msra.mxu0 0
    %1015 = vmatprep.subr.bf16.mxu0 0
    %1016 = vmatpush1.bf16.msra.mxu0 0
    %1017 = vmatprep.subr.bf16.mxu0 0
    %1018 = vmatpush1.bf16.msra.mxu0 0
    %1019 = vmatprep.subr.bf16.mxu0 0
    %1020 = vmatpush1.bf16.msra.mxu0 0
    %1021 = vmatprep.mubr.bf16.mxu0 0
    %1022 = vmatmul.mubr.bf16.gmra.mrb[0].mxu0 %v984
    %v1023 = vpop.f32.mrb[0].mxu0
    %v1024 = vadd.f32 0.0, %v1023
    %v1025 = vpop.f32.mrb[0].mxu0
    %v1026 = vpop.f32.mrb[0].mxu0
    %v1027 = vpop.f32.mrb[0].mxu0
    %1028 = vdwg.mxu0
    %v1030 = vsel %vm655, %v750, 0
    %v1033 = vsel %vm755, %v317, 0
    %1035 = vmatprep.subr.bf16.mxu0 0
    %1036 = vmatpush1.bf16.msra.mxu0 %v1033
    %1037 = vmatprep.subr.bf16.mxu0 0
    %1038 = vmatpush1.bf16.msra.mxu0 0
    %1039 = vmatprep.subr.bf16.mxu0 0
    %1040 = vmatpush1.bf16.msra.mxu0 0
    %1041 = vmatprep.subr.bf16.mxu0 0
    %1042 = vmatpush1.bf16.msra.mxu0 0
    %1043 = vmatprep.subr.bf16.mxu0 0
    %1044 = vmatpush1.bf16.msra.mxu0 0
    %1045 = vmatprep.subr.bf16.mxu0 0
    %1046 = vmatpush1.bf16.msra.mxu0 0
    %1047 = vmatprep.subr.bf16.mxu0 0
    %1048 = vmatpush1.bf16.msra.mxu0 0
    %1049 = vmatprep.subr.bf16.mxu0 0
    %1050 = vmatpush1.bf16.msra.mxu0 0
    %1051 = vmatprep.subr.bf16.mxu0 0
    %1052 = vmatpush1.bf16.msra.mxu0 0
    %1053 = vmatprep.subr.bf16.mxu0 0
    %1054 = vmatpush1.bf16.msra.mxu0 0
    %1055 = vmatprep.subr.bf16.mxu0 0
    %1056 = vmatpush1.bf16.msra.mxu0 0
    %1057 = vmatprep.subr.bf16.mxu0 0
    %1058 = vmatpush1.bf16.msra.mxu0 0
    %1059 = vmatprep.subr.bf16.mxu0 0
    %1060 = vmatpush1.bf16.msra.mxu0 0
    %1061 = vmatprep.subr.bf16.mxu0 0
    %1062 = vmatpush1.bf16.msra.mxu0 0
    %1063 = vmatprep.subr.bf16.mxu0 0
    %1064 = vmatpush1.bf16.msra.mxu0 0
    %1065 = vmatprep.subr.bf16.mxu0 0
    %1066 = vmatpush1.bf16.msra.mxu0 0
    %1067 = vmatprep.mubr.bf16.mxu0 0
    %1068 = vmatmul.mubr.bf16.gmra.mrb[0].mxu0 %v1030
    %v1069 = vpop.f32.mrb[0].mxu0
    %v1070 = vadd.f32 0.0, %v1069
    %v1071 = vpop.f32.mrb[0].mxu0
    %v1072 = vpop.f32.mrb[0].mxu0
    %v1073 = vpop.f32.mrb[0].mxu0
    %1074 = vdwg.mxu0
    %v1076 = vsel %vm655, %v751, 0
    %v1079 = vsel %vm755, %v318, 0
    %1081 = vmatprep.subr.bf16.mxu0 0
    %1082 = vmatpush1.bf16.msra.mxu0 %v1079
    %1083 = vmatprep.subr.bf16.mxu0 0
    %1084 = vmatpush1.bf16.msra.mxu0 0
    %1085 = vmatprep.subr.bf16.mxu0 0
    %1086 = vmatpush1.bf16.msra.mxu0 0
    %1087 = vmatprep.subr.bf16.mxu0 0
    %1088 = vmatpush1.bf16.msra.mxu0 0
    %1089 = vmatprep.subr.bf16.mxu0 0
    %1090 = vmatpush1.bf16.msra.mxu0 0
    %1091 = vmatprep.subr.bf16.mxu0 0
    %1092 = vmatpush1.bf16.msra.mxu0 0
    %1093 = vmatprep.subr.bf16.mxu0 0
    %1094 = vmatpush1.bf16.msra.mxu0 0
    %1095 = vmatprep.subr.bf16.mxu0 0
    %1096 = vmatpush1.bf16.msra.mxu0 0
    %1097 = vmatprep.subr.bf16.mxu0 0
    %1098 = vmatpush1.bf16.msra.mxu0 0
    %1099 = vmatprep.subr.bf16.mxu0 0
    %1100 = vmatpush1.bf16.msra.mxu0 0
    %1101 = vmatprep.subr.bf16.mxu0 0
    %1102 = vmatpush1.bf16.msra.mxu0 0
    %1103 = vmatprep.subr.bf16.mxu0 0
    %1104 = vmatpush1.bf16.msra.mxu0 0
    %1105 = vmatprep.subr.bf16.mxu0 0
    %1106 = vmatpush1.bf16.msra.mxu0 0
    %1107 = vmatprep.subr.bf16.mxu0 0
    %1108 = vmatpush1.bf16.msra.mxu0 0
    %1109 = vmatprep.subr.bf16.mxu0 0
    %1110 = vmatpush1.bf16.msra.mxu0 0
    %1111 = vmatprep.subr.bf16.mxu0 0
    %1112 = vmatpush1.bf16.msra.mxu0 0
    %1113 = vmatprep.mubr.bf16.mxu0 0
    %1114 = vmatmul.mubr.bf16.gmra.mrb[0].mxu0 %v1076
    %v1115 = vpop.f32.mrb[0].mxu0
    %v1116 = vadd.f32 0.0, %v1115
    %v1117 = vpop.f32.mrb[0].mxu0
    %v1118 = vpop.f32.mrb[0].mxu0
    %v1119 = vpop.f32.mrb[0].mxu0
    %1120 = vdwg.mxu0
    %v1121 = vadd.f32 %v794, %v886
    %v1122 = vadd.f32 %v1121, %v978
    %v1123 = vadd.f32 %v1122, %v1070
    %v1124 = vadd.f32 %v840, %v932
    %v1125 = vadd.f32 %v1124, %v1024
    %v1126 = vadd.f32 %v1125, %v1116
    %v1127 = vld [vmem:[%s4] sm:$0xf]
    %v1128 = vld [vmem:[%s4 + $0x4] sm:$0xf]
    %v1129 = vld [vmem:[%s4 + $0x8] sm:$0xf]
    %v1130 = vld [vmem:[%s4 + $0xc] sm:$0xf]
    %v1131 = vld [vmem:[%s4 + $0x10] sm:$0xf]
    %v1132 = vld [vmem:[%s4 + $0x14] sm:$0xf]
    %v1133 = vld [vmem:[%s4 + $0x18] sm:$0xf]
    %v1134 = vld [vmem:[%s4 + $0x1c] sm:$0xf]
    %v1135 = vld [vmem:[%s4 + $0x20] sm:$0xf]
    %v1136 = vld [vmem:[%s4 + $0x24] sm:$0xf]
    %v1137 = vld [vmem:[%s4 + $0x28] sm:$0xf]
    %v1138 = vld [vmem:[%s4 + $0x2c] sm:$0xf]
    %v1139 = vld [vmem:[%s4 + $0x30] sm:$0xf]
    %v1140 = vld [vmem:[%s4 + $0x34] sm:$0xf]
    %v1141 = vld [vmem:[%s4 + $0x38] sm:$0xf]
    %v1142 = vld [vmem:[%s4 + $0x3c] sm:$0xf]
    %v1143 = vpack.c.bf16 %v1126, %v1123
    %v1144 = vlaneseq
    %v1145 = vshrl.u32 %v1144, 7
    %v1146 = vsub.s32 3, %v1145
    %v1147 = vrot.slane %v125, %v1146
    %v1164 = vunpack.c.l.b16 %v1127
    %v1165 = vunpack.c.l.b16 %v1128
    %v1166 = vunpack.c.l.b16 %v1129
    %v1167 = vunpack.c.l.b16 %v1130
    %v1168 = vunpack.c.l.b16 %v1131
    %v1169 = vunpack.c.l.b16 %v1132
    %v1170 = vunpack.c.l.b16 %v1133
    %v1171 = vunpack.c.l.b16 %v1134
    %v1172 = vunpack.c.l.b16 %v1135
    %v1173 = vunpack.c.l.b16 %v1136
    %v1174 = vunpack.c.l.b16 %v1137
    %v1175 = vunpack.c.l.b16 %v1138
    %v1176 = vunpack.c.l.b16 %v1139
    %v1177 = vunpack.c.l.b16 %v1140
    %v1178 = vunpack.c.l.b16 %v1141
    %v1179 = vunpack.c.l.b16 %v1142
    %v1180 = vpack.c.b16 %v1165, %v1164
    %v1181 = vpack.c.b16 %v1167, %v1166
    %v1182 = vpack.c.b16 %v1169, %v1168
    %v1183 = vpack.c.b16 %v1171, %v1170
    %v1184 = vpack.c.b16 %v1173, %v1172
    %v1185 = vpack.c.b16 %v1175, %v1174
    %v1186 = vpack.c.b16 %v1177, %v1176
    %v1187 = vpack.c.b16 %v1179, %v1178
    %1196 = vmatprep.subr.bf16.mxu0 0
    %1197 = vmatpush1.bf16.msra.mxu0 %v1180
    %1198 = vmatprep.subr.bf16.mxu0 0
    %1199 = vmatpush1.bf16.msra.mxu0 %v1181
    %1200 = vmatprep.subr.bf16.mxu0 0
    %1201 = vmatpush1.bf16.msra.mxu0 %v1182
    %1202 = vmatprep.subr.bf16.mxu0 0
    %1203 = vmatpush1.bf16.msra.mxu0 %v1183
    %1204 = vmatprep.subr.bf16.mxu0 0
    %1205 = vmatpush1.bf16.msra.mxu0 %v1184
    %1206 = vmatprep.subr.bf16.mxu0 0
    %1207 = vmatpush1.bf16.msra.mxu0 %v1185
    %1208 = vmatprep.subr.bf16.mxu0 0
    %1209 = vmatpush1.bf16.msra.mxu0 %v1186
    %1210 = vmatprep.subr.bf16.mxu0 0
    %1211 = vmatpush1.bf16.msra.mxu0 %v1187
    %1212 = vmatprep.subr.bf16.mxu0 0
    %1213 = vmatpush1.bf16.msra.mxu0 0
    %1214 = vmatprep.subr.bf16.mxu0 0
    %1215 = vmatpush1.bf16.msra.mxu0 0
    %1216 = vmatprep.subr.bf16.mxu0 0
    %1217 = vmatpush1.bf16.msra.mxu0 0
    %1218 = vmatprep.subr.bf16.mxu0 0
    %1219 = vmatpush1.bf16.msra.mxu0 0
    %1220 = vmatprep.subr.bf16.mxu0 0
    %1221 = vmatpush1.bf16.msra.mxu0 0
    %1222 = vmatprep.subr.bf16.mxu0 0
    %1223 = vmatpush1.bf16.msra.mxu0 0
    %1224 = vmatprep.subr.bf16.mxu0 0
    %1225 = vmatpush1.bf16.msra.mxu0 0
    %1226 = vmatprep.subr.bf16.mxu0 0
    %1227 = vmatpush1.bf16.msra.mxu0 0
    %1228 = vmatprep.mubr.bf16.mxu0 0
    %1229 = vmatmul.mubr.bf16.gmra.mrb[0].mxu0 %v1143
    %v1230 = vpop.f32.mrb[0].mxu0
    %v1231 = vadd.f32 %v1147, %v1230
    %v1232 = vpop.f32.mrb[0].mxu0
    %v1233 = vpop.f32.mrb[0].mxu0
    %v1234 = vadd.f32 %v1147, %v1233
    %v1235 = vpop.f32.mrb[0].mxu0
    %1236 = vdwg.mxu0
    %v1237 = vadd.f32 %v115, %v1231
    %v1238 = vadd.f32 %v116, %v1234
    %1239 = vadd.xlane.f32.xlu0 %v1237
    %v1240 = vpop.xlane.xlu0 %1239
    %1241 = vadd.xlane.f32.xlu0 %v1238
    %v1242 = vpop.xlane.xlu0 %1241
    %v1243 = vmul.f32 %v1240, 0.03125
    %v1244 = vmul.f32 %v1242, 0.03125
    %v1245 = vsub.f32 %v1237, %v1243
    %v1246 = vsub.f32 %v1238, %v1244
    %v1247 = vmul.f32 %v1245, %v88
    %v1248 = vmul.f32 %v1246, %v88
    %v1249 = vmul.f32 %v1247, %v1247
    %v1250 = vmul.f32 %v1248, %v1248
    %1251 = vadd.xlane.f32.xlu0 %v1249
    %v1252 = vpop.xlane.xlu0 %1251
    %1253 = vadd.xlane.f32.xlu0 %v1250
    %v1254 = vpop.xlane.xlu0 %1253
    %v1255 = vmul.f32 %v1252, 0.03125
    %v1256 = vmul.f32 %v1254, 0.03125
    %v1257 = vadd.f32 %v1255, 1e-12
    %v1258 = vadd.f32 %v1256, 1e-12
    %v1259 = vrsqrt.pop %v1257
    %v1260 = vrsqrt.pop %v1258
    %v1261 = vmul.f32 %v1247, %v1259
    %v1262 = vmul.f32 %v1248, %v1260
    %v1263 = vlaneseq
    %v1264 = vshrl.u32 %v1263, 7
    %v1265 = vsub.s32 4, %v1264
    %v1266 = vrot.slane %v125, %v1265
    %v1267 = vmul.f32 %v1261, %v1266
    %v1268 = vmul.f32 %v1262, %v1266
    %v1269 = vlaneseq
    %v1270 = vshrl.u32 %v1269, 7
    %v1271 = vsub.s32 5, %v1270
    %v1272 = vrot.slane %v125, %v1271
    %v1273 = vadd.f32 %v1267, %v1272
    %v1274 = vadd.f32 %v1268, %v1272
    %v1275 = vld [vmem:[%s5] sm:$0xf]
    %v1276 = vld [vmem:[%s5 + $0x4] sm:$0xf]
    %v1277 = vld [vmem:[%s5 + $0x8] sm:$0xf]
    %v1278 = vld [vmem:[%s5 + $0xc] sm:$0xf]
    %v1279 = vld [vmem:[%s5 + $0x10] sm:$0xf]
    %v1280 = vld [vmem:[%s5 + $0x14] sm:$0xf]
    %v1281 = vld [vmem:[%s5 + $0x18] sm:$0xf]
    %v1282 = vld [vmem:[%s5 + $0x1c] sm:$0xf]
    %v1283 = vld [vmem:[%s5 + $0x20] sm:$0xf]
    %v1284 = vld [vmem:[%s5 + $0x24] sm:$0xf]
    %v1285 = vld [vmem:[%s5 + $0x28] sm:$0xf]
    %v1286 = vld [vmem:[%s5 + $0x2c] sm:$0xf]
    %v1287 = vld [vmem:[%s5 + $0x30] sm:$0xf]
    %v1288 = vld [vmem:[%s5 + $0x34] sm:$0xf]
    %v1289 = vld [vmem:[%s5 + $0x38] sm:$0xf]
    %v1290 = vld [vmem:[%s5 + $0x3c] sm:$0xf]
    %v1291 = vpack.c.bf16 %v1274, %v1273
    %v1292 = vlaneseq
    %v1293 = vshrl.u32 %v1292, 7
    %v1294 = vsub.s32 6, %v1293
    %v1295 = vrot.slane %v125, %v1294
    %v1312 = vunpack.c.l.b16 %v1275
    %v1313 = vunpack.c.l.b16 %v1276
    %v1314 = vunpack.c.l.b16 %v1277
    %v1315 = vunpack.c.l.b16 %v1278
    %v1316 = vunpack.c.l.b16 %v1279
    %v1317 = vunpack.c.l.b16 %v1280
    %v1318 = vunpack.c.l.b16 %v1281
    %v1319 = vunpack.c.l.b16 %v1282
    %v1320 = vunpack.c.l.b16 %v1283
    %v1321 = vunpack.c.l.b16 %v1284
    %v1322 = vunpack.c.l.b16 %v1285
    %v1323 = vunpack.c.l.b16 %v1286
    %v1324 = vunpack.c.l.b16 %v1287
    %v1325 = vunpack.c.l.b16 %v1288
    %v1326 = vunpack.c.l.b16 %v1289
    %v1327 = vunpack.c.l.b16 %v1290
    %v1328 = vpack.c.b16 %v1313, %v1312
    %v1329 = vpack.c.b16 %v1315, %v1314
    %v1330 = vpack.c.b16 %v1317, %v1316
    %v1331 = vpack.c.b16 %v1319, %v1318
    %v1332 = vpack.c.b16 %v1321, %v1320
    %v1333 = vpack.c.b16 %v1323, %v1322
    %v1334 = vpack.c.b16 %v1325, %v1324
    %v1335 = vpack.c.b16 %v1327, %v1326
    %1344 = vmatprep.subr.bf16.mxu0 0
    %1345 = vmatpush1.bf16.msra.mxu0 %v1328
    %1346 = vmatprep.subr.bf16.mxu0 0
    %1347 = vmatpush1.bf16.msra.mxu0 %v1329
    %1348 = vmatprep.subr.bf16.mxu0 0
    %1349 = vmatpush1.bf16.msra.mxu0 %v1330
    %1350 = vmatprep.subr.bf16.mxu0 0
    %1351 = vmatpush1.bf16.msra.mxu0 %v1331
    %1352 = vmatprep.subr.bf16.mxu0 0
    %1353 = vmatpush1.bf16.msra.mxu0 %v1332
    %1354 = vmatprep.subr.bf16.mxu0 0
    %1355 = vmatpush1.bf16.msra.mxu0 %v1333
    %1356 = vmatprep.subr.bf16.mxu0 0
    %1357 = vmatpush1.bf16.msra.mxu0 %v1334
    %1358 = vmatprep.subr.bf16.mxu0 0
    %1359 = vmatpush1.bf16.msra.mxu0 %v1335
    %1360 = vmatprep.subr.bf16.mxu0 0
    %1361 = vmatpush1.bf16.msra.mxu0 0
    %1362 = vmatprep.subr.bf16.mxu0 0
    %1363 = vmatpush1.bf16.msra.mxu0 0
    %1364 = vmatprep.subr.bf16.mxu0 0
    %1365 = vmatpush1.bf16.msra.mxu0 0
    %1366 = vmatprep.subr.bf16.mxu0 0
    %1367 = vmatpush1.bf16.msra.mxu0 0
    %1368 = vmatprep.subr.bf16.mxu0 0
    %1369 = vmatpush1.bf16.msra.mxu0 0
    %1370 = vmatprep.subr.bf16.mxu0 0
    %1371 = vmatpush1.bf16.msra.mxu0 0
    %1372 = vmatprep.subr.bf16.mxu0 0
    %1373 = vmatpush1.bf16.msra.mxu0 0
    %1374 = vmatprep.subr.bf16.mxu0 0
    %1375 = vmatpush1.bf16.msra.mxu0 0
    %1376 = vmatprep.mubr.bf16.mxu0 0
    %1377 = vmatmul.mubr.bf16.gmra.mrb[0].mxu0 %v1291
    %v1378 = vpop.f32.mrb[0].mxu0
    %v1379 = vadd.f32 %v1295, %v1378
    %v1380 = vpop.f32.mrb[0].mxu0
    %v1381 = vpop.f32.mrb[0].mxu0
    %v1382 = vadd.f32 %v1295, %v1381
    %v1383 = vpop.f32.mrb[0].mxu0
    %1384 = vdwg.mxu0
    %v1385 = vmul.f32 %v1379, 0.5
    %v1386 = vmul.f32 %v1382, 0.5
    %v1387 = vmul.f32 %v1379, 0.044715
    %v1388 = vmul.f32 %v1382, 0.044715
    %v1389 = vmul.f32 %v1387, %v1379
    %v1390 = vmul.f32 %v1388, %v1382
    %v1391 = vmul.f32 %v1389, %v1379
    %v1392 = vmul.f32 %v1390, %v1382
    %v1393 = vadd.f32 %v1379, %v1391
    %v1394 = vadd.f32 %v1382, %v1392
    %v1395 = vmul.f32 %v1393, 0.7978846
    %v1396 = vmul.f32 %v1394, 0.7978846
    %v1397 = vtanh.pop %v1395
    %v1398 = vtanh.pop %v1396
    %v1399 = vadd.f32 %v1397, 1.0
    %v1400 = vadd.f32 %v1398, 1.0
    %v1401 = vmul.f32 %v1385, %v1399
    %v1402 = vmul.f32 %v1386, %v1400
    %v1403 = vld [vmem:[#allocation2] sm:$0xf]
    %v1404 = vld [vmem:[#allocation2 + $0x4] sm:$0xf]
    %v1405 = vld [vmem:[#allocation2 + $0x8] sm:$0xf]
    %v1406 = vld [vmem:[#allocation2 + $0xc] sm:$0xf]
    %v1407 = vld [vmem:[#allocation2 + $0x10] sm:$0xf]
    %v1408 = vld [vmem:[#allocation2 + $0x14] sm:$0xf]
    %v1409 = vld [vmem:[#allocation2 + $0x18] sm:$0xf]
    %v1410 = vld [vmem:[#allocation2 + $0x1c] sm:$0xf]
    %v1411 = vld [vmem:[#allocation2 + $0x20] sm:$0xf]
    %v1412 = vld [vmem:[#allocation2 + $0x24] sm:$0xf]
    %v1413 = vld [vmem:[#allocation2 + $0x28] sm:$0xf]
    %v1414 = vld [vmem:[#allocation2 + $0x2c] sm:$0xf]
    %v1415 = vld [vmem:[#allocation2 + $0x30] sm:$0xf]
    %v1416 = vld [vmem:[#allocation2 + $0x34] sm:$0xf]
    %v1417 = vld [vmem:[#allocation2 + $0x38] sm:$0xf]
    %v1418 = vld [vmem:[#allocation2 + $0x3c] sm:$0xf]
    %v1419 = vpack.c.bf16 %v1402, %v1401
    %v1420 = vlaneseq
    %v1421 = vshrl.u32 %v1420, 7
    %v1422 = vsub.s32 7, %v1421
    %v1423 = vrot.slane %v125, %v1422
    %v1440 = vunpack.c.l.b16 %v1403
    %v1441 = vunpack.c.l.b16 %v1404
    %v1442 = vunpack.c.l.b16 %v1405
    %v1443 = vunpack.c.l.b16 %v1406
    %v1444 = vunpack.c.l.b16 %v1407
    %v1445 = vunpack.c.l.b16 %v1408
    %v1446 = vunpack.c.l.b16 %v1409
    %v1447 = vunpack.c.l.b16 %v1410
    %v1448 = vunpack.c.l.b16 %v1411
    %v1449 = vunpack.c.l.b16 %v1412
    %v1450 = vunpack.c.l.b16 %v1413
    %v1451 = vunpack.c.l.b16 %v1414
    %v1452 = vunpack.c.l.b16 %v1415
    %v1453 = vunpack.c.l.b16 %v1416
    %v1454 = vunpack.c.l.b16 %v1417
    %v1455 = vunpack.c.l.b16 %v1418
    %v1456 = vpack.c.b16 %v1441, %v1440
    %v1457 = vpack.c.b16 %v1443, %v1442
    %v1458 = vpack.c.b16 %v1445, %v1444
    %v1459 = vpack.c.b16 %v1447, %v1446
    %v1460 = vpack.c.b16 %v1449, %v1448
    %v1461 = vpack.c.b16 %v1451, %v1450
    %v1462 = vpack.c.b16 %v1453, %v1452
    %v1463 = vpack.c.b16 %v1455, %v1454
    %1472 = vmatprep.subr.bf16.mxu0 0
    %1473 = vmatpush1.bf16.msra.mxu0 %v1456
    %1474 = vmatprep.subr.bf16.mxu0 0
    %1475 = vmatpush1.bf16.msra.mxu0 %v1457
    %1476 = vmatprep.subr.bf16.mxu0 0
    %1477 = vmatpush1.bf16.msra.mxu0 %v1458
    %1478 = vmatprep.subr.bf16.mxu0 0
    %1479 = vmatpush1.bf16.msra.mxu0 %v1459
    %1480 = vmatprep.subr.bf16.mxu0 0
    %1481 = vmatpush1.bf16.msra.mxu0 %v1460
    %1482 = vmatprep.subr.bf16.mxu0 0
    %1483 = vmatpush1.bf16.msra.mxu0 %v1461
    %1484 = vmatprep.subr.bf16.mxu0 0
    %1485 = vmatpush1.bf16.msra.mxu0 %v1462
    %1486 = vmatprep.subr.bf16.mxu0 0
    %1487 = vmatpush1.bf16.msra.mxu0 %v1463
    %1488 = vmatprep.subr.bf16.mxu0 0
    %1489 = vmatpush1.bf16.msra.mxu0 0
    %1490 = vmatprep.subr.bf16.mxu0 0
    %1491 = vmatpush1.bf16.msra.mxu0 0
    %1492 = vmatprep.subr.bf16.mxu0 0
    %1493 = vmatpush1.bf16.msra.mxu0 0
    %1494 = vmatprep.subr.bf16.mxu0 0
    %1495 = vmatpush1.bf16.msra.mxu0 0
    %1496 = vmatprep.subr.bf16.mxu0 0
    %1497 = vmatpush1.bf16.msra.mxu0 0
    %1498 = vmatprep.subr.bf16.mxu0 0
    %1499 = vmatpush1.bf16.msra.mxu0 0
    %1500 = vmatprep.subr.bf16.mxu0 0
    %1501 = vmatpush1.bf16.msra.mxu0 0
    %1502 = vmatprep.subr.bf16.mxu0 0
    %1503 = vmatpush1.bf16.msra.mxu0 0
    %1504 = vmatprep.mubr.bf16.mxu0 0
    %1505 = vmatmul.mubr.bf16.gmra.mrb[0].mxu0 %v1419
    %v1506 = vpop.f32.mrb[0].mxu0
    %v1507 = vadd.f32 %v1423, %v1506
    %v1508 = vpop.f32.mrb[0].mxu0
    %v1509 = vpop.f32.mrb[0].mxu0
    %v1510 = vadd.f32 %v1423, %v1509
    %v1511 = vpop.f32.mrb[0].mxu0
    %1512 = vdwg.mxu0
    %v1513 = vadd.f32 %v1273, %v1507
    %v1514 = vadd.f32 %v1274, %v1510
    %1515 = vadd.xlane.f32.xlu0 %v1513
    %v1516 = vpop.xlane.xlu0 %1515
    %1517 = vadd.xlane.f32.xlu0 %v1514
    %v1518 = vpop.xlane.xlu0 %1517
    %v1519 = vmul.f32 %v1516, 0.03125
    %v1520 = vmul.f32 %v1518, 0.03125
    %v1521 = vsub.f32 %v1513, %v1519
    %v1522 = vsub.f32 %v1514, %v1520
    %v1523 = vmul.f32 %v1521, %v88
    %v1524 = vmul.f32 %v1522, %v88
    %v1525 = vmul.f32 %v1523, %v1523
    %v1526 = vmul.f32 %v1524, %v1524
    %1527 = vadd.xlane.f32.xlu0 %v1525
    %v1528 = vpop.xlane.xlu0 %1527
    %1529 = vadd.xlane.f32.xlu0 %v1526
    %v1530 = vpop.xlane.xlu0 %1529
    %v1531 = vmul.f32 %v1528, 0.03125
    %v1532 = vmul.f32 %v1530, 0.03125
    %v1533 = vadd.f32 %v1531, 1e-12
    %v1534 = vadd.f32 %v1532, 1e-12
    %v1535 = vrsqrt.pop %v1533
    %v1536 = vrsqrt.pop %v1534
    %v1537 = vmul.f32 %v1523, %v1535
    %v1538 = vmul.f32 %v1524, %v1536
    %v1539 = vlaneseq
    %v1540 = vshrl.u32 %v1539, 7
    %v1541 = vsub.s32 0, %v1540
    %v1542 = vrot.slane %v126, %v1541
    %v1543 = vmul.f32 %v1537, %v1542
    %v1544 = vmul.f32 %v1538, %v1542
    %v1545 = vlaneseq
    %v1546 = vshrl.u32 %v1545, 7
    %v1547 = vsub.s32 1, %v1546
    %v1548 = vrot.slane %v126, %v1547
    %v1549 = vadd.f32 %v1543, %v1548
    %v1550 = vadd.f32 %v1544, %v1548
    %s1551 = scalar_lea.vmem %s7, 16
    %v1552 = vld [vmem:[%s1551] sm:$0xff]
    %v1553 = vld [vmem:[%s1551 + $0x8] sm:$0x3]
    %s1554 = scalar_lea.vmem %s3, 64
    %v1555 = vld [vmem:[%s1554] sm:$0xf]
    %v1556 = vld [vmem:[%s1554 + $0x4] sm:$0xf]
    %v1557 = vld [vmem:[%s1554 + $0x8] sm:$0xf]
    %v1558 = vld [vmem:[%s1554 + $0xc] sm:$0xf]
    %v1559 = vld [vmem:[%s1554 + $0x10] sm:$0xf]
    %v1560 = vld [vmem:[%s1554 + $0x14] sm:$0xf]
    %v1561 = vld [vmem:[%s1554 + $0x18] sm:$0xf]
    %v1562 = vld [vmem:[%s1554 + $0x1c] sm:$0xf]
    %v1563 = vld [vmem:[%s1554 + $0x20] sm:$0xf]
    %v1564 = vld [vmem:[%s1554 + $0x24] sm:$0xf]
    %v1565 = vld [vmem:[%s1554 + $0x28] sm:$0xf]
    %v1566 = vld [vmem:[%s1554 + $0x2c] sm:$0xf]
    %v1567 = vld [vmem:[%s1554 + $0x30] sm:$0xf]
    %v1568 = vld [vmem:[%s1554 + $0x34] sm:$0xf]
    %v1569 = vld [vmem:[%s1554 + $0x38] sm:$0xf]
    %v1570 = vld [vmem:[%s1554 + $0x3c] sm:$0xf]
    %v1571 = vpack.c.bf16 %v1550, %v1549
    %v1588 = vunpack.c.l.b16 %v1555
    %v1589 = vunpack.c.l.b16 %v1556
    %v1590 = vunpack.c.l.b16 %v1557
    %v1591 = vunpack.c.l.b16 %v1558
    %v1592 = vunpack.c.l.b16 %v1559
    %v1593 = vunpack.c.l.b16 %v1560
    %v1594 = vunpack.c.l.b16 %v1561
    %v1595 = vunpack.c.l.b16 %v1562
    %v1596 = vunpack.c.l.b16 %v1563
    %v1597 = vunpack.c.l.b16 %v1564
    %v1598 = vunpack.c.l.b16 %v1565
    %v1599 = vunpack.c.l.b16 %v1566
    %v1600 = vunpack.c.l.b16 %v1567
    %v1601 = vunpack.c.l.b16 %v1568
    %v1602 = vunpack.c.l.b16 %v1569
    %v1603 = vunpack.c.l.b16 %v1570
    %v1604 = vpack.c.b16 %v1589, %v1588
    %v1605 = vpack.c.b16 %v1591, %v1590
    %v1606 = vpack.c.b16 %v1593, %v1592
    %v1607 = vpack.c.b16 %v1595, %v1594
    %v1608 = vpack.c.b16 %v1597, %v1596
    %v1609 = vpack.c.b16 %v1599, %v1598
    %v1610 = vpack.c.b16 %v1601, %v1600
    %v1611 = vpack.c.b16 %v1603, %v1602
    %1620 = vmatprep.subr.bf16.mxu0 0
    %1621 = vmatpush1.bf16.msra.mxu0 %v1604
    %1622 = vmatprep.subr.bf16.mxu0 0
    %1623 = vmatpush1.bf16.msra.mxu0 %v1605
    %1624 = vmatprep.subr.bf16.mxu0 0
    %1625 = vmatpush1.bf16.msra.mxu0 %v1606
    %1626 = vmatprep.subr.bf16.mxu0 0
    %1627 = vmatpush1.bf16.msra.mxu0 %v1607
    %1628 = vmatprep.subr.bf16.mxu0 0
    %1629 = vmatpush1.bf16.msra.mxu0 %v1608
    %1630 = vmatprep.subr.bf16.mxu0 0
    %1631 = vmatpush1.bf16.msra.mxu0 %v1609
    %1632 = vmatprep.subr.bf16.mxu0 0
    %1633 = vmatpush1.bf16.msra.mxu0 %v1610
    %1634 = vmatprep.subr.bf16.mxu0 0
    %1635 = vmatpush1.bf16.msra.mxu0 %v1611
    %1636 = vmatprep.subr.bf16.mxu0 0
    %1637 = vmatpush1.bf16.msra.mxu0 0
    %1638 = vmatprep.subr.bf16.mxu0 0
    %1639 = vmatpush1.bf16.msra.mxu0 0
    %1640 = vmatprep.subr.bf16.mxu0 0
    %1641 = vmatpush1.bf16.msra.mxu0 0
    %1642 = vmatprep.subr.bf16.mxu0 0
    %1643 = vmatpush1.bf16.msra.mxu0 0
    %1644 = vmatprep.subr.bf16.mxu0 0
    %1645 = vmatpush1.bf16.msra.mxu0 0
    %1646 = vmatprep.subr.bf16.mxu0 0
    %1647 = vmatpush1.bf16.msra.mxu0 0
    %1648 = vmatprep.subr.bf16.mxu0 0
    %1649 = vmatpush1.bf16.msra.mxu0 0
    %1650 = vmatprep.subr.bf16.mxu0 0
    %1651 = vmatpush1.bf16.msra.mxu0 0
    %1652 = vmatprep.mubr.bf16.mxu0 0
    %1653 = vmatmul.mubr.bf16.gmra.mrb[0].mxu0 %v1571
    %v1654 = vpop.f32.mrb[0].mxu0
    %v1655 = vadd.f32 0.0, %v1654
    %v1656 = vpop.f32.mrb[0].mxu0
    %v1657 = vpop.f32.mrb[0].mxu0
    %v1658 = vadd.f32 0.0, %v1657
    %v1659 = vpop.f32.mrb[0].mxu0
    %1660 = vdwg.mxu0
    %v1661 = vmul.f32 %v1655, %v88
    %v1662 = vmul.f32 %v1658, %v88
    %v1663 = vlaneseq
    %v1664 = vshrl.u32 %v1663, 7
    %v1665 = vsub.s32 0, %v1664
    %v1666 = vrot.slane %v1552, %v1665
    %v1667 = vadd.f32 %v1661, %v1666
    %v1668 = vadd.f32 %v1662, %v1666
    %1669 = vrot.lane.b32.xlu0 %v1655, 96
    %v1670 = vpop.permute.xlu0 %1669
    %1671 = vrot.lane.b32.xlu0 %v1658, 96
    %v1672 = vpop.permute.xlu0 %1671
    %v1673 = vmul.f32 %v1670, %v88
    %v1674 = vmul.f32 %v1672, %v88
    %v1675 = vlaneseq
    %v1676 = vshrl.u32 %v1675, 7
    %v1677 = vsub.s32 1, %v1676
    %v1678 = vrot.slane %v1552, %v1677
    %v1679 = vadd.f32 %v1673, %v1678
    %v1680 = vadd.f32 %v1674, %v1678
    %1681 = vrot.lane.b32.xlu0 %v1655, 64
    %v1682 = vpop.permute.xlu0 %1681
    %1683 = vrot.lane.b32.xlu0 %v1658, 64
    %v1684 = vpop.permute.xlu0 %1683
    %v1685 = vmul.f32 %v1682, %v88
    %v1686 = vmul.f32 %v1684, %v88
    %v1687 = vlaneseq
    %v1688 = vshrl.u32 %v1687, 7
    %v1689 = vsub.s32 2, %v1688
    %v1690 = vrot.slane %v1552, %v1689
    %v1691 = vadd.f32 %v1685, %v1690
    %v1692 = vadd.f32 %v1686, %v1690
    %v1693 = vmul.f32 %v1667, %v268
    %v1694 = vmul.f32 %v1668, %v268
    %v1695 = vmul.f32 %v1667, %v272
    %v1696 = vmul.f32 %v1668, %v272
    %v1697 = vmul.f32 %v1667, %v276
    %v1698 = vmul.f32 %v1668, %v276
    %v1699 = vmul.f32 %v1667, %v280
    %v1700 = vmul.f32 %v1668, %v280
    %v1701 = vpack.c.bf16 %v1693, %v1693
    %v1702 = vpack.c.bf16 %v1694, %v1694
    %v1703 = vpack.c.bf16 %v1695, %v1695
    %v1704 = vpack.c.bf16 %v1696, %v1696
    %v1705 = vpack.c.bf16 %v1697, %v1697
    %v1706 = vpack.c.bf16 %v1698, %v1698
    %v1707 = vpack.c.bf16 %v1699, %v1699
    %v1708 = vpack.c.bf16 %v1700, %v1700
    %v1709 = vpack.c.bf16 %v1679, %v1679
    %v1710 = vpack.c.bf16 %v1680, %v1680
    %v1711 = vmul.f32 %v1691, %v268
    %v1712 = vmul.f32 %v1692, %v268
    %v1713 = vmul.f32 %v1691, %v272
    %v1714 = vmul.f32 %v1692, %v272
    %v1715 = vmul.f32 %v1691, %v276
    %v1716 = vmul.f32 %v1692, %v276
    %v1717 = vmul.f32 %v1691, %v280
    %v1718 = vmul.f32 %v1692, %v280
    %v1719 = vpack.c.bf16 %v1711, %v1711
    %v1720 = vpack.c.bf16 %v1712, %v1712
    %v1721 = vpack.c.bf16 %v1713, %v1713
    %v1722 = vpack.c.bf16 %v1714, %v1714
    %v1723 = vpack.c.bf16 %v1715, %v1715
    %v1724 = vpack.c.bf16 %v1716, %v1716
    %v1725 = vpack.c.bf16 %v1717, %v1717
    %v1726 = vpack.c.bf16 %v1718, %v1718
    %1727 = vmatprep.subr.bf16.mxu0 0
    %1728 = vmatpush1.bf16.xpose.msra.mxu0 %v1709
    %1729 = vmatprep.subr.bf16.mxu0 0
    %1730 = vmatpush1.bf16.xpose.msra.mxu0 0
    %1731 = vmatprep.subr.bf16.mxu0 0
    %1732 = vmatpush1.bf16.xpose.msra.mxu0 0
    %1733 = vmatprep.subr.bf16.mxu0 0
    %1734 = vmatpush1.bf16.xpose.msra.mxu0 0
    %1735 = vmatprep.subr.bf16.mxu0 0
    %1736 = vmatpush1.bf16.xpose.msra.mxu0 0
    %1737 = vmatprep.subr.bf16.mxu0 0
    %1738 = vmatpush1.bf16.xpose.msra.mxu0 0
    %1739 = vmatprep.subr.bf16.mxu0 0
    %1740 = vmatpush1.bf16.xpose.msra.mxu0 0
    %1741 = vmatprep.subr.bf16.mxu0 0
    %1742 = vmatpush1.bf16.xpose.msra.mxu0 0
    %1743 = vmatprep.subr.bf16.mxu0 0
    %1744 = vmatpush1.bf16.xpose.msra.mxu0 0
    %1745 = vmatprep.subr.bf16.mxu0 0
    %1746 = vmatpush1.bf16.xpose.msra.mxu0 0
    %1747 = vmatprep.subr.bf16.mxu0 0
    %1748 = vmatpush1.bf16.xpose.msra.mxu0 0
    %1749 = vmatprep.subr.bf16.mxu0 0
    %1750 = vmatpush1.bf16.xpose.msra.mxu0 0
    %1751 = vmatprep.subr.bf16.mxu0 0
    %1752 = vmatpush1.bf16.xpose.msra.mxu0 0
    %1753 = vmatprep.subr.bf16.mxu0 0
    %1754 = vmatpush1.bf16.xpose.msra.mxu0 0
    %1755 = vmatprep.subr.bf16.mxu0 0
    %1756 = vmatpush1.bf16.xpose.msra.mxu0 0
    %1757 = vmatprep.subr.bf16.mxu0 0
    %1758 = vmatpush1.bf16.xpose.msra.mxu0 0
    %1759 = vmatprep.mubr.bf16.mxu0 0
    %1760 = vmatmul.mubr.bf16.gmra.mrb[0].mxu0 %v1701
    %v1761 = vpop.f32.mrb[0].mxu0
    %v1762 = vadd.f32 0.0, %v1761
    %v1763 = vpop.f32.mrb[0].mxu0
    %v1764 = vpop.f32.mrb[0].mxu0
    %v1765 = vpop.f32.mrb[0].mxu0
    %1766 = vdwg.mxu0
    %1767 = vmatprep.subr.bf16.mxu0 0
    %1768 = vmatpush1.bf16.xpose.msra.mxu0 %v1710
    %1769 = vmatprep.subr.bf16.mxu0 0
    %1770 = vmatpush1.bf16.xpose.msra.mxu0 0
    %1771 = vmatprep.subr.bf16.mxu0 0
    %1772 = vmatpush1.bf16.xpose.msra.mxu0 0
    %1773 = vmatprep.subr.bf16.mxu0 0
    %1774 = vmatpush1.bf16.xpose.msra.mxu0 0
    %1775 = vmatprep.subr.bf16.mxu0 0
    %1776 = vmatpush1.bf16.xpose.msra.mxu0 0
    %1777 = vmatprep.subr.bf16.mxu0 0
    %1778 = vmatpush1.bf16.xpose.msra.mxu0 0
    %1779 = vmatprep.subr.bf16.mxu0 0
    %1780 = vmatpush1.bf16.xpose.msra.mxu0 0
    %1781 = vmatprep.subr.bf16.mxu0 0
    %1782 = vmatpush1.bf16.xpose.msra.mxu0 0
    %1783 = vmatprep.subr.bf16.mxu0 0
    %1784 = vmatpush1.bf16.xpose.msra.mxu0 0
    %1785 = vmatprep.subr.bf16.mxu0 0
    %1786 = vmatpush1.bf16.xpose.msra.mxu0 0
    %1787 = vmatprep.subr.bf16.mxu0 0
    %1788 = vmatpush1.bf16.xpose.msra.mxu0 0
    %1789 = vmatprep.subr.bf16.mxu0 0
    %1790 = vmatpush1.bf16.xpose.msra.mxu0 0
    %1791 = vmatprep.subr.bf16.mxu0 0
    %1792 = vmatpush1.bf16.xpose.msra.mxu0 0
    %1793 = vmatprep.subr.bf16.mxu0 0
    %1794 = vmatpush1.bf16.xpose.msra.mxu0 0
    %1795 = vmatprep.subr.bf16.mxu0 0
    %1796 = vmatpush1.bf16.xpose.msra.mxu0 0
    %1797 = vmatprep.subr.bf16.mxu0 0
    %1798 = vmatpush1.bf16.xpose.msra.mxu0 0
    %1799 = vmatprep.mubr.bf16.mxu0 0
    %1800 = vmatmul.mubr.bf16.gmra.mrb[0].mxu0 %v1702
    %v1801 = vpop.f32.mrb[0].mxu0
    %v1802 = vadd.f32 0.0, %v1801
    %v1803 = vpop.f32.mrb[0].mxu0
    %v1804 = vpop.f32.mrb[0].mxu0
    %v1805 = vpop.f32.mrb[0].mxu0
    %1806 = vdwg.mxu0
    %1807 = vmatprep.subr.bf16.mxu0 0
    %1808 = vmatpush1.bf16.xpose.msra.mxu0 %v1709
    %1809 = vmatprep.subr.bf16.mxu0 0
    %1810 = vmatpush1.bf16.xpose.msra.mxu0 0
    %1811 = vmatprep.subr.bf16.mxu0 0
    %1812 = vmatpush1.bf16.xpose.msra.mxu0 0
    %1813 = vmatprep.subr.bf16.mxu0 0
    %1814 = vmatpush1.bf16.xpose.msra.mxu0 0
    %1815 = vmatprep.subr.bf16.mxu0 0
    %1816 = vmatpush1.bf16.xpose.msra.mxu0 0
    %1817 = vmatprep.subr.bf16.mxu0 0
    %1818 = vmatpush1.bf16.xpose.msra.mxu0 0
    %1819 = vmatprep.subr.bf16.mxu0 0
    %1820 = vmatpush1.bf16.xpose.msra.mxu0 0
    %1821 = vmatprep.subr.bf16.mxu0 0
    %1822 = vmatpush1.bf16.xpose.msra.mxu0 0
    %1823 = vmatprep.subr.bf16.mxu0 0
    %1824 = vmatpush1.bf16.xpose.msra.mxu0 0
    %1825 = vmatprep.subr.bf16.mxu0 0
    %1826 = vmatpush1.bf16.xpose.msra.mxu0 0
    %1827 = vmatprep.subr.bf16.mxu0 0
    %1828 = vmatpush1.bf16.xpose.msra.mxu0 0
    %1829 = vmatprep.subr.bf16.mxu0 0
    %1830 = vmatpush1.bf16.xpose.msra.mxu0 0
    %1831 = vmatprep.subr.bf16.mxu0 0
    %1832 = vmatpush1.bf16.xpose.msra.mxu0 0
    %1833 = vmatprep.subr.bf16.mxu0 0
    %1834 = vmatpush1.bf16.xpose.msra.mxu0 0
    %1835 = vmatprep.subr.bf16.mxu0 0
    %1836 = vmatpush1.bf16.xpose.msra.mxu0 0
    %1837 = vmatprep.subr.bf16.mxu0 0
    %1838 = vmatpush1.bf16.xpose.msra.mxu0 0
    %1839 = vmatprep.mubr.bf16.mxu0 0
    %1840 = vmatmul.mubr.bf16.gmra.mrb[0].mxu0 %v1703
    %v1841 = vpop.f32.mrb[0].mxu0
    %v1842 = vadd.f32 0.0, %v1841
    %v1843 = vpop.f32.mrb[0].mxu0
    %v1844 = vpop.f32.mrb[0].mxu0
    %v1845 = vpop.f32.mrb[0].mxu0
    %1846 = vdwg.mxu0
    %1847 = vmatprep.subr.bf16.mxu0 0
    %1848 = vmatpush1.bf16.xpose.msra.mxu0 %v1710
    %1849 = vmatprep.subr.bf16.mxu0 0
    %1850 = vmatpush1.bf16.xpose.msra.mxu0 0
    %1851 = vmatprep.subr.bf16.mxu0 0
    %1852 = vmatpush1.bf16.xpose.msra.mxu0 0
    %1853 = vmatprep.subr.bf16.mxu0 0
    %1854 = vmatpush1.bf16.xpose.msra.mxu0 0
    %1855 = vmatprep.subr.bf16.mxu0 0
    %1856 = vmatpush1.bf16.xpose.msra.mxu0 0
    %1857 = vmatprep.subr.bf16.mxu0 0
    %1858 = vmatpush1.bf16.xpose.msra.mxu0 0
    %1859 = vmatprep.subr.bf16.mxu0 0
    %1860 = vmatpush1.bf16.xpose.msra.mxu0 0
    %1861 = vmatprep.subr.bf16.mxu0 0
    %1862 = vmatpush1.bf16.xpose.msra.mxu0 0
    %1863 = vmatprep.subr.bf16.mxu0 0
    %1864 = vmatpush1.bf16.xpose.msra.mxu0 0
    %1865 = vmatprep.subr.bf16.mxu0 0
    %1866 = vmatpush1.bf16.xpose.msra.mxu0 0
    %1867 = vmatprep.subr.bf16.mxu0 0
    %1868 = vmatpush1.bf16.xpose.msra.mxu0 0
    %1869 = vmatprep.subr.bf16.mxu0 0
    %1870 = vmatpush1.bf16.xpose.msra.mxu0 0
    %1871 = vmatprep.subr.bf16.mxu0 0
    %1872 = vmatpush1.bf16.xpose.msra.mxu0 0
    %1873 = vmatprep.subr.bf16.mxu0 0
    %1874 = vmatpush1.bf16.xpose.msra.mxu0 0
    %1875 = vmatprep.subr.bf16.mxu0 0
    %1876 = vmatpush1.bf16.xpose.msra.mxu0 0
    %1877 = vmatprep.subr.bf16.mxu0 0
    %1878 = vmatpush1.bf16.xpose.msra.mxu0 0
    %1879 = vmatprep.mubr.bf16.mxu0 0
    %1880 = vmatmul.mubr.bf16.gmra.mrb[0].mxu0 %v1704
    %v1881 = vpop.f32.mrb[0].mxu0
    %v1882 = vadd.f32 0.0, %v1881
    %v1883 = vpop.f32.mrb[0].mxu0
    %v1884 = vpop.f32.mrb[0].mxu0
    %v1885 = vpop.f32.mrb[0].mxu0
    %1886 = vdwg.mxu0
    %1887 = vmatprep.subr.bf16.mxu0 0
    %1888 = vmatpush1.bf16.xpose.msra.mxu0 %v1709
    %1889 = vmatprep.subr.bf16.mxu0 0
    %1890 = vmatpush1.bf16.xpose.msra.mxu0 0
    %1891 = vmatprep.subr.bf16.mxu0 0
    %1892 = vmatpush1.bf16.xpose.msra.mxu0 0
    %1893 = vmatprep.subr.bf16.mxu0 0
    %1894 = vmatpush1.bf16.xpose.msra.mxu0 0
    %1895 = vmatprep.subr.bf16.mxu0 0
    %1896 = vmatpush1.bf16.xpose.msra.mxu0 0
    %1897 = vmatprep.subr.bf16.mxu0 0
    %1898 = vmatpush1.bf16.xpose.msra.mxu0 0
    %1899 = vmatprep.subr.bf16.mxu0 0
    %1900 = vmatpush1.bf16.xpose.msra.mxu0 0
    %1901 = vmatprep.subr.bf16.mxu0 0
    %1902 = vmatpush1.bf16.xpose.msra.mxu0 0
    %1903 = vmatprep.subr.bf16.mxu0 0
    %1904 = vmatpush1.bf16.xpose.msra.mxu0 0
    %1905 = vmatprep.subr.bf16.mxu0 0
    %1906 = vmatpush1.bf16.xpose.msra.mxu0 0
    %1907 = vmatprep.subr.bf16.mxu0 0
    %1908 = vmatpush1.bf16.xpose.msra.mxu0 0
    %1909 = vmatprep.subr.bf16.mxu0 0
    %1910 = vmatpush1.bf16.xpose.msra.mxu0 0
    %1911 = vmatprep.subr.bf16.mxu0 0
    %1912 = vmatpush1.bf16.xpose.msra.mxu0 0
    %1913 = vmatprep.subr.bf16.mxu0 0
    %1914 = vmatpush1.bf16.xpose.msra.mxu0 0
    %1915 = vmatprep.subr.bf16.mxu0 0
    %1916 = vmatpush1.bf16.xpose.msra.mxu0 0
    %1917 = vmatprep.subr.bf16.mxu0 0
    %1918 = vmatpush1.bf16.xpose.msra.mxu0 0
    %1919 = vmatprep.mubr.bf16.mxu0 0
    %1920 = vmatmul.mubr.bf16.gmra.mrb[0].mxu0 %v1705
    %v1921 = vpop.f32.mrb[0].mxu0
    %v1922 = vadd.f32 0.0, %v1921
    %v1923 = vpop.f32.mrb[0].mxu0
    %v1924 = vpop.f32.mrb[0].mxu0
    %v1925 = vpop.f32.mrb[0].mxu0
    %1926 = vdwg.mxu0
    %1927 = vmatprep.subr.bf16.mxu0 0
    %1928 = vmatpush1.bf16.xpose.msra.mxu0 %v1710
    %1929 = vmatprep.subr.bf16.mxu0 0
    %1930 = vmatpush1.bf16.xpose.msra.mxu0 0
    %1931 = vmatprep.subr.bf16.mxu0 0
    %1932 = vmatpush1.bf16.xpose.msra.mxu0 0
    %1933 = vmatprep.subr.bf16.mxu0 0
    %1934 = vmatpush1.bf16.xpose.msra.mxu0 0
    %1935 = vmatprep.subr.bf16.mxu0 0
    %1936 = vmatpush1.bf16.xpose.msra.mxu0 0
    %1937 = vmatprep.subr.bf16.mxu0 0
    %1938 = vmatpush1.bf16.xpose.msra.mxu0 0
    %1939 = vmatprep.subr.bf16.mxu0 0
    %1940 = vmatpush1.bf16.xpose.msra.mxu0 0
    %1941 = vmatprep.subr.bf16.mxu0 0
    %1942 = vmatpush1.bf16.xpose.msra.mxu0 0
    %1943 = vmatprep.subr.bf16.mxu0 0
    %1944 = vmatpush1.bf16.xpose.msra.mxu0 0
    %1945 = vmatprep.subr.bf16.mxu0 0
    %1946 = vmatpush1.bf16.xpose.msra.mxu0 0
    %1947 = vmatprep.subr.bf16.mxu0 0
    %1948 = vmatpush1.bf16.xpose.msra.mxu0 0
    %1949 = vmatprep.subr.bf16.mxu0 0
    %1950 = vmatpush1.bf16.xpose.msra.mxu0 0
    %1951 = vmatprep.subr.bf16.mxu0 0
    %1952 = vmatpush1.bf16.xpose.msra.mxu0 0
    %1953 = vmatprep.subr.bf16.mxu0 0
    %1954 = vmatpush1.bf16.xpose.msra.mxu0 0
    %1955 = vmatprep.subr.bf16.mxu0 0
    %1956 = vmatpush1.bf16.xpose.msra.mxu0 0
    %1957 = vmatprep.subr.bf16.mxu0 0
    %1958 = vmatpush1.bf16.xpose.msra.mxu0 0
    %1959 = vmatprep.mubr.bf16.mxu0 0
    %1960 = vmatmul.mubr.bf16.gmra.mrb[0].mxu0 %v1706
    %v1961 = vpop.f32.mrb[0].mxu0
    %v1962 = vadd.f32 0.0, %v1961
    %v1963 = vpop.f32.mrb[0].mxu0
    %v1964 = vpop.f32.mrb[0].mxu0
    %v1965 = vpop.f32.mrb[0].mxu0
    %1966 = vdwg.mxu0
    %1967 = vmatprep.subr.bf16.mxu0 0
    %1968 = vmatpush1.bf16.xpose.msra.mxu0 %v1709
    %1969 = vmatprep.subr.bf16.mxu0 0
    %1970 = vmatpush1.bf16.xpose.msra.mxu0 0
    %1971 = vmatprep.subr.bf16.mxu0 0
    %1972 = vmatpush1.bf16.xpose.msra.mxu0 0
    %1973 = vmatprep.subr.bf16.mxu0 0
    %1974 = vmatpush1.bf16.xpose.msra.mxu0 0
    %1975 = vmatprep.subr.bf16.mxu0 0
    %1976 = vmatpush1.bf16.xpose.msra.mxu0 0
    %1977 = vmatprep.subr.bf16.mxu0 0
    %1978 = vmatpush1.bf16.xpose.msra.mxu0 0
    %1979 = vmatprep.subr.bf16.mxu0 0
    %1980 = vmatpush1.bf16.xpose.msra.mxu0 0
    %1981 = vmatprep.subr.bf16.mxu0 0
    %1982 = vmatpush1.bf16.xpose.msra.mxu0 0
    %1983 = vmatprep.subr.bf16.mxu0 0
    %1984 = vmatpush1.bf16.xpose.msra.mxu0 0
    %1985 = vmatprep.subr.bf16.mxu0 0
    %1986 = vmatpush1.bf16.xpose.msra.mxu0 0
    %1987 = vmatprep.subr.bf16.mxu0 0
    %1988 = vmatpush1.bf16.xpose.msra.mxu0 0
    %1989 = vmatprep.subr.bf16.mxu0 0
    %1990 = vmatpush1.bf16.xpose.msra.mxu0 0
    %1991 = vmatprep.subr.bf16.mxu0 0
    %1992 = vmatpush1.bf16.xpose.msra.mxu0 0
    %1993 = vmatprep.subr.bf16.mxu0 0
    %1994 = vmatpush1.bf16.xpose.msra.mxu0 0
    %1995 = vmatprep.subr.bf16.mxu0 0
    %1996 = vmatpush1.bf16.xpose.msra.mxu0 0
    %1997 = vmatprep.subr.bf16.mxu0 0
    %1998 = vmatpush1.bf16.xpose.msra.mxu0 0
    %1999 = vmatprep.mubr.bf16.mxu0 0
    %2000 = vmatmul.mubr.bf16.gmra.mrb[0].mxu0 %v1707
    %v2001 = vpop.f32.mrb[0].mxu0
    %v2002 = vadd.f32 0.0, %v2001
    %v2003 = vpop.f32.mrb[0].mxu0
    %v2004 = vpop.f32.mrb[0].mxu0
    %v2005 = vpop.f32.mrb[0].mxu0
    %2006 = vdwg.mxu0
    %2007 = vmatprep.subr.bf16.mxu0 0
    %2008 = vmatpush1.bf16.xpose.msra.mxu0 %v1710
    %2009 = vmatprep.subr.bf16.mxu0 0
    %2010 = vmatpush1.bf16.xpose.msra.mxu0 0
    %2011 = vmatprep.subr.bf16.mxu0 0
    %2012 = vmatpush1.bf16.xpose.msra.mxu0 0
    %2013 = vmatprep.subr.bf16.mxu0 0
    %2014 = vmatpush1.bf16.xpose.msra.mxu0 0
    %2015 = vmatprep.subr.bf16.mxu0 0
    %2016 = vmatpush1.bf16.xpose.msra.mxu0 0
    %2017 = vmatprep.subr.bf16.mxu0 0
    %2018 = vmatpush1.bf16.xpose.msra.mxu0 0
    %2019 = vmatprep.subr.bf16.mxu0 0
    %2020 = vmatpush1.bf16.xpose.msra.mxu0 0
    %2021 = vmatprep.subr.bf16.mxu0 0
    %2022 = vmatpush1.bf16.xpose.msra.mxu0 0
    %2023 = vmatprep.subr.bf16.mxu0 0
    %2024 = vmatpush1.bf16.xpose.msra.mxu0 0
    %2025 = vmatprep.subr.bf16.mxu0 0
    %2026 = vmatpush1.bf16.xpose.msra.mxu0 0
    %2027 = vmatprep.subr.bf16.mxu0 0
    %2028 = vmatpush1.bf16.xpose.msra.mxu0 0
    %2029 = vmatprep.subr.bf16.mxu0 0
    %2030 = vmatpush1.bf16.xpose.msra.mxu0 0
    %2031 = vmatprep.subr.bf16.mxu0 0
    %2032 = vmatpush1.bf16.xpose.msra.mxu0 0
    %2033 = vmatprep.subr.bf16.mxu0 0
    %2034 = vmatpush1.bf16.xpose.msra.mxu0 0
    %2035 = vmatprep.subr.bf16.mxu0 0
    %2036 = vmatpush1.bf16.xpose.msra.mxu0 0
    %2037 = vmatprep.subr.bf16.mxu0 0
    %2038 = vmatpush1.bf16.xpose.msra.mxu0 0
    %2039 = vmatprep.mubr.bf16.mxu0 0
    %2040 = vmatmul.mubr.bf16.gmra.mrb[0].mxu0 %v1708
    %v2041 = vpop.f32.mrb[0].mxu0
    %v2042 = vadd.f32 0.0, %v2041
    %v2043 = vpop.f32.mrb[0].mxu0
    %v2044 = vpop.f32.mrb[0].mxu0
    %v2045 = vpop.f32.mrb[0].mxu0
    %2046 = vdwg.mxu0
    %v2047 = vmul.f32 %v1762, 0.35355338
    %v2048 = vmul.f32 %v1802, 0.35355338
    %v2049 = vmul.f32 %v1842, 0.35355338
    %v2050 = vmul.f32 %v1882, 0.35355338
    %v2051 = vmul.f32 %v1922, 0.35355338
    %v2052 = vmul.f32 %v1962, 0.35355338
    %v2053 = vmul.f32 %v2002, 0.35355338
    %v2054 = vmul.f32 %v2042, 0.35355338
    %v2055 = vadd.f32 %v2047, %v117
    %v2056 = vadd.f32 %v2048, %v118
    %v2057 = vadd.f32 %v2049, %v119
    %v2058 = vadd.f32 %v2050, %v120
    %v2059 = vadd.f32 %v2051, %v121
    %v2060 = vadd.f32 %v2052, %v122
    %v2061 = vadd.f32 %v2053, %v123
    %v2062 = vadd.f32 %v2054, %v124
    %v2063 = vsel %vm655, %v2055, -inf
    %2064 = vmax.xlane.f32.xlu0 %v2063
    %v2065 = vpop.xlane.xlu0 %2064
    %v2066 = vsel %vm655, %v2056, -inf
    %2067 = vmax.xlane.f32.xlu0 %v2066
    %v2068 = vpop.xlane.xlu0 %2067
    %v2069 = vsel %vm655, %v2057, -inf
    %2070 = vmax.xlane.f32.xlu0 %v2069
    %v2071 = vpop.xlane.xlu0 %2070
    %v2072 = vsel %vm655, %v2058, -inf
    %2073 = vmax.xlane.f32.xlu0 %v2072
    %v2074 = vpop.xlane.xlu0 %2073
    %v2075 = vsel %vm655, %v2059, -inf
    %2076 = vmax.xlane.f32.xlu0 %v2075
    %v2077 = vpop.xlane.xlu0 %2076
    %v2078 = vsel %vm655, %v2060, -inf
    %2079 = vmax.xlane.f32.xlu0 %v2078
    %v2080 = vpop.xlane.xlu0 %2079
    %v2081 = vsel %vm655, %v2061, -inf
    %2082 = vmax.xlane.f32.xlu0 %v2081
    %v2083 = vpop.xlane.xlu0 %2082
    %v2084 = vsel %vm655, %v2062, -inf
    %2085 = vmax.xlane.f32.xlu0 %v2084
    %v2086 = vpop.xlane.xlu0 %2085
    %v2087 = vsub.f32 %v2055, %v2065
    %v2088 = vsub.f32 %v2056, %v2068
    %v2089 = vsub.f32 %v2057, %v2071
    %v2090 = vsub.f32 %v2058, %v2074
    %v2091 = vsub.f32 %v2059, %v2077
    %v2092 = vsub.f32 %v2060, %v2080
    %v2093 = vsub.f32 %v2061, %v2083
    %v2094 = vsub.f32 %v2062, %v2086
    %v2095 = vmul.f32 %v2087, 1.442695
    %v2096 = vpow.pop %v2095
    %v2097 = vmul.f32 %v2088, 1.442695
    %v2098 = vpow.pop %v2097
    %v2099 = vmul.f32 %v2089, 1.442695
    %v2100 = vpow.pop %v2099
    %v2101 = vmul.f32 %v2090, 1.442695
    %v2102 = vpow.pop %v2101
    %v2103 = vmul.f32 %v2091, 1.442695
    %v2104 = vpow.pop %v2103
    %v2105 = vmul.f32 %v2092, 1.442695
    %v2106 = vpow.pop %v2105
    %v2107 = vmul.f32 %v2093, 1.442695
    %v2108 = vpow.pop %v2107
    %v2109 = vmul.f32 %v2094, 1.442695
    %v2110 = vpow.pop %v2109
    %v2111 = vsel %vm655, %v2096, 0.0
    %2112 = vadd.xlane.f32.xlu0 %v2111
    %v2113 = vpop.xlane.xlu0 %2112
    %v2114 = vsel %vm655, %v2098, 0.0
    %2115 = vadd.xlane.f32.xlu0 %v2114
    %v2116 = vpop.xlane.xlu0 %2115
    %v2117 = vsel %vm655, %v2100, 0.0
    %2118 = vadd.xlane.f32.xlu0 %v2117
    %v2119 = vpop.xlane.xlu0 %2118
    %v2120 = vsel %vm655, %v2102, 0.0
    %2121 = vadd.xlane.f32.xlu0 %v2120
    %v2122 = vpop.xlane.xlu0 %2121
    %v2123 = vsel %vm655, %v2104, 0.0
    %2124 = vadd.xlane.f32.xlu0 %v2123
    %v2125 = vpop.xlane.xlu0 %2124
    %v2126 = vsel %vm655, %v2106, 0.0
    %2127 = vadd.xlane.f32.xlu0 %v2126
    %v2128 = vpop.xlane.xlu0 %2127
    %v2129 = vsel %vm655, %v2108, 0.0
    %2130 = vadd.xlane.f32.xlu0 %v2129
    %v2131 = vpop.xlane.xlu0 %2130
    %v2132 = vsel %vm655, %v2110, 0.0
    %2133 = vadd.xlane.f32.xlu0 %v2132
    %v2134 = vpop.xlane.xlu0 %2133
    %v2135 = vrcp.pop %v2113
    %v2136 = vrcp.pop %v2116
    %v2137 = vrcp.pop %v2119
    %v2138 = vrcp.pop %v2122
    %v2139 = vrcp.pop %v2125
    %v2140 = vrcp.pop %v2128
    %v2141 = vrcp.pop %v2131
    %v2142 = vrcp.pop %v2134
    %v2143 = vmul.f32 %v2096, %v2135
    %v2144 = vmul.f32 %v2098, %v2136
    %v2145 = vmul.f32 %v2100, %v2137
    %v2146 = vmul.f32 %v2102, %v2138
    %v2147 = vmul.f32 %v2104, %v2139
    %v2148 = vmul.f32 %v2106, %v2140
    %v2149 = vmul.f32 %v2108, %v2141
    %v2150 = vmul.f32 %v2110, %v2142
    %v2151 = vpack.c.bf16 %v2143, %v2143
    %v2152 = vpack.c.bf16 %v2144, %v2144
    %v2153 = vpack.c.bf16 %v2145, %v2145
    %v2154 = vpack.c.bf16 %v2146, %v2146
    %v2155 = vpack.c.bf16 %v2147, %v2147
    %v2156 = vpack.c.bf16 %v2148, %v2148
    %v2157 = vpack.c.bf16 %v2149, %v2149
    %v2158 = vpack.c.bf16 %v2150, %v2150
    %v2160 = vsel %vm655, %v2151, 0
    %v2163 = vsel %vm755, %v1719, 0
    %2165 = vmatprep.subr.bf16.mxu0 0
    %2166 = vmatpush1.bf16.msra.mxu0 %v2163
    %2167 = vmatprep.subr.bf16.mxu0 0
    %2168 = vmatpush1.bf16.msra.mxu0 0
    %2169 = vmatprep.subr.bf16.mxu0 0
    %2170 = vmatpush1.bf16.msra.mxu0 0
    %2171 = vmatprep.subr.bf16.mxu0 0
    %2172 = vmatpush1.bf16.msra.mxu0 0
    %2173 = vmatprep.subr.bf16.mxu0 0
    %2174 = vmatpush1.bf16.msra.mxu0 0
    %2175 = vmatprep.subr.bf16.mxu0 0
    %2176 = vmatpush1.bf16.msra.mxu0 0
    %2177 = vmatprep.subr.bf16.mxu0 0
    %2178 = vmatpush1.bf16.msra.mxu0 0
    %2179 = vmatprep.subr.bf16.mxu0 0
    %2180 = vmatpush1.bf16.msra.mxu0 0
    %2181 = vmatprep.subr.bf16.mxu0 0
    %2182 = vmatpush1.bf16.msra.mxu0 0
    %2183 = vmatprep.subr.bf16.mxu0 0
    %2184 = vmatpush1.bf16.msra.mxu0 0
    %2185 = vmatprep.subr.bf16.mxu0 0
    %2186 = vmatpush1.bf16.msra.mxu0 0
    %2187 = vmatprep.subr.bf16.mxu0 0
    %2188 = vmatpush1.bf16.msra.mxu0 0
    %2189 = vmatprep.subr.bf16.mxu0 0
    %2190 = vmatpush1.bf16.msra.mxu0 0
    %2191 = vmatprep.subr.bf16.mxu0 0
    %2192 = vmatpush1.bf16.msra.mxu0 0
    %2193 = vmatprep.subr.bf16.mxu0 0
    %2194 = vmatpush1.bf16.msra.mxu0 0
    %2195 = vmatprep.subr.bf16.mxu0 0
    %2196 = vmatpush1.bf16.msra.mxu0 0
    %2197 = vmatprep.mubr.bf16.mxu0 0
    %2198 = vmatmul.mubr.bf16.gmra.mrb[0].mxu0 %v2160
    %v2199 = vpop.f32.mrb[0].mxu0
    %v2200 = vadd.f32 0.0, %v2199
    %v2201 = vpop.f32.mrb[0].mxu0
    %v2202 = vpop.f32.mrb[0].mxu0
    %v2203 = vpop.f32.mrb[0].mxu0
    %2204 = vdwg.mxu0
    %v2206 = vsel %vm655, %v2152, 0
    %v2209 = vsel %vm755, %v1720, 0
    %2211 = vmatprep.subr.bf16.mxu0 0
    %2212 = vmatpush1.bf16.msra.mxu0 %v2209
    %2213 = vmatprep.subr.bf16.mxu0 0
    %2214 = vmatpush1.bf16.msra.mxu0 0
    %2215 = vmatprep.subr.bf16.mxu0 0
    %2216 = vmatpush1.bf16.msra.mxu0 0
    %2217 = vmatprep.subr.bf16.mxu0 0
    %2218 = vmatpush1.bf16.msra.mxu0 0
    %2219 = vmatprep.subr.bf16.mxu0 0
    %2220 = vmatpush1.bf16.msra.mxu0 0
    %2221 = vmatprep.subr.bf16.mxu0 0
    %2222 = vmatpush1.bf16.msra.mxu0 0
    %2223 = vmatprep.subr.bf16.mxu0 0
    %2224 = vmatpush1.bf16.msra.mxu0 0
    %2225 = vmatprep.subr.bf16.mxu0 0
    %2226 = vmatpush1.bf16.msra.mxu0 0
    %2227 = vmatprep.subr.bf16.mxu0 0
    %2228 = vmatpush1.bf16.msra.mxu0 0
    %2229 = vmatprep.subr.bf16.mxu0 0
    %2230 = vmatpush1.bf16.msra.mxu0 0
    %2231 = vmatprep.subr.bf16.mxu0 0
    %2232 = vmatpush1.bf16.msra.mxu0 0
    %2233 = vmatprep.subr.bf16.mxu0 0
    %2234 = vmatpush1.bf16.msra.mxu0 0
    %2235 = vmatprep.subr.bf16.mxu0 0
    %2236 = vmatpush1.bf16.msra.mxu0 0
    %2237 = vmatprep.subr.bf16.mxu0 0
    %2238 = vmatpush1.bf16.msra.mxu0 0
    %2239 = vmatprep.subr.bf16.mxu0 0
    %2240 = vmatpush1.bf16.msra.mxu0 0
    %2241 = vmatprep.subr.bf16.mxu0 0
    %2242 = vmatpush1.bf16.msra.mxu0 0
    %2243 = vmatprep.mubr.bf16.mxu0 0
    %2244 = vmatmul.mubr.bf16.gmra.mrb[0].mxu0 %v2206
    %v2245 = vpop.f32.mrb[0].mxu0
    %v2246 = vadd.f32 0.0, %v2245
    %v2247 = vpop.f32.mrb[0].mxu0
    %v2248 = vpop.f32.mrb[0].mxu0
    %v2249 = vpop.f32.mrb[0].mxu0
    %2250 = vdwg.mxu0
    %v2252 = vsel %vm655, %v2153, 0
    %v2255 = vsel %vm755, %v1721, 0
    %2257 = vmatprep.subr.bf16.mxu0 0
    %2258 = vmatpush1.bf16.msra.mxu0 %v2255
    %2259 = vmatprep.subr.bf16.mxu0 0
    %2260 = vmatpush1.bf16.msra.mxu0 0
    %2261 = vmatprep.subr.bf16.mxu0 0
    %2262 = vmatpush1.bf16.msra.mxu0 0
    %2263 = vmatprep.subr.bf16.mxu0 0
    %2264 = vmatpush1.bf16.msra.mxu0 0
    %2265 = vmatprep.subr.bf16.mxu0 0
    %2266 = vmatpush1.bf16.msra.mxu0 0
    %2267 = vmatprep.subr.bf16.mxu0 0
    %2268 = vmatpush1.bf16.msra.mxu0 0
    %2269 = vmatprep.subr.bf16.mxu0 0
    %2270 = vmatpush1.bf16.msra.mxu0 0
    %2271 = vmatprep.subr.bf16.mxu0 0
    %2272 = vmatpush1.bf16.msra.mxu0 0
    %2273 = vmatprep.subr.bf16.mxu0 0
    %2274 = vmatpush1.bf16.msra.mxu0 0
    %2275 = vmatprep.subr.bf16.mxu0 0
    %2276 = vmatpush1.bf16.msra.mxu0 0
    %2277 = vmatprep.subr.bf16.mxu0 0
    %2278 = vmatpush1.bf16.msra.mxu0 0
    %2279 = vmatprep.subr.bf16.mxu0 0
    %2280 = vmatpush1.bf16.msra.mxu0 0
    %2281 = vmatprep.subr.bf16.mxu0 0
    %2282 = vmatpush1.bf16.msra.mxu0 0
    %2283 = vmatprep.subr.bf16.mxu0 0
    %2284 = vmatpush1.bf16.msra.mxu0 0
    %2285 = vmatprep.subr.bf16.mxu0 0
    %2286 = vmatpush1.bf16.msra.mxu0 0
    %2287 = vmatprep.subr.bf16.mxu0 0
    %2288 = vmatpush1.bf16.msra.mxu0 0
    %2289 = vmatprep.mubr.bf16.mxu0 0
    %2290 = vmatmul.mubr.bf16.gmra.mrb[0].mxu0 %v2252
    %v2291 = vpop.f32.mrb[0].mxu0
    %v2292 = vadd.f32 0.0, %v2291
    %v2293 = vpop.f32.mrb[0].mxu0
    %v2294 = vpop.f32.mrb[0].mxu0
    %v2295 = vpop.f32.mrb[0].mxu0
    %2296 = vdwg.mxu0
    %v2298 = vsel %vm655, %v2154, 0
    %v2301 = vsel %vm755, %v1722, 0
    %2303 = vmatprep.subr.bf16.mxu0 0
    %2304 = vmatpush1.bf16.msra.mxu0 %v2301
    %2305 = vmatprep.subr.bf16.mxu0 0
    %2306 = vmatpush1.bf16.msra.mxu0 0
    %2307 = vmatprep.subr.bf16.mxu0 0
    %2308 = vmatpush1.bf16.msra.mxu0 0
    %2309 = vmatprep.subr.bf16.mxu0 0
    %2310 = vmatpush1.bf16.msra.mxu0 0
    %2311 = vmatprep.subr.bf16.mxu0 0
    %2312 = vmatpush1.bf16.msra.mxu0 0
    %2313 = vmatprep.subr.bf16.mxu0 0
    %2314 = vmatpush1.bf16.msra.mxu0 0
    %2315 = vmatprep.subr.bf16.mxu0 0
    %2316 = vmatpush1.bf16.msra.mxu0 0
    %2317 = vmatprep.subr.bf16.mxu0 0
    %2318 = vmatpush1.bf16.msra.mxu0 0
    %2319 = vmatprep.subr.bf16.mxu0 0
    %2320 = vmatpush1.bf16.msra.mxu0 0
    %2321 = vmatprep.subr.bf16.mxu0 0
    %2322 = vmatpush1.bf16.msra.mxu0 0
    %2323 = vmatprep.subr.bf16.mxu0 0
    %2324 = vmatpush1.bf16.msra.mxu0 0
    %2325 = vmatprep.subr.bf16.mxu0 0
    %2326 = vmatpush1.bf16.msra.mxu0 0
    %2327 = vmatprep.subr.bf16.mxu0 0
    %2328 = vmatpush1.bf16.msra.mxu0 0
    %2329 = vmatprep.subr.bf16.mxu0 0
    %2330 = vmatpush1.bf16.msra.mxu0 0
    %2331 = vmatprep.subr.bf16.mxu0 0
    %2332 = vmatpush1.bf16.msra.mxu0 0
    %2333 = vmatprep.subr.bf16.mxu0 0
    %2334 = vmatpush1.bf16.msra.mxu0 0
    %2335 = vmatprep.mubr.bf16.mxu0 0
    %2336 = vmatmul.mubr.bf16.gmra.mrb[0].mxu0 %v2298
    %v2337 = vpop.f32.mrb[0].mxu0
    %v2338 = vadd.f32 0.0, %v2337
    %v2339 = vpop.f32.mrb[0].mxu0
    %v2340 = vpop.f32.mrb[0].mxu0
    %v2341 = vpop.f32.mrb[0].mxu0
    %2342 = vdwg.mxu0
    %v2344 = vsel %vm655, %v2155, 0
    %v2347 = vsel %vm755, %v1723, 0
    %2349 = vmatprep.subr.bf16.mxu0 0
    %2350 = vmatpush1.bf16.msra.mxu0 %v2347
    %2351 = vmatprep.subr.bf16.mxu0 0
    %2352 = vmatpush1.bf16.msra.mxu0 0
    %2353 = vmatprep.subr.bf16.mxu0 0
    %2354 = vmatpush1.bf16.msra.mxu0 0
    %2355 = vmatprep.subr.bf16.mxu0 0
    %2356 = vmatpush1.bf16.msra.mxu0 0
    %2357 = vmatprep.subr.bf16.mxu0 0
    %2358 = vmatpush1.bf16.msra.mxu0 0
    %2359 = vmatprep.subr.bf16.mxu0 0
    %2360 = vmatpush1.bf16.msra.mxu0 0
    %2361 = vmatprep.subr.bf16.mxu0 0
    %2362 = vmatpush1.bf16.msra.mxu0 0
    %2363 = vmatprep.subr.bf16.mxu0 0
    %2364 = vmatpush1.bf16.msra.mxu0 0
    %2365 = vmatprep.subr.bf16.mxu0 0
    %2366 = vmatpush1.bf16.msra.mxu0 0
    %2367 = vmatprep.subr.bf16.mxu0 0
    %2368 = vmatpush1.bf16.msra.mxu0 0
    %2369 = vmatprep.subr.bf16.mxu0 0
    %2370 = vmatpush1.bf16.msra.mxu0 0
    %2371 = vmatprep.subr.bf16.mxu0 0
    %2372 = vmatpush1.bf16.msra.mxu0 0
    %2373 = vmatprep.subr.bf16.mxu0 0
    %2374 = vmatpush1.bf16.msra.mxu0 0
    %2375 = vmatprep.subr.bf16.mxu0 0
    %2376 = vmatpush1.bf16.msra.mxu0 0
    %2377 = vmatprep.subr.bf16.mxu0 0
    %2378 = vmatpush1.bf16.msra.mxu0 0
    %2379 = vmatprep.subr.bf16.mxu0 0
    %2380 = vmatpush1.bf16.msra.mxu0 0
    %2381 = vmatprep.mubr.bf16.mxu0 0
    %2382 = vmatmul.mubr.bf16.gmra.mrb[0].mxu0 %v2344
    %v2383 = vpop.f32.mrb[0].mxu0
    %v2384 = vadd.f32 0.0, %v2383
    %v2385 = vpop.f32.mrb[0].mxu0
    %v2386 = vpop.f32.mrb[0].mxu0
    %v2387 = vpop.f32.mrb[0].mxu0
    %2388 = vdwg.mxu0
    %v2390 = vsel %vm655, %v2156, 0
    %v2393 = vsel %vm755, %v1724, 0
    %2395 = vmatprep.subr.bf16.mxu0 0
    %2396 = vmatpush1.bf16.msra.mxu0 %v2393
    %2397 = vmatprep.subr.bf16.mxu0 0
    %2398 = vmatpush1.bf16.msra.mxu0 0
    %2399 = vmatprep.subr.bf16.mxu0 0
    %2400 = vmatpush1.bf16.msra.mxu0 0
    %2401 = vmatprep.subr.bf16.mxu0 0
    %2402 = vmatpush1.bf16.msra.mxu0 0
    %2403 = vmatprep.subr.bf16.mxu0 0
    %2404 = vmatpush1.bf16.msra.mxu0 0
    %2405 = vmatprep.subr.bf16.mxu0 0
    %2406 = vmatpush1.bf16.msra.mxu0 0
    %2407 = vmatprep.subr.bf16.mxu0 0
    %2408 = vmatpush1.bf16.msra.mxu0 0
    %2409 = vmatprep.subr.bf16.mxu0 0
    %2410 = vmatpush1.bf16.msra.mxu0 0
    %2411 = vmatprep.subr.bf16.mxu0 0
    %2412 = vmatpush1.bf16.msra.mxu0 0
    %2413 = vmatprep.subr.bf16.mxu0 0
    %2414 = vmatpush1.bf16.msra.mxu0 0
    %2415 = vmatprep.subr.bf16.mxu0 0
    %2416 = vmatpush1.bf16.msra.mxu0 0
    %2417 = vmatprep.subr.bf16.mxu0 0
    %2418 = vmatpush1.bf16.msra.mxu0 0
    %2419 = vmatprep.subr.bf16.mxu0 0
    %2420 = vmatpush1.bf16.msra.mxu0 0
    %2421 = vmatprep.subr.bf16.mxu0 0
    %2422 = vmatpush1.bf16.msra.mxu0 0
    %2423 = vmatprep.subr.bf16.mxu0 0
    %2424 = vmatpush1.bf16.msra.mxu0 0
    %2425 = vmatprep.subr.bf16.mxu0 0
    %2426 = vmatpush1.bf16.msra.mxu0 0
    %2427 = vmatprep.mubr.bf16.mxu0 0
    %2428 = vmatmul.mubr.bf16.gmra.mrb[0].mxu0 %v2390
    %v2429 = vpop.f32.mrb[0].mxu0
    %v2430 = vadd.f32 0.0, %v2429
    %v2431 = vpop.f32.mrb[0].mxu0
    %v2432 = vpop.f32.mrb[0].mxu0
    %v2433 = vpop.f32.mrb[0].mxu0
    %2434 = vdwg.mxu0
    %v2436 = vsel %vm655, %v2157, 0
    %v2439 = vsel %vm755, %v1725, 0
    %2441 = vmatprep.subr.bf16.mxu0 0
    %2442 = vmatpush1.bf16.msra.mxu0 %v2439
    %2443 = vmatprep.subr.bf16.mxu0 0
    %2444 = vmatpush1.bf16.msra.mxu0 0
    %2445 = vmatprep.subr.bf16.mxu0 0
    %2446 = vmatpush1.bf16.msra.mxu0 0
    %2447 = vmatprep.subr.bf16.mxu0 0
    %2448 = vmatpush1.bf16.msra.mxu0 0
    %2449 = vmatprep.subr.bf16.mxu0 0
    %2450 = vmatpush1.bf16.msra.mxu0 0
    %2451 = vmatprep.subr.bf16.mxu0 0
    %2452 = vmatpush1.bf16.msra.mxu0 0
    %2453 = vmatprep.subr.bf16.mxu0 0
    %2454 = vmatpush1.bf16.msra.mxu0 0
    %2455 = vmatprep.subr.bf16.mxu0 0
    %2456 = vmatpush1.bf16.msra.mxu0 0
    %2457 = vmatprep.subr.bf16.mxu0 0
    %2458 = vmatpush1.bf16.msra.mxu0 0
    %2459 = vmatprep.subr.bf16.mxu0 0
    %2460 = vmatpush1.bf16.msra.mxu0 0
    %2461 = vmatprep.subr.bf16.mxu0 0
    %2462 = vmatpush1.bf16.msra.mxu0 0
    %2463 = vmatprep.subr.bf16.mxu0 0
    %2464 = vmatpush1.bf16.msra.mxu0 0
    %2465 = vmatprep.subr.bf16.mxu0 0
    %2466 = vmatpush1.bf16.msra.mxu0 0
    %2467 = vmatprep.subr.bf16.mxu0 0
    %2468 = vmatpush1.bf16.msra.mxu0 0
    %2469 = vmatprep.subr.bf16.mxu0 0
    %2470 = vmatpush1.bf16.msra.mxu0 0
    %2471 = vmatprep.subr.bf16.mxu0 0
    %2472 = vmatpush1.bf16.msra.mxu0 0
    %2473 = vmatprep.mubr.bf16.mxu0 0
    %2474 = vmatmul.mubr.bf16.gmra.mrb[0].mxu0 %v2436
    %v2475 = vpop.f32.mrb[0].mxu0
    %v2476 = vadd.f32 0.0, %v2475
    %v2477 = vpop.f32.mrb[0].mxu0
    %v2478 = vpop.f32.mrb[0].mxu0
    %v2479 = vpop.f32.mrb[0].mxu0
    %2480 = vdwg.mxu0
    %v2482 = vsel %vm655, %v2158, 0
    %v2485 = vsel %vm755, %v1726, 0
    %2487 = vmatprep.subr.bf16.mxu0 0
    %2488 = vmatpush1.bf16.msra.mxu0 %v2485
    %2489 = vmatprep.subr.bf16.mxu0 0
    %2490 = vmatpush1.bf16.msra.mxu0 0
    %2491 = vmatprep.subr.bf16.mxu0 0
    %2492 = vmatpush1.bf16.msra.mxu0 0
    %2493 = vmatprep.subr.bf16.mxu0 0
    %2494 = vmatpush1.bf16.msra.mxu0 0
    %2495 = vmatprep.subr.bf16.mxu0 0
    %2496 = vmatpush1.bf16.msra.mxu0 0
    %2497 = vmatprep.subr.bf16.mxu0 0
    %2498 = vmatpush1.bf16.msra.mxu0 0
    %2499 = vmatprep.subr.bf16.mxu0 0
    %2500 = vmatpush1.bf16.msra.mxu0 0
    %2501 = vmatprep.subr.bf16.mxu0 0
    %2502 = vmatpush1.bf16.msra.mxu0 0
    %2503 = vmatprep.subr.bf16.mxu0 0
    %2504 = vmatpush1.bf16.msra.mxu0 0
    %2505 = vmatprep.subr.bf16.mxu0 0
    %2506 = vmatpush1.bf16.msra.mxu0 0
    %2507 = vmatprep.subr.bf16.mxu0 0
    %2508 = vmatpush1.bf16.msra.mxu0 0
    %2509 = vmatprep.subr.bf16.mxu0 0
    %2510 = vmatpush1.bf16.msra.mxu0 0
    %2511 = vmatprep.subr.bf16.mxu0 0
    %2512 = vmatpush1.bf16.msra.mxu0 0
    %2513 = vmatprep.subr.bf16.mxu0 0
    %2514 = vmatpush1.bf16.msra.mxu0 0
    %2515 = vmatprep.subr.bf16.mxu0 0
    %2516 = vmatpush1.bf16.msra.mxu0 0
    %2517 = vmatprep.subr.bf16.mxu0 0
    %2518 = vmatpush1.bf16.msra.mxu0 0
    %2519 = vmatprep.mubr.bf16.mxu0 0
    %2520 = vmatmul.mubr.bf16.gmra.mrb[0].mxu0 %v2482
    %v2521 = vpop.f32.mrb[0].mxu0
    %v2522 = vadd.f32 0.0, %v2521
    %v2523 = vpop.f32.mrb[0].mxu0
    %v2524 = vpop.f32.mrb[0].mxu0
    %v2525 = vpop.f32.mrb[0].mxu0
    %2526 = vdwg.mxu0
    %v2527 = vadd.f32 %v2200, %v2292
    %v2528 = vadd.f32 %v2527, %v2384
    %v2529 = vadd.f32 %v2528, %v2476
    %v2530 = vadd.f32 %v2246, %v2338
    %v2531 = vadd.f32 %v2530, %v2430
    %v2532 = vadd.f32 %v2531, %v2522
    %s2533 = scalar_lea.vmem %s4, 64
    %v2534 = vld [vmem:[%s2533] sm:$0xf]
    %v2535 = vld [vmem:[%s2533 + $0x4] sm:$0xf]
    %v2536 = vld [vmem:[%s2533 + $0x8] sm:$0xf]
    %v2537 = vld [vmem:[%s2533 + $0xc] sm:$0xf]
    %v2538 = vld [vmem:[%s2533 + $0x10] sm:$0xf]
    %v2539 = vld [vmem:[%s2533 + $0x14] sm:$0xf]
    %v2540 = vld [vmem:[%s2533 + $0x18] sm:$0xf]
    %v2541 = vld [vmem:[%s2533 + $0x1c] sm:$0xf]
    %v2542 = vld [vmem:[%s2533 + $0x20] sm:$0xf]
    %v2543 = vld [vmem:[%s2533 + $0x24] sm:$0xf]
    %v2544 = vld [vmem:[%s2533 + $0x28] sm:$0xf]
    %v2545 = vld [vmem:[%s2533 + $0x2c] sm:$0xf]
    %v2546 = vld [vmem:[%s2533 + $0x30] sm:$0xf]
    %v2547 = vld [vmem:[%s2533 + $0x34] sm:$0xf]
    %v2548 = vld [vmem:[%s2533 + $0x38] sm:$0xf]
    %v2549 = vld [vmem:[%s2533 + $0x3c] sm:$0xf]
    %v2550 = vpack.c.bf16 %v2532, %v2529
    %v2551 = vlaneseq
    %v2552 = vshrl.u32 %v2551, 7
    %v2553 = vsub.s32 3, %v2552
    %v2554 = vrot.slane %v1552, %v2553
    %v2571 = vunpack.c.l.b16 %v2534
    %v2572 = vunpack.c.l.b16 %v2535
    %v2573 = vunpack.c.l.b16 %v2536
    %v2574 = vunpack.c.l.b16 %v2537
    %v2575 = vunpack.c.l.b16 %v2538
    %v2576 = vunpack.c.l.b16 %v2539
    %v2577 = vunpack.c.l.b16 %v2540
    %v2578 = vunpack.c.l.b16 %v2541
    %v2579 = vunpack.c.l.b16 %v2542
    %v2580 = vunpack.c.l.b16 %v2543
    %v2581 = vunpack.c.l.b16 %v2544
    %v2582 = vunpack.c.l.b16 %v2545
    %v2583 = vunpack.c.l.b16 %v2546
    %v2584 = vunpack.c.l.b16 %v2547
    %v2585 = vunpack.c.l.b16 %v2548
    %v2586 = vunpack.c.l.b16 %v2549
    %v2587 = vpack.c.b16 %v2572, %v2571
    %v2588 = vpack.c.b16 %v2574, %v2573
    %v2589 = vpack.c.b16 %v2576, %v2575
    %v2590 = vpack.c.b16 %v2578, %v2577
    %v2591 = vpack.c.b16 %v2580, %v2579
    %v2592 = vpack.c.b16 %v2582, %v2581
    %v2593 = vpack.c.b16 %v2584, %v2583
    %v2594 = vpack.c.b16 %v2586, %v2585
    %2603 = vmatprep.subr.bf16.mxu0 0
    %2604 = vmatpush1.bf16.msra.mxu0 %v2587
    %2605 = vmatprep.subr.bf16.mxu0 0
    %2606 = vmatpush1.bf16.msra.mxu0 %v2588
    %2607 = vmatprep.subr.bf16.mxu0 0
    %2608 = vmatpush1.bf16.msra.mxu0 %v2589
    %2609 = vmatprep.subr.bf16.mxu0 0
    %2610 = vmatpush1.bf16.msra.mxu0 %v2590
    %2611 = vmatprep.subr.bf16.mxu0 0
    %2612 = vmatpush1.bf16.msra.mxu0 %v2591
    %2613 = vmatprep.subr.bf16.mxu0 0
    %2614 = vmatpush1.bf16.msra.mxu0 %v2592
    %2615 = vmatprep.subr.bf16.mxu0 0
    %2616 = vmatpush1.bf16.msra.mxu0 %v2593
    %2617 = vmatprep.subr.bf16.mxu0 0
    %2618 = vmatpush1.bf16.msra.mxu0 %v2594
    %2619 = vmatprep.subr.bf16.mxu0 0
    %2620 = vmatpush1.bf16.msra.mxu0 0
    %2621 = vmatprep.subr.bf16.mxu0 0
    %2622 = vmatpush1.bf16.msra.mxu0 0
    %2623 = vmatprep.subr.bf16.mxu0 0
    %2624 = vmatpush1.bf16.msra.mxu0 0
    %2625 = vmatprep.subr.bf16.mxu0 0
    %2626 = vmatpush1.bf16.msra.mxu0 0
    %2627 = vmatprep.subr.bf16.mxu0 0
    %2628 = vmatpush1.bf16.msra.mxu0 0
    %2629 = vmatprep.subr.bf16.mxu0 0
    %2630 = vmatpush1.bf16.msra.mxu0 0
    %2631 = vmatprep.subr.bf16.mxu0 0
    %2632 = vmatpush1.bf16.msra.mxu0 0
    %2633 = vmatprep.subr.bf16.mxu0 0
    %2634 = vmatpush1.bf16.msra.mxu0 0
    %2635 = vmatprep.mubr.bf16.mxu0 0
    %2636 = vmatmul.mubr.bf16.gmra.mrb[0].mxu0 %v2550
    %v2637 = vpop.f32.mrb[0].mxu0
    %v2638 = vadd.f32 %v2554, %v2637
    %v2639 = vpop.f32.mrb[0].mxu0
    %v2640 = vpop.f32.mrb[0].mxu0
    %v2641 = vadd.f32 %v2554, %v2640
    %v2642 = vpop.f32.mrb[0].mxu0
    %2643 = vdwg.mxu0
    %v2644 = vadd.f32 %v1549, %v2638
    %v2645 = vadd.f32 %v1550, %v2641
    %2646 = vadd.xlane.f32.xlu0 %v2644
    %v2647 = vpop.xlane.xlu0 %2646
    %2648 = vadd.xlane.f32.xlu0 %v2645
    %v2649 = vpop.xlane.xlu0 %2648
    %v2650 = vmul.f32 %v2647, 0.03125
    %v2651 = vmul.f32 %v2649, 0.03125
    %v2652 = vsub.f32 %v2644, %v2650
    %v2653 = vsub.f32 %v2645, %v2651
    %v2654 = vmul.f32 %v2652, %v88
    %v2655 = vmul.f32 %v2653, %v88
    %v2656 = vmul.f32 %v2654, %v2654
    %v2657 = vmul.f32 %v2655, %v2655
    %2658 = vadd.xlane.f32.xlu0 %v2656
    %v2659 = vpop.xlane.xlu0 %2658
    %2660 = vadd.xlane.f32.xlu0 %v2657
    %v2661 = vpop.xlane.xlu0 %2660
    %v2662 = vmul.f32 %v2659, 0.03125
    %v2663 = vmul.f32 %v2661, 0.03125
    %v2664 = vadd.f32 %v2662, 1e-12
    %v2665 = vadd.f32 %v2663, 1e-12
    %v2666 = vrsqrt.pop %v2664
    %v2667 = vrsqrt.pop %v2665
    %v2668 = vmul.f32 %v2654, %v2666
    %v2669 = vmul.f32 %v2655, %v2667
    %v2670 = vlaneseq
    %v2671 = vshrl.u32 %v2670, 7
    %v2672 = vsub.s32 4, %v2671
    %v2673 = vrot.slane %v1552, %v2672
    %v2674 = vmul.f32 %v2668, %v2673
    %v2675 = vmul.f32 %v2669, %v2673
    %v2676 = vlaneseq
    %v2677 = vshrl.u32 %v2676, 7
    %v2678 = vsub.s32 5, %v2677
    %v2679 = vrot.slane %v1552, %v2678
    %v2680 = vadd.f32 %v2674, %v2679
    %v2681 = vadd.f32 %v2675, %v2679
    %s2682 = scalar_lea.vmem %s5, 64
    %v2683 = vld [vmem:[%s2682] sm:$0xf]
    %v2684 = vld [vmem:[%s2682 + $0x4] sm:$0xf]
    %v2685 = vld [vmem:[%s2682 + $0x8] sm:$0xf]
    %v2686 = vld [vmem:[%s2682 + $0xc] sm:$0xf]
    %v2687 = vld [vmem:[%s2682 + $0x10] sm:$0xf]
    %v2688 = vld [vmem:[%s2682 + $0x14] sm:$0xf]
    %v2689 = vld [vmem:[%s2682 + $0x18] sm:$0xf]
    %v2690 = vld [vmem:[%s2682 + $0x1c] sm:$0xf]
    %v2691 = vld [vmem:[%s2682 + $0x20] sm:$0xf]
    %v2692 = vld [vmem:[%s2682 + $0x24] sm:$0xf]
    %v2693 = vld [vmem:[%s2682 + $0x28] sm:$0xf]
    %v2694 = vld [vmem:[%s2682 + $0x2c] sm:$0xf]
    %v2695 = vld [vmem:[%s2682 + $0x30] sm:$0xf]
    %v2696 = vld [vmem:[%s2682 + $0x34] sm:$0xf]
    %v2697 = vld [vmem:[%s2682 + $0x38] sm:$0xf]
    %v2698 = vld [vmem:[%s2682 + $0x3c] sm:$0xf]
    %v2699 = vpack.c.bf16 %v2681, %v2680
    %v2700 = vlaneseq
    %v2701 = vshrl.u32 %v2700, 7
    %v2702 = vsub.s32 6, %v2701
    %v2703 = vrot.slane %v1552, %v2702
    %v2720 = vunpack.c.l.b16 %v2683
    %v2721 = vunpack.c.l.b16 %v2684
    %v2722 = vunpack.c.l.b16 %v2685
    %v2723 = vunpack.c.l.b16 %v2686
    %v2724 = vunpack.c.l.b16 %v2687
    %v2725 = vunpack.c.l.b16 %v2688
    %v2726 = vunpack.c.l.b16 %v2689
    %v2727 = vunpack.c.l.b16 %v2690
    %v2728 = vunpack.c.l.b16 %v2691
    %v2729 = vunpack.c.l.b16 %v2692
    %v2730 = vunpack.c.l.b16 %v2693
    %v2731 = vunpack.c.l.b16 %v2694
    %v2732 = vunpack.c.l.b16 %v2695
    %v2733 = vunpack.c.l.b16 %v2696
    %v2734 = vunpack.c.l.b16 %v2697
    %v2735 = vunpack.c.l.b16 %v2698
    %v2736 = vpack.c.b16 %v2721, %v2720
    %v2737 = vpack.c.b16 %v2723, %v2722
    %v2738 = vpack.c.b16 %v2725, %v2724
    %v2739 = vpack.c.b16 %v2727, %v2726
    %v2740 = vpack.c.b16 %v2729, %v2728
    %v2741 = vpack.c.b16 %v2731, %v2730
    %v2742 = vpack.c.b16 %v2733, %v2732
    %v2743 = vpack.c.b16 %v2735, %v2734
    %2752 = vmatprep.subr.bf16.mxu0 0
    %2753 = vmatpush1.bf16.msra.mxu0 %v2736
    %2754 = vmatprep.subr.bf16.mxu0 0
    %2755 = vmatpush1.bf16.msra.mxu0 %v2737
    %2756 = vmatprep.subr.bf16.mxu0 0
    %2757 = vmatpush1.bf16.msra.mxu0 %v2738
    %2758 = vmatprep.subr.bf16.mxu0 0
    %2759 = vmatpush1.bf16.msra.mxu0 %v2739
    %2760 = vmatprep.subr.bf16.mxu0 0
    %2761 = vmatpush1.bf16.msra.mxu0 %v2740
    %2762 = vmatprep.subr.bf16.mxu0 0
    %2763 = vmatpush1.bf16.msra.mxu0 %v2741
    %2764 = vmatprep.subr.bf16.mxu0 0
    %2765 = vmatpush1.bf16.msra.mxu0 %v2742
    %2766 = vmatprep.subr.bf16.mxu0 0
    %2767 = vmatpush1.bf16.msra.mxu0 %v2743
    %2768 = vmatprep.subr.bf16.mxu0 0
    %2769 = vmatpush1.bf16.msra.mxu0 0
    %2770 = vmatprep.subr.bf16.mxu0 0
    %2771 = vmatpush1.bf16.msra.mxu0 0
    %2772 = vmatprep.subr.bf16.mxu0 0
    %2773 = vmatpush1.bf16.msra.mxu0 0
    %2774 = vmatprep.subr.bf16.mxu0 0
    %2775 = vmatpush1.bf16.msra.mxu0 0
    %2776 = vmatprep.subr.bf16.mxu0 0
    %2777 = vmatpush1.bf16.msra.mxu0 0
    %2778 = vmatprep.subr.bf16.mxu0 0
    %2779 = vmatpush1.bf16.msra.mxu0 0
    %2780 = vmatprep.subr.bf16.mxu0 0
    %2781 = vmatpush1.bf16.msra.mxu0 0
    %2782 = vmatprep.subr.bf16.mxu0 0
    %2783 = vmatpush1.bf16.msra.mxu0 0
    %2784 = vmatprep.mubr.bf16.mxu0 0
    %2785 = vmatmul.mubr.bf16.gmra.mrb[0].mxu0 %v2699
    %v2786 = vpop.f32.mrb[0].mxu0
    %v2787 = vadd.f32 %v2703, %v2786
    %v2788 = vpop.f32.mrb[0].mxu0
    %v2789 = vpop.f32.mrb[0].mxu0
    %v2790 = vadd.f32 %v2703, %v2789
    %v2791 = vpop.f32.mrb[0].mxu0
    %2792 = vdwg.mxu0
    %v2793 = vmul.f32 %v2787, 0.5
    %v2794 = vmul.f32 %v2790, 0.5
    %v2795 = vmul.f32 %v2787, 0.044715
    %v2796 = vmul.f32 %v2790, 0.044715
    %v2797 = vmul.f32 %v2795, %v2787
    %v2798 = vmul.f32 %v2796, %v2790
    %v2799 = vmul.f32 %v2797, %v2787
    %v2800 = vmul.f32 %v2798, %v2790
    %v2801 = vadd.f32 %v2787, %v2799
    %v2802 = vadd.f32 %v2790, %v2800
    %v2803 = vmul.f32 %v2801, 0.7978846
    %v2804 = vmul.f32 %v2802, 0.7978846
    %v2805 = vtanh.pop %v2803
    %v2806 = vtanh.pop %v2804
    %v2807 = vadd.f32 %v2805, 1.0
    %v2808 = vadd.f32 %v2806, 1.0
    %v2809 = vmul.f32 %v2793, %v2807
    %v2810 = vmul.f32 %v2794, %v2808
    %s2811 = scalar_lea.vmem [#allocation2], 64
    %v2812 = vld [vmem:[%s2811] sm:$0xf]
    %v2813 = vld [vmem:[%s2811 + $0x4] sm:$0xf]
    %v2814 = vld [vmem:[%s2811 + $0x8] sm:$0xf]
    %v2815 = vld [vmem:[%s2811 + $0xc] sm:$0xf]
    %v2816 = vld [vmem:[%s2811 + $0x10] sm:$0xf]
    %v2817 = vld [vmem:[%s2811 + $0x14] sm:$0xf]
    %v2818 = vld [vmem:[%s2811 + $0x18] sm:$0xf]
    %v2819 = vld [vmem:[%s2811 + $0x1c] sm:$0xf]
    %v2820 = vld [vmem:[%s2811 + $0x20] sm:$0xf]
    %v2821 = vld [vmem:[%s2811 + $0x24] sm:$0xf]
    %v2822 = vld [vmem:[%s2811 + $0x28] sm:$0xf]
    %v2823 = vld [vmem:[%s2811 + $0x2c] sm:$0xf]
    %v2824 = vld [vmem:[%s2811 + $0x30] sm:$0xf]
    %v2825 = vld [vmem:[%s2811 + $0x34] sm:$0xf]
    %v2826 = vld [vmem:[%s2811 + $0x38] sm:$0xf]
    %v2827 = vld [vmem:[%s2811 + $0x3c] sm:$0xf]
    %v2828 = vpack.c.bf16 %v2810, %v2809
    %v2829 = vlaneseq
    %v2830 = vshrl.u32 %v2829, 7
    %v2831 = vsub.s32 7, %v2830
    %v2832 = vrot.slane %v1552, %v2831
    %v2849 = vunpack.c.l.b16 %v2812
    %v2850 = vunpack.c.l.b16 %v2813
    %v2851 = vunpack.c.l.b16 %v2814
    %v2852 = vunpack.c.l.b16 %v2815
    %v2853 = vunpack.c.l.b16 %v2816
    %v2854 = vunpack.c.l.b16 %v2817
    %v2855 = vunpack.c.l.b16 %v2818
    %v2856 = vunpack.c.l.b16 %v2819
    %v2857 = vunpack.c.l.b16 %v2820
    %v2858 = vunpack.c.l.b16 %v2821
    %v2859 = vunpack.c.l.b16 %v2822
    %v2860 = vunpack.c.l.b16 %v2823
    %v2861 = vunpack.c.l.b16 %v2824
    %v2862 = vunpack.c.l.b16 %v2825
    %v2863 = vunpack.c.l.b16 %v2826
    %v2864 = vunpack.c.l.b16 %v2827
    %v2865 = vpack.c.b16 %v2850, %v2849
    %v2866 = vpack.c.b16 %v2852, %v2851
    %v2867 = vpack.c.b16 %v2854, %v2853
    %v2868 = vpack.c.b16 %v2856, %v2855
    %v2869 = vpack.c.b16 %v2858, %v2857
    %v2870 = vpack.c.b16 %v2860, %v2859
    %v2871 = vpack.c.b16 %v2862, %v2861
    %v2872 = vpack.c.b16 %v2864, %v2863
    %2881 = vmatprep.subr.bf16.mxu0 0
    %2882 = vmatpush1.bf16.msra.mxu0 %v2865
    %2883 = vmatprep.subr.bf16.mxu0 0
    %2884 = vmatpush1.bf16.msra.mxu0 %v2866
    %2885 = vmatprep.subr.bf16.mxu0 0
    %2886 = vmatpush1.bf16.msra.mxu0 %v2867
    %2887 = vmatprep.subr.bf16.mxu0 0
    %2888 = vmatpush1.bf16.msra.mxu0 %v2868
    %2889 = vmatprep.subr.bf16.mxu0 0
    %2890 = vmatpush1.bf16.msra.mxu0 %v2869
    %2891 = vmatprep.subr.bf16.mxu0 0
    %2892 = vmatpush1.bf16.msra.mxu0 %v2870
    %2893 = vmatprep.subr.bf16.mxu0 0
    %2894 = vmatpush1.bf16.msra.mxu0 %v2871
    %2895 = vmatprep.subr.bf16.mxu0 0
    %2896 = vmatpush1.bf16.msra.mxu0 %v2872
    %2897 = vmatprep.subr.bf16.mxu0 0
    %2898 = vmatpush1.bf16.msra.mxu0 0
    %2899 = vmatprep.subr.bf16.mxu0 0
    %2900 = vmatpush1.bf16.msra.mxu0 0
    %2901 = vmatprep.subr.bf16.mxu0 0
    %2902 = vmatpush1.bf16.msra.mxu0 0
    %2903 = vmatprep.subr.bf16.mxu0 0
    %2904 = vmatpush1.bf16.msra.mxu0 0
    %2905 = vmatprep.subr.bf16.mxu0 0
    %2906 = vmatpush1.bf16.msra.mxu0 0
    %2907 = vmatprep.subr.bf16.mxu0 0
    %2908 = vmatpush1.bf16.msra.mxu0 0
    %2909 = vmatprep.subr.bf16.mxu0 0
    %2910 = vmatpush1.bf16.msra.mxu0 0
    %2911 = vmatprep.subr.bf16.mxu0 0
    %2912 = vmatpush1.bf16.msra.mxu0 0
    %2913 = vmatprep.mubr.bf16.mxu0 0
    %2914 = vmatmul.mubr.bf16.gmra.mrb[0].mxu0 %v2828
    %v2915 = vpop.f32.mrb[0].mxu0
    %v2916 = vadd.f32 %v2832, %v2915
    %v2917 = vpop.f32.mrb[0].mxu0
    %v2918 = vpop.f32.mrb[0].mxu0
    %v2919 = vadd.f32 %v2832, %v2918
    %v2920 = vpop.f32.mrb[0].mxu0
    %2921 = vdwg.mxu0
    %v2922 = vadd.f32 %v2680, %v2916
    %v2923 = vadd.f32 %v2681, %v2919
    %2924 = vadd.xlane.f32.xlu0 %v2922
    %v2925 = vpop.xlane.xlu0 %2924
    %2926 = vadd.xlane.f32.xlu0 %v2923
    %v2927 = vpop.xlane.xlu0 %2926
    %v2928 = vmul.f32 %v2925, 0.03125
    %v2929 = vmul.f32 %v2927, 0.03125
    %v2930 = vsub.f32 %v2922, %v2928
    %v2931 = vsub.f32 %v2923, %v2929
    %v2932 = vmul.f32 %v2930, %v88
    %v2933 = vmul.f32 %v2931, %v88
    %v2934 = vmul.f32 %v2932, %v2932
    %v2935 = vmul.f32 %v2933, %v2933
    %2936 = vadd.xlane.f32.xlu0 %v2934
    %v2937 = vpop.xlane.xlu0 %2936
    %2938 = vadd.xlane.f32.xlu0 %v2935
    %v2939 = vpop.xlane.xlu0 %2938
    %v2940 = vmul.f32 %v2937, 0.03125
    %v2941 = vmul.f32 %v2939, 0.03125
    %v2942 = vadd.f32 %v2940, 1e-12
    %v2943 = vadd.f32 %v2941, 1e-12
    %v2944 = vrsqrt.pop %v2942
    %v2945 = vrsqrt.pop %v2943
    %v2946 = vmul.f32 %v2932, %v2944
    %v2947 = vmul.f32 %v2933, %v2945
    %v2948 = vlaneseq
    %v2949 = vshrl.u32 %v2948, 7
    %v2950 = vsub.s32 0, %v2949
    %v2951 = vrot.slane %v1553, %v2950
    %v2952 = vmul.f32 %v2946, %v2951
    %v2953 = vmul.f32 %v2947, %v2951
    %v2954 = vlaneseq
    %v2955 = vshrl.u32 %v2954, 7
    %v2956 = vsub.s32 1, %v2955
    %v2957 = vrot.slane %v1553, %v2956
    %v2958 = vadd.f32 %v2952, %v2957
    %v2959 = vadd.f32 %v2953, %v2957
    %v2962 = vrot.slane %v2959, 7
    %vm2963 = vcmask 1041409
    %v2964 = vsel %vm2963, %v2962, %v2958
    %2966 = vst [vmem:[#allocation5] sm:$0x3] %v2964
    %s2967 = scalar_lea.vmem %s4, 128
    %v2968 = vld [vmem:[%s2967] sm:$0xf]
    %v2969 = vld [vmem:[%s2967 + $0x4] sm:$0xf]
    %v2970 = vld [vmem:[%s2967 + $0x8] sm:$0xf]
    %v2971 = vld [vmem:[%s2967 + $0xc] sm:$0xf]
    %v2972 = vld [vmem:[%s2967 + $0x10] sm:$0xf]
    %v2973 = vld [vmem:[%s2967 + $0x14] sm:$0xf]
    %v2974 = vld [vmem:[%s2967 + $0x18] sm:$0xf]
    %v2975 = vld [vmem:[%s2967 + $0x1c] sm:$0xf]
    %v2976 = vld [vmem:[%s2967 + $0x20] sm:$0xf]
    %v2977 = vld [vmem:[%s2967 + $0x24] sm:$0xf]
    %v2978 = vld [vmem:[%s2967 + $0x28] sm:$0xf]
    %v2979 = vld [vmem:[%s2967 + $0x2c] sm:$0xf]
    %v2980 = vld [vmem:[%s2967 + $0x30] sm:$0xf]
    %v2981 = vld [vmem:[%s2967 + $0x34] sm:$0xf]
    %v2982 = vld [vmem:[%s2967 + $0x38] sm:$0xf]
    %v2983 = vld [vmem:[%s2967 + $0x3c] sm:$0xf]
    %v2984 = vpack.c.bf16 %v2958, %v2958
    %v2985 = vpack.c.bf16 %v2959, %v2959
    %v2986 = vlaneseq
    %v2987 = vshrl.u32 %v2986, 7
    %v2988 = vsub.s32 2, %v2987
    %v2989 = vrot.slane %v48, %v2988
    %v2992 = vunpack.c.l.b16 %v2984
    %v2993 = vunpack.c.l.b16 %v2985
    %v2994 = vrot.slane %v2993, 7
    %v2995 = vsel %vm2963, %v2994, %v2992
    %v2996 = vpack.c.b16 %v2995, %v2995
    %v3014 = vunpack.c.l.b16 %v2968
    %v3015 = vunpack.c.l.b16 %v2969
    %v3016 = vunpack.c.l.b16 %v2970
    %v3017 = vunpack.c.l.b16 %v2971
    %v3018 = vunpack.c.l.b16 %v2972
    %v3019 = vunpack.c.l.b16 %v2973
    %v3020 = vunpack.c.l.b16 %v2974
    %v3021 = vunpack.c.l.b16 %v2975
    %v3022 = vunpack.c.l.b16 %v2976
    %v3023 = vunpack.c.l.b16 %v2977
    %v3024 = vunpack.c.l.b16 %v2978
    %v3025 = vunpack.c.l.b16 %v2979
    %v3026 = vunpack.c.l.b16 %v2980
    %v3027 = vunpack.c.l.b16 %v2981
    %v3028 = vunpack.c.l.b16 %v2982
    %v3029 = vunpack.c.l.b16 %v2983
    %v3030 = vpack.c.b16 %v3015, %v3014
    %v3031 = vpack.c.b16 %v3017, %v3016
    %v3032 = vpack.c.b16 %v3019, %v3018
    %v3033 = vpack.c.b16 %v3021, %v3020
    %v3034 = vpack.c.b16 %v3023, %v3022
    %v3035 = vpack.c.b16 %v3025, %v3024
    %v3036 = vpack.c.b16 %v3027, %v3026
    %v3037 = vpack.c.b16 %v3029, %v3028
    %3046 = vmatprep.subr.bf16.mxu0 0
    %3047 = vmatpush1.bf16.msra.mxu0 %v3030
    %3048 = vmatprep.subr.bf16.mxu0 0
    %3049 = vmatpush1.bf16.msra.mxu0 %v3031
    %3050 = vmatprep.subr.bf16.mxu0 0
    %3051 = vmatpush1.bf16.msra.mxu0 %v3032
    %3052 = vmatprep.subr.bf16.mxu0 0
    %3053 = vmatpush1.bf16.msra.mxu0 %v3033
    %3054 = vmatprep.subr.bf16.mxu0 0
    %3055 = vmatpush1.bf16.msra.mxu0 %v3034
    %3056 = vmatprep.subr.bf16.mxu0 0
    %3057 = vmatpush1.bf16.msra.mxu0 %v3035
    %3058 = vmatprep.subr.bf16.mxu0 0
    %3059 = vmatpush1.bf16.msra.mxu0 %v3036
    %3060 = vmatprep.subr.bf16.mxu0 0
    %3061 = vmatpush1.bf16.msra.mxu0 %v3037
    %3062 = vmatprep.subr.bf16.mxu0 0
    %3063 = vmatpush1.bf16.msra.mxu0 0
    %3064 = vmatprep.subr.bf16.mxu0 0
    %3065 = vmatpush1.bf16.msra.mxu0 0
    %3066 = vmatprep.subr.bf16.mxu0 0
    %3067 = vmatpush1.bf16.msra.mxu0 0
    %3068 = vmatprep.subr.bf16.mxu0 0
    %3069 = vmatpush1.bf16.msra.mxu0 0
    %3070 = vmatprep.subr.bf16.mxu0 0
    %3071 = vmatpush1.bf16.msra.mxu0 0
    %3072 = vmatprep.subr.bf16.mxu0 0
    %3073 = vmatpush1.bf16.msra.mxu0 0
    %3074 = vmatprep.subr.bf16.mxu0 0
    %3075 = vmatpush1.bf16.msra.mxu0 0
    %3076 = vmatprep.subr.bf16.mxu0 0
    %3077 = vmatpush1.bf16.msra.mxu0 0
    %3078 = vmatprep.mubr.bf16.mxu0 0
    %3079 = vmatmul.mubr.bf16.gmra.mrb[0].mxu0 %v2996
    %v3080 = vpop.f32.mrb[0].mxu0
    %v3081 = vadd.f32 %v2989, %v3080
    %v3082 = vpop.f32.mrb[0].mxu0
    %v3083 = vpop.f32.mrb[0].mxu0
    %v3084 = vpop.f32.mrb[0].mxu0
    %3085 = vdwg.mxu0
    %v3086 = vtanh.pop %v3081
    %3087 = vst [vmem:[#allocation6] sm:$0x3] %v3086
    // Predicated region
    $region38: #{neural_network_forward.1} parent=1 // pred_check
      _
    $region39: #{neural_network_forward.1} parent=1 // pred_check_branch
      %3089 = sbr.rel (0) target = $region41
    $region40: #{neural_network_forward.1} parent=1 // pred_region
      %s3091 = ssub.s32 32, 32
      %3092 = vsyncadd [#allocation4], %s3091
      %s3094 = sshll.u32 [#allocation5], 4
      %s3095 = int_to_ptr.vmem [resolvable:$true] %s3094
      %3097 = dma.vmem_to_hbm [thread:$0]  %s3095, 32, %s8, [#allocation4]
    $region41: #{neural_network_forward.1} parent=1 // pred_fallthru
      _
    // Predicated region
    $region42: #{neural_network_forward.1} parent=1 // pred_check
      _
    $region43: #{neural_network_forward.1} parent=1 // pred_check_branch
      %3099 = sbr.rel (0) target = $region45
    $region44: #{neural_network_forward.1} parent=1 // pred_region
      %s3101 = ssub.s32 32, 32
      %3102 = vsyncadd [#allocation7], %s3101
      %s3104 = sshll.u32 [#allocation6], 4
      %s3105 = int_to_ptr.vmem [resolvable:$true] %s3104
      %3107 = dma.vmem_to_hbm [thread:$0]  %s3105, 32, %s9, [#allocation7]
    $region45: #{neural_network_forward.1} parent=1 // pred_fallthru
      _
    // Predicated region
    $region46: #{neural_network_forward.1} parent=1 // pred_check
      _
    $region47: #{neural_network_forward.1} parent=1 // pred_check_branch
      %3109 = sbr.rel (0) target = $region49
    $region48: #{neural_network_forward.1} parent=1 // pred_region
      %3110 = dma.done [#allocation4], 32
    $region49: #{neural_network_forward.1} parent=1 // pred_fallthru
      _
    // Predicated region
    $region50: #{neural_network_forward.1} parent=1 // pred_check
      _
    $region51: #{neural_network_forward.1} parent=1 // pred_check_branch
      %3112 = sbr.rel (0) target = $region53
    $region52: #{neural_network_forward.1} parent=1 // pred_region
      %3113 = dma.done [#allocation7], 32
    $region53: #{neural_network_forward.1} parent=1 // pred_fallthru
      _
    %3114 = vsyncpa [#allocation3], 1
    %3115 = vsyncpa [#allocation4], 1
    %3116 = vsyncpa [#allocation7], 1

</llo_original>
